<compile_context>
chip_gen: v7x
topology: tpu7x:2x2x1
jax: 0.10.0
libtpu: 0.0.40
codegen_flags: <defaults>
</compile_context>

<pallas_src>
import functools

import jax
import jax.numpy as jnp
from jax.experimental import pallas as pl
from jax.experimental.pallas import tpu as pltpu


# ----------------------------- Pallas kernel -------------------------------

def window_attn_kernel(x_ref, wq_ref, wk_ref, wv_ref, bq_ref, bk_ref, bv_ref,
                       bias_ref, wproj_ref, bproj_ref, o_ref, *, nhead):
    bw, n_tok, c = x_ref.shape            # Bw windows, N tokens each, C channels
    hd = c // nhead
    f32 = jnp.float32
    mxu_t = jnp.bfloat16

    # (Bw, N, C) -> (Bw*N, C): leading-dim merge only (layout preserving).
    x2d = x_ref[...].reshape(bw * n_tok, c)

    def project(w_ref, b_ref):
        # Head-major projection straight off the MXU: one (Bw*N, C) x (C, hd)
        # matmul per head (weights pre-split host-side).  Stacking is along the
        # sublane-major axis (tile-aligned, Bw*N % 8 == 0), so there are no
        # lane slices, lane concatenates, or tiled-dim transposes.
        parts = [
            jnp.dot(x2d, w_ref[h], preferred_element_type=f32) + b_ref[h]
            for h in range(nhead)
        ]
        # (nhead*Bw*N, hd) -> (nhead*Bw, N, hd); head-major batch ordering.
        return jnp.concatenate(parts, axis=0).reshape(nhead * bw, n_tok, hd)

    q3 = project(wq_ref, bq_ref)          # scale pre-folded into Wq / bq
    k3 = project(wk_ref, bk_ref)
    v3 = project(wv_ref, bv_ref)

    # One batched einsum pair over the merged (head, window) axis; bf16 MXU
    # operands, f32 accumulation.
    s = jnp.einsum("znd,zmd->znm", q3.astype(mxu_t), k3.astype(mxu_t),
                   preferred_element_type=f32)               # (nhead*Bw, N, N)
    # Single bias broadcast: bias_ref is (nhead, 1, N, N).
    s = s.reshape(nhead, bw, n_tok, n_tok) + bias_ref[...]

    # Numerically-stable softmax over the last dim (f32 elementwise math;
    # denominator via the EUP approximate reciprocal).
    s = s - jnp.max(s, axis=-1, keepdims=True)
    e = jnp.exp(s)
    p = e * pl.reciprocal(jnp.sum(e, axis=-1, keepdims=True), approx=True)

    ctx = jnp.einsum("znm,zmd->znd",
                     p.reshape(nhead * bw, n_tok, n_tok).astype(mxu_t),
                     v3.astype(mxu_t),
                     preferred_element_type=f32)             # (nhead*Bw, N, hd)

    # Head merge folded into the output projection: accumulate per-head
    # (Bw*N, hd) x (hd, C) matmuls — MXU work, no lane concatenate.
    o2d = None
    for h in range(nhead):
        ctx_h = ctx[h * bw:(h + 1) * bw].reshape(bw * n_tok, hd).astype(mxu_t)
        term = jnp.dot(ctx_h, wproj_ref[h], preferred_element_type=f32)
        o2d = term if o2d is None else o2d + term
    o2d = o2d + bproj_ref[...]
    o_ref[...] = o2d.reshape(bw, n_tok, c).astype(o_ref.dtype)


# ----------------------------- host-side glue -------------------------------

def make_relative_position_bias(bias_table, window_size, nhead):
    """Replicates the torch relative_position_index construction."""
    wh, ww = window_size
    coords = jnp.stack(jnp.meshgrid(jnp.arange(wh), jnp.arange(ww),
                                    indexing="ij"))                   # (2,wh,ww)
    coords_flatten = coords.reshape(2, -1)                            # (2, N)
    rel = coords_flatten[:, :, None] - coords_flatten[:, None, :]     # (2,N,N)
    rel = rel.transpose(1, 2, 0)                                      # (N,N,2)
    rel_idx = ((rel[..., 0] + wh - 1) * (2 * ww - 1)
               + (rel[..., 1] + ww - 1)).reshape(-1)                  # (N*N,)
    N = wh * ww
    bias = bias_table[rel_idx].reshape(N, N, nhead).transpose(2, 0, 1)  # (nh,N,N)
    return bias.astype(jnp.float32)


def _pick_windows_per_step(num_windows, tokens_per_window,
                           target_rows=2048, min_grid_steps=4):
    """Windows per grid step: as many as fit ~target_rows matmul rows while
    keeping >= min_grid_steps grid steps (2 per v7x TensorCore) so each core
    still double-buffers its input DMA under dimension_semantics=('parallel',)."""
    want = max(1, target_rows // max(1, tokens_per_window))
    cap = max(1, -(-num_windows // min_grid_steps))      # ceil division
    return max(1, min(want, cap))


def window_attention_kai(x, H, W, window_size, nhead,
                         wqkv, bqkv, wproj, bproj, bias_table):
    """x: (B, H*W, C) -> (B, H*W, C).  Matches WindowAttention_Kai.forward
    (mask=None, dropout p=0)."""
    B, Nseq, C = x.shape
    ws0, ws1 = window_size
    assert Nseq == H * W
    nH, nW = H // ws0, W // ws1
    N = ws0 * ws1
    hd = C // nhead
    scale = hd ** (-0.5)

    # window_partition (glue, plain JAX)
    xw = x.reshape(B, nH, ws0, nW, ws1, C).transpose(0, 1, 3, 2, 4, 5)
    xw = xw.reshape(B * nH * nW, N, C)
    B_ = xw.shape[0]

    # Host-side split of the fused QKV weight (torch's 3C output features are
    # ordered (3, nhead, hd) -> columns inside each C block are head-major).
    # `scale` is folded into Wq / bq; matmul weights pre-cast to bf16 (MXU
    # operands); biases / bias table stay f32 (added after f32 accumulation).
    mxu_t = jnp.bfloat16

    def head_major(w):                     # (C, C) -> (nhead, C, hd)
        return w.reshape(C, nhead, hd).transpose(1, 0, 2)

    wq = head_major(wqkv[:, 0 * C:1 * C] * scale).astype(mxu_t)
    wk = head_major(wqkv[:, 1 * C:2 * C]).astype(mxu_t)
    wv = head_major(wqkv[:, 2 * C:3 * C]).astype(mxu_t)
    bq = (bqkv[0 * C:1 * C] * scale).reshape(nhead, 1, hd)
    bk = bqkv[1 * C:2 * C].reshape(nhead, 1, hd)
    bv = bqkv[2 * C:3 * C].reshape(nhead, 1, hd)
    wproj_r = wproj.reshape(nhead, hd, C).astype(mxu_t)    # rows are head-major
    bproj_r = bproj.reshape(1, C)

    rel_bias = make_relative_position_bias(bias_table, window_size, nhead)
    rel_bias = rel_bias.reshape(nhead, 1, N, N)            # bcast over windows

    # Windows per grid step; pad the window axis so any B_ works (padded
    # windows compute garbage that is sliced off afterwards).
    bw = _pick_windows_per_step(B_, N)
    grid_len = pl.cdiv(B_, bw)
    B_pad = grid_len * bw
    xw_mx = xw.astype(mxu_t)
    if B_pad != B_:
        xw_mx = jnp.pad(xw_mx, ((0, B_pad - B_), (0, 0), (0, 0)))

    kernel = functools.partial(window_attn_kernel, nhead=nhead)

    out = pl.pallas_call(
        kernel,
        out_shape=jax.ShapeDtypeStruct((B_pad, N, C), x.dtype),
        grid_spec=pltpu.PrefetchScalarGridSpec(
            num_scalar_prefetch=0,
            grid=(grid_len,),
            in_specs=[
                pl.BlockSpec((bw, N, C), lambda b: (b, 0, 0)),           # x (bf16)
                pl.BlockSpec((nhead, C, hd), lambda b: (0, 0, 0)),       # Wq (scaled)
                pl.BlockSpec((nhead, C, hd), lambda b: (0, 0, 0)),       # Wk
                pl.BlockSpec((nhead, C, hd), lambda b: (0, 0, 0)),       # Wv
                pl.BlockSpec((nhead, 1, hd), lambda b: (0, 0, 0)),       # bq (scaled)
                pl.BlockSpec((nhead, 1, hd), lambda b: (0, 0, 0)),       # bk
                pl.BlockSpec((nhead, 1, hd), lambda b: (0, 0, 0)),       # bv
                pl.BlockSpec((nhead, 1, N, N), lambda b: (0, 0, 0, 0)),  # rel bias
                pl.BlockSpec((nhead, hd, C), lambda b: (0, 0, 0)),       # W_proj
                pl.BlockSpec((1, C), lambda b: (0, 0)),                  # b_proj
            ],
            out_specs=pl.BlockSpec((bw, N, C), lambda b: (b, 0, 0)),
        ),
        compiler_params=pltpu.CompilerParams(
            dimension_semantics=("parallel",)),
        # TODO(synk): at real Swin sizes (C>=96, big rel_bias) single-buffer the
        # constant operands (pipeline_mode=pl.Buffered(1)) and set
        # vmem_limit_bytes for v7x's 64 MiB VMEM; negligible at these shapes.
    )(xw_mx, wq, wk, wv, bq, bk, bv, rel_bias, wproj_r, bproj_r)

    out = out[:B_]
    # window_reverse (glue, plain JAX)
    out = out.reshape(B, nH, nW, ws0, ws1, C).transpose(0, 1, 3, 2, 4, 5)
    return out.reshape(B, H * W, C)


# --------------------------- pure-JAX reference ------------------------------

def reference(x, H, W, window_size, nhead, wqkv, bqkv, wproj, bproj, bias_table):
    B, Nseq, C = x.shape
    ws0, ws1 = window_size
    nH, nW = H // ws0, W // ws1
    N = ws0 * ws1
    hd = C // nhead
    scale = hd ** (-0.5)

    xw = x.reshape(B, nH, ws0, nW, ws1, C).transpose(0, 1, 3, 2, 4, 5)
    xw = xw.reshape(-1, N, C)
    B_ = xw.shape[0]

    qkv = xw @ wqkv + bqkv                                   # (B_, N, 3C)
    qkv = qkv.reshape(B_, N, 3, nhead, hd).transpose(2, 0, 3, 1, 4)
    q, k, v = qkv[0], qkv[1], qkv[2]                         # (B_, nh, N, hd)

    attn = jnp.einsum("bhnd,bhmd->bhnm", q, k) * scale
    attn = attn + make_relative_position_bias(bias_table, window_size, nhead)[None]
    attn = jax.nn.softmax(attn, axis=-1)
    o = jnp.einsum("bhnm,bhmd->bhnd", attn, v)
    o = o.transpose(0, 2, 1, 3).reshape(B_, N, C)
    o = o @ wproj + bproj

    o = o.reshape(B, nH, nW, ws0, ws1, C).transpose(0, 1, 3, 2, 4, 5)
    return o.reshape(B, H * W, C)


# --------------------------------- main --------------------------------------

if __name__ == "__main__":
    # Small-but-consistent shapes: d_model=32, nhead=4, window 8x8, H=W=16, B=2
    B, H, W = 2, 16, 16
    d_model, nhead = 32, 4
    window_size = (8, 8)

    key = jax.random.PRNGKey(0)
    k_x, k_wq, k_bq, k_wp, k_bp, k_tab = jax.random.split(key, 6)

    x = jax.random.normal(k_x, (B, H * W, d_model), dtype=jnp.float32)

    # Deterministic parameter init (shapes follow nn.Linear / Parameter in __init__).
    # Linear weights stored transposed relative to torch: (in, out) so we do x @ W.
    wqkv = jax.random.normal(k_wq, (d_model, 3 * d_model), jnp.float32) * 0.05
    bqkv = jax.random.normal(k_bq, (3 * d_model,), jnp.float32) * 0.02
    wproj = jax.random.normal(k_wp, (d_model, d_model), jnp.float32) * 0.05
    bproj = jax.random.normal(k_bp, (d_model,), jnp.float32) * 0.02
    # relative_position_bias_table: ((2*wh-1)*(2*ww-1), nhead), trunc_normal std=0.02
    tab_shape = ((2 * window_size[0] - 1) * (2 * window_size[1] - 1), nhead)
    bias_table = 0.02 * jax.random.truncated_normal(k_tab, -2.0, 2.0,
                                                    tab_shape, jnp.float32)

    # attn_drop / proj_drop default to 0.0 -> identity (no dropout in kernel).
    out = window_attention_kai(x, H, W, window_size, nhead,
                               wqkv, bqkv, wproj, bproj, bias_table)
    out = jax.block_until_ready(out)

    ref = reference(x, H, W, window_size, nhead,
                    wqkv, bqkv, wproj, bproj, bias_table)
    assert out.shape == (B, H * W, d_model)
    # Tolerance accounts for bf16 MXU operands (f32 accumulation) plus the EUP
    # approximate reciprocal in the softmax denominator.
    err = jnp.max(jnp.abs(out - ref))
    assert jnp.allclose(out, ref, rtol=5e-2, atol=5e-3), f"max err {err}"

    print("KERNEL_OK")
</pallas_src>

<mosaic_0001>
module attributes {stable_mosaic.version = 11 : i64} {
  func.func @window_attn_kernel(%arg0: i32, %arg1: memref<2x64x32xbf16, #tpu.memory_space<vmem>>, %arg2: memref<4x32x8xbf16, #tpu.memory_space<vmem>>, %arg3: memref<4x32x8xbf16, #tpu.memory_space<vmem>>, %arg4: memref<4x32x8xbf16, #tpu.memory_space<vmem>>, %arg5: memref<4x1x8xf32, #tpu.memory_space<vmem>>, %arg6: memref<4x1x8xf32, #tpu.memory_space<vmem>>, %arg7: memref<4x1x8xf32, #tpu.memory_space<vmem>>, %arg8: memref<4x1x64x64xf32, #tpu.memory_space<vmem>>, %arg9: memref<4x8x32xbf16, #tpu.memory_space<vmem>>, %arg10: memref<1x32xf32, #tpu.memory_space<vmem>>, %arg11: memref<2x64x32xf32, #tpu.memory_space<vmem>>) attributes {dimension_semantics = [#tpu.dimension_semantics<parallel>], iteration_bounds = array<i64: 4>, scalar_prefetch = 0 : i64, scratch_operands = 0 : i64, tpu.core_type = #tpu.core_type<tc>, window_params = [{transform_indices = @transform_0, window_bounds = array<i64: 2, 64, 32>}, {pipeline_mode = #tpu.pipeline_mode<synchronous>, transform_indices = @transform_1, window_bounds = array<i64: 4, 32, 8>}, {pipeline_mode = #tpu.pipeline_mode<synchronous>, transform_indices = @transform_2, window_bounds = array<i64: 4, 32, 8>}, {pipeline_mode = #tpu.pipeline_mode<synchronous>, transform_indices = @transform_3, window_bounds = array<i64: 4, 32, 8>}, {pipeline_mode = #tpu.pipeline_mode<synchronous>, transform_indices = @transform_4, window_bounds = array<i64: 4, 1, 8>}, {pipeline_mode = #tpu.pipeline_mode<synchronous>, transform_indices = @transform_5, window_bounds = array<i64: 4, 1, 8>}, {pipeline_mode = #tpu.pipeline_mode<synchronous>, transform_indices = @transform_6, window_bounds = array<i64: 4, 1, 8>}, {pipeline_mode = #tpu.pipeline_mode<synchronous>, transform_indices = @transform_7, window_bounds = array<i64: 4, 1, 64, 64>}, {pipeline_mode = #tpu.pipeline_mode<synchronous>, transform_indices = @transform_8, window_bounds = array<i64: 4, 8, 32>}, {pipeline_mode = #tpu.pipeline_mode<synchronous>, transform_indices = @transform_9, window_bounds = array<i64: 1, 32>}, {transform_indices = @transform_10, window_bounds = array<i64: 2, 64, 32>}]} {
    %c0 = arith.constant 0 : index
    %c0_0 = arith.constant 0 : index
    %c0_1 = arith.constant 0 : index
    %0 = vector.load %arg1[%c0, %c0_0, %c0_1] : memref<2x64x32xbf16, #tpu.memory_space<vmem>>, vector<2x64x32xbf16>
    %1 = vector.shape_cast %0 : vector<2x64x32xbf16> to vector<128x32xbf16>
    %c0_2 = arith.constant 0 : index
    %c0_3 = arith.constant 0 : index
    %c0_4 = arith.constant 0 : index
    %2 = vector.load %arg2[%c0_2, %c0_3, %c0_4] : memref<4x32x8xbf16, #tpu.memory_space<vmem>>, vector<1x32x8xbf16>
    %3 = vector.shape_cast %2 : vector<1x32x8xbf16> to vector<32x8xbf16>
    %cst = arith.constant dense<0.000000e+00> : vector<128x8xf32>
    %4 = tpu.matmul %1, %3, %cst {dimension_numbers = #tpu.dot_dimension_numbers<[1], [0], [0], [1], [0, 0, 1, 1], [], []>} : vector<128x32xbf16>, vector<32x8xbf16>, vector<128x8xf32> -> vector<128x8xf32>
    %c0_5 = arith.constant 0 : index
    %c0_6 = arith.constant 0 : index
    %c0_7 = arith.constant 0 : index
    %5 = vector.load %arg5[%c0_5, %c0_6, %c0_7] : memref<4x1x8xf32, #tpu.memory_space<vmem>>, vector<1x1x8xf32>
    %6 = vector.shape_cast %5 : vector<1x1x8xf32> to vector<1x8xf32>
    %7 = vector.broadcast %6 : vector<1x8xf32> to vector<128x8xf32>
    %8 = arith.addf %4, %7 : vector<128x8xf32>
    %c1 = arith.constant 1 : index
    %c0_8 = arith.constant 0 : index
    %c0_9 = arith.constant 0 : index
    %9 = vector.load %arg2[%c1, %c0_8, %c0_9] : memref<4x32x8xbf16, #tpu.memory_space<vmem>>, vector<1x32x8xbf16>
    %10 = vector.shape_cast %9 : vector<1x32x8xbf16> to vector<32x8xbf16>
    %cst_10 = arith.constant dense<0.000000e+00> : vector<128x8xf32>
    %11 = tpu.matmul %1, %10, %cst_10 {dimension_numbers = #tpu.dot_dimension_numbers<[1], [0], [0], [1], [0, 0, 1, 1], [], []>} : vector<128x32xbf16>, vector<32x8xbf16>, vector<128x8xf32> -> vector<128x8xf32>
    %c1_11 = arith.constant 1 : index
    %c0_12 = arith.constant 0 : index
    %c0_13 = arith.constant 0 : index
    %12 = vector.load %arg5[%c1_11, %c0_12, %c0_13] : memref<4x1x8xf32, #tpu.memory_space<vmem>>, vector<1x1x8xf32>
    %13 = vector.shape_cast %12 : vector<1x1x8xf32> to vector<1x8xf32>
    %14 = vector.broadcast %13 : vector<1x8xf32> to vector<128x8xf32>
    %15 = arith.addf %11, %14 : vector<128x8xf32>
    %c2 = arith.constant 2 : index
    %c0_14 = arith.constant 0 : index
    %c0_15 = arith.constant 0 : index
    %16 = vector.load %arg2[%c2, %c0_14, %c0_15] : memref<4x32x8xbf16, #tpu.memory_space<vmem>>, vector<1x32x8xbf16>
    %17 = vector.shape_cast %16 : vector<1x32x8xbf16> to vector<32x8xbf16>
    %cst_16 = arith.constant dense<0.000000e+00> : vector<128x8xf32>
    %18 = tpu.matmul %1, %17, %cst_16 {dimension_numbers = #tpu.dot_dimension_numbers<[1], [0], [0], [1], [0, 0, 1, 1], [], []>} : vector<128x32xbf16>, vector<32x8xbf16>, vector<128x8xf32> -> vector<128x8xf32>
    %c2_17 = arith.constant 2 : index
    %c0_18 = arith.constant 0 : index
    %c0_19 = arith.constant 0 : index
    %19 = vector.load %arg5[%c2_17, %c0_18, %c0_19] : memref<4x1x8xf32, #tpu.memory_space<vmem>>, vector<1x1x8xf32>
    %20 = vector.shape_cast %19 : vector<1x1x8xf32> to vector<1x8xf32>
    %21 = vector.broadcast %20 : vector<1x8xf32> to vector<128x8xf32>
    %22 = arith.addf %18, %21 : vector<128x8xf32>
    %c3 = arith.constant 3 : index
    %c0_20 = arith.constant 0 : index
    %c0_21 = arith.constant 0 : index
    %23 = vector.load %arg2[%c3, %c0_20, %c0_21] : memref<4x32x8xbf16, #tpu.memory_space<vmem>>, vector<1x32x8xbf16>
    %24 = vector.shape_cast %23 : vector<1x32x8xbf16> to vector<32x8xbf16>
    %cst_22 = arith.constant dense<0.000000e+00> : vector<128x8xf32>
    %25 = tpu.matmul %1, %24, %cst_22 {dimension_numbers = #tpu.dot_dimension_numbers<[1], [0], [0], [1], [0, 0, 1, 1], [], []>} : vector<128x32xbf16>, vector<32x8xbf16>, vector<128x8xf32> -> vector<128x8xf32>
    %c3_23 = arith.constant 3 : index
    %c0_24 = arith.constant 0 : index
    %c0_25 = arith.constant 0 : index
    %26 = vector.load %arg5[%c3_23, %c0_24, %c0_25] : memref<4x1x8xf32, #tpu.memory_space<vmem>>, vector<1x1x8xf32>
    %27 = vector.shape_cast %26 : vector<1x1x8xf32> to vector<1x8xf32>
    %28 = vector.broadcast %27 : vector<1x8xf32> to vector<128x8xf32>
    %29 = arith.addf %25, %28 : vector<128x8xf32>
    %30 = tpu.concatenate %8, %15, %22, %29 in 0 : vector<128x8xf32>, vector<128x8xf32>, vector<128x8xf32>, vector<128x8xf32> -> vector<512x8xf32>
    %31 = vector.shape_cast %30 : vector<512x8xf32> to vector<8x64x8xf32>
    %c0_26 = arith.constant 0 : index
    %c0_27 = arith.constant 0 : index
    %c0_28 = arith.constant 0 : index
    %32 = vector.load %arg3[%c0_26, %c0_27, %c0_28] : memref<4x32x8xbf16, #tpu.memory_space<vmem>>, vector<1x32x8xbf16>
    %33 = vector.shape_cast %32 : vector<1x32x8xbf16> to vector<32x8xbf16>
    %cst_29 = arith.constant dense<0.000000e+00> : vector<128x8xf32>
    %34 = tpu.matmul %1, %33, %cst_29 {dimension_numbers = #tpu.dot_dimension_numbers<[1], [0], [0], [1], [0, 0, 1, 1], [], []>} : vector<128x32xbf16>, vector<32x8xbf16>, vector<128x8xf32> -> vector<128x8xf32>
    %c0_30 = arith.constant 0 : index
    %c0_31 = arith.constant 0 : index
    %c0_32 = arith.constant 0 : index
    %35 = vector.load %arg6[%c0_30, %c0_31, %c0_32] : memref<4x1x8xf32, #tpu.memory_space<vmem>>, vector<1x1x8xf32>
    %36 = vector.shape_cast %35 : vector<1x1x8xf32> to vector<1x8xf32>
    %37 = vector.broadcast %36 : vector<1x8xf32> to vector<128x8xf32>
    %38 = arith.addf %34, %37 : vector<128x8xf32>
    %c1_33 = arith.constant 1 : index
    %c0_34 = arith.constant 0 : index
    %c0_35 = arith.constant 0 : index
    %39 = vector.load %arg3[%c1_33, %c0_34, %c0_35] : memref<4x32x8xbf16, #tpu.memory_space<vmem>>, vector<1x32x8xbf16>
    %40 = vector.shape_cast %39 : vector<1x32x8xbf16> to vector<32x8xbf16>
    %cst_36 = arith.constant dense<0.000000e+00> : vector<128x8xf32>
    %41 = tpu.matmul %1, %40, %cst_36 {dimension_numbers = #tpu.dot_dimension_numbers<[1], [0], [0], [1], [0, 0, 1, 1], [], []>} : vector<128x32xbf16>, vector<32x8xbf16>, vector<128x8xf32> -> vector<128x8xf32>
    %c1_37 = arith.constant 1 : index
    %c0_38 = arith.constant 0 : index
    %c0_39 = arith.constant 0 : index
    %42 = vector.load %arg6[%c1_37, %c0_38, %c0_39] : memref<4x1x8xf32, #tpu.memory_space<vmem>>, vector<1x1x8xf32>
    %43 = vector.shape_cast %42 : vector<1x1x8xf32> to vector<1x8xf32>
    %44 = vector.broadcast %43 : vector<1x8xf32> to vector<128x8xf32>
    %45 = arith.addf %41, %44 : vector<128x8xf32>
    %c2_40 = arith.constant 2 : index
    %c0_41 = arith.constant 0 : index
    %c0_42 = arith.constant 0 : index
    %46 = vector.load %arg3[%c2_40, %c0_41, %c0_42] : memref<4x32x8xbf16, #tpu.memory_space<vmem>>, vector<1x32x8xbf16>
    %47 = vector.shape_cast %46 : vector<1x32x8xbf16> to vector<32x8xbf16>
    %cst_43 = arith.constant dense<0.000000e+00> : vector<128x8xf32>
    %48 = tpu.matmul %1, %47, %cst_43 {dimension_numbers = #tpu.dot_dimension_numbers<[1], [0], [0], [1], [0, 0, 1, 1], [], []>} : vector<128x32xbf16>, vector<32x8xbf16>, vector<128x8xf32> -> vector<128x8xf32>
    %c2_44 = arith.constant 2 : index
    %c0_45 = arith.constant 0 : index
    %c0_46 = arith.constant 0 : index
    %49 = vector.load %arg6[%c2_44, %c0_45, %c0_46] : memref<4x1x8xf32, #tpu.memory_space<vmem>>, vector<1x1x8xf32>
    %50 = vector.shape_cast %49 : vector<1x1x8xf32> to vector<1x8xf32>
    %51 = vector.broadcast %50 : vector<1x8xf32> to vector<128x8xf32>
    %52 = arith.addf %48, %51 : vector<128x8xf32>
    %c3_47 = arith.constant 3 : index
    %c0_48 = arith.constant 0 : index
    %c0_49 = arith.constant 0 : index
    %53 = vector.load %arg3[%c3_47, %c0_48, %c0_49] : memref<4x32x8xbf16, #tpu.memory_space<vmem>>, vector<1x32x8xbf16>
    %54 = vector.shape_cast %53 : vector<1x32x8xbf16> to vector<32x8xbf16>
    %cst_50 = arith.constant dense<0.000000e+00> : vector<128x8xf32>
    %55 = tpu.matmul %1, %54, %cst_50 {dimension_numbers = #tpu.dot_dimension_numbers<[1], [0], [0], [1], [0, 0, 1, 1], [], []>} : vector<128x32xbf16>, vector<32x8xbf16>, vector<128x8xf32> -> vector<128x8xf32>
    %c3_51 = arith.constant 3 : index
    %c0_52 = arith.constant 0 : index
    %c0_53 = arith.constant 0 : index
    %56 = vector.load %arg6[%c3_51, %c0_52, %c0_53] : memref<4x1x8xf32, #tpu.memory_space<vmem>>, vector<1x1x8xf32>
    %57 = vector.shape_cast %56 : vector<1x1x8xf32> to vector<1x8xf32>
    %58 = vector.broadcast %57 : vector<1x8xf32> to vector<128x8xf32>
    %59 = arith.addf %55, %58 : vector<128x8xf32>
    %60 = tpu.concatenate %38, %45, %52, %59 in 0 : vector<128x8xf32>, vector<128x8xf32>, vector<128x8xf32>, vector<128x8xf32> -> vector<512x8xf32>
    %61 = vector.shape_cast %60 : vector<512x8xf32> to vector<8x64x8xf32>
    %c0_54 = arith.constant 0 : index
    %c0_55 = arith.constant 0 : index
    %c0_56 = arith.constant 0 : index
    %62 = vector.load %arg4[%c0_54, %c0_55, %c0_56] : memref<4x32x8xbf16, #tpu.memory_space<vmem>>, vector<1x32x8xbf16>
    %63 = vector.shape_cast %62 : vector<1x32x8xbf16> to vector<32x8xbf16>
    %cst_57 = arith.constant dense<0.000000e+00> : vector<128x8xf32>
    %64 = tpu.matmul %1, %63, %cst_57 {dimension_numbers = #tpu.dot_dimension_numbers<[1], [0], [0], [1], [0, 0, 1, 1], [], []>} : vector<128x32xbf16>, vector<32x8xbf16>, vector<128x8xf32> -> vector<128x8xf32>
    %c0_58 = arith.constant 0 : index
    %c0_59 = arith.constant 0 : index
    %c0_60 = arith.constant 0 : index
    %65 = vector.load %arg7[%c0_58, %c0_59, %c0_60] : memref<4x1x8xf32, #tpu.memory_space<vmem>>, vector<1x1x8xf32>
    %66 = vector.shape_cast %65 : vector<1x1x8xf32> to vector<1x8xf32>
    %67 = vector.broadcast %66 : vector<1x8xf32> to vector<128x8xf32>
    %68 = arith.addf %64, %67 : vector<128x8xf32>
    %c1_61 = arith.constant 1 : index
    %c0_62 = arith.constant 0 : index
    %c0_63 = arith.constant 0 : index
    %69 = vector.load %arg4[%c1_61, %c0_62, %c0_63] : memref<4x32x8xbf16, #tpu.memory_space<vmem>>, vector<1x32x8xbf16>
    %70 = vector.shape_cast %69 : vector<1x32x8xbf16> to vector<32x8xbf16>
    %cst_64 = arith.constant dense<0.000000e+00> : vector<128x8xf32>
    %71 = tpu.matmul %1, %70, %cst_64 {dimension_numbers = #tpu.dot_dimension_numbers<[1], [0], [0], [1], [0, 0, 1, 1], [], []>} : vector<128x32xbf16>, vector<32x8xbf16>, vector<128x8xf32> -> vector<128x8xf32>
    %c1_65 = arith.constant 1 : index
    %c0_66 = arith.constant 0 : index
    %c0_67 = arith.constant 0 : index
    %72 = vector.load %arg7[%c1_65, %c0_66, %c0_67] : memref<4x1x8xf32, #tpu.memory_space<vmem>>, vector<1x1x8xf32>
    %73 = vector.shape_cast %72 : vector<1x1x8xf32> to vector<1x8xf32>
    %74 = vector.broadcast %73 : vector<1x8xf32> to vector<128x8xf32>
    %75 = arith.addf %71, %74 : vector<128x8xf32>
    %c2_68 = arith.constant 2 : index
    %c0_69 = arith.constant 0 : index
    %c0_70 = arith.constant 0 : index
    %76 = vector.load %arg4[%c2_68, %c0_69, %c0_70] : memref<4x32x8xbf16, #tpu.memory_space<vmem>>, vector<1x32x8xbf16>
    %77 = vector.shape_cast %76 : vector<1x32x8xbf16> to vector<32x8xbf16>
    %cst_71 = arith.constant dense<0.000000e+00> : vector<128x8xf32>
    %78 = tpu.matmul %1, %77, %cst_71 {dimension_numbers = #tpu.dot_dimension_numbers<[1], [0], [0], [1], [0, 0, 1, 1], [], []>} : vector<128x32xbf16>, vector<32x8xbf16>, vector<128x8xf32> -> vector<128x8xf32>
    %c2_72 = arith.constant 2 : index
    %c0_73 = arith.constant 0 : index
    %c0_74 = arith.constant 0 : index
    %79 = vector.load %arg7[%c2_72, %c0_73, %c0_74] : memref<4x1x8xf32, #tpu.memory_space<vmem>>, vector<1x1x8xf32>
    %80 = vector.shape_cast %79 : vector<1x1x8xf32> to vector<1x8xf32>
    %81 = vector.broadcast %80 : vector<1x8xf32> to vector<128x8xf32>
    %82 = arith.addf %78, %81 : vector<128x8xf32>
    %c3_75 = arith.constant 3 : index
    %c0_76 = arith.constant 0 : index
    %c0_77 = arith.constant 0 : index
    %83 = vector.load %arg4[%c3_75, %c0_76, %c0_77] : memref<4x32x8xbf16, #tpu.memory_space<vmem>>, vector<1x32x8xbf16>
    %84 = vector.shape_cast %83 : vector<1x32x8xbf16> to vector<32x8xbf16>
    %cst_78 = arith.constant dense<0.000000e+00> : vector<128x8xf32>
    %85 = tpu.matmul %1, %84, %cst_78 {dimension_numbers = #tpu.dot_dimension_numbers<[1], [0], [0], [1], [0, 0, 1, 1], [], []>} : vector<128x32xbf16>, vector<32x8xbf16>, vector<128x8xf32> -> vector<128x8xf32>
    %c3_79 = arith.constant 3 : index
    %c0_80 = arith.constant 0 : index
    %c0_81 = arith.constant 0 : index
    %86 = vector.load %arg7[%c3_79, %c0_80, %c0_81] : memref<4x1x8xf32, #tpu.memory_space<vmem>>, vector<1x1x8xf32>
    %87 = vector.shape_cast %86 : vector<1x1x8xf32> to vector<1x8xf32>
    %88 = vector.broadcast %87 : vector<1x8xf32> to vector<128x8xf32>
    %89 = arith.addf %85, %88 : vector<128x8xf32>
    %90 = tpu.concatenate %68, %75, %82, %89 in 0 : vector<128x8xf32>, vector<128x8xf32>, vector<128x8xf32>, vector<128x8xf32> -> vector<512x8xf32>
    %91 = vector.shape_cast %90 : vector<512x8xf32> to vector<8x64x8xf32>
    %92 = arith.truncf %31 : vector<8x64x8xf32> to vector<8x64x8xbf16>
    %93 = arith.truncf %61 : vector<8x64x8xf32> to vector<8x64x8xbf16>
    "tpu.trace_start"() <{level = 10 : i32, message = "znd,zmd->znm"}> : () -> ()
    %cst_82 = arith.constant dense<0.000000e+00> : vector<8x64x64xf32>
    %94 = tpu.matmul %92, %93, %cst_82 {dimension_numbers = #tpu.dot_dimension_numbers<[2], [2], [1], [1], [0, 0, 0, 1, 1, 1], [0], [0]>} : vector<8x64x8xbf16>, vector<8x64x8xbf16>, vector<8x64x64xf32> -> vector<8x64x64xf32>
    "tpu.trace_stop"() : () -> ()
    %95 = vector.shape_cast %94 : vector<8x64x64xf32> to vector<4x2x64x64xf32>
    %c0_83 = arith.constant 0 : index
    %c0_84 = arith.constant 0 : index
    %c0_85 = arith.constant 0 : index
    %c0_86 = arith.constant 0 : index
    %96 = vector.load %arg8[%c0_83, %c0_84, %c0_85, %c0_86] : memref<4x1x64x64xf32, #tpu.memory_space<vmem>>, vector<4x1x64x64xf32>
    %97 = vector.broadcast %96 : vector<4x1x64x64xf32> to vector<4x2x64x64xf32>
    %98 = arith.addf %95, %97 : vector<4x2x64x64xf32>
    %cst_87 = arith.constant dense<0xFF800000> : vector<4x2x64xf32>
    %99 = vector.multi_reduction <maximumf>, %98, %cst_87 [3] : vector<4x2x64x64xf32> to vector<4x2x64xf32>
    %100 = vector.shape_cast %99 : vector<4x2x64xf32> to vector<4x2x64x1xf32>
    %101 = vector.broadcast %100 : vector<4x2x64x1xf32> to vector<4x2x64x64xf32>
    %102 = arith.subf %98, %101 : vector<4x2x64x64xf32>
    %103 = math.exp %102 : vector<4x2x64x64xf32>
    %cst_88 = arith.constant dense<0.000000e+00> : vector<4x2x64xf32>
    %104 = vector.multi_reduction <add>, %103, %cst_88 [3] : vector<4x2x64x64xf32> to vector<4x2x64xf32>
    %105 = vector.shape_cast %104 : vector<4x2x64xf32> to vector<4x2x64x1xf32>
    %106 = tpu.reciprocal %105 {approx = true} : vector<4x2x64x1xf32> -> vector<4x2x64x1xf32>
    %107 = vector.broadcast %106 : vector<4x2x64x1xf32> to vector<4x2x64x64xf32>
    %108 = arith.mulf %103, %107 : vector<4x2x64x64xf32>
    %109 = vector.shape_cast %108 : vector<4x2x64x64xf32> to vector<8x64x64xf32>
    %110 = arith.truncf %109 : vector<8x64x64xf32> to vector<8x64x64xbf16>
    %111 = arith.truncf %91 : vector<8x64x8xf32> to vector<8x64x8xbf16>
    "tpu.trace_start"() <{level = 10 : i32, message = "znm,zmd->znd"}> : () -> ()
    %cst_89 = arith.constant dense<0.000000e+00> : vector<8x64x8xf32>
    %112 = tpu.matmul %110, %111, %cst_89 {dimension_numbers = #tpu.dot_dimension_numbers<[2], [1], [1], [2], [0, 0, 0, 1, 1, 2], [0], [0]>} : vector<8x64x64xbf16>, vector<8x64x8xbf16>, vector<8x64x8xf32> -> vector<8x64x8xf32>
    "tpu.trace_stop"() : () -> ()
    %113 = vector.extract_strided_slice %112 {offsets = [0, 0, 0], sizes = [2, 64, 8], strides = [1, 1, 1]} : vector<8x64x8xf32> to vector<2x64x8xf32>
    %114 = vector.shape_cast %113 : vector<2x64x8xf32> to vector<128x8xf32>
    %115 = arith.truncf %114 : vector<128x8xf32> to vector<128x8xbf16>
    %c0_90 = arith.constant 0 : index
    %c0_91 = arith.constant 0 : index
    %c0_92 = arith.constant 0 : index
    %116 = vector.load %arg9[%c0_90, %c0_91, %c0_92] : memref<4x8x32xbf16, #tpu.memory_space<vmem>>, vector<1x8x32xbf16>
    %117 = vector.shape_cast %116 : vector<1x8x32xbf16> to vector<8x32xbf16>
    %cst_93 = arith.constant dense<0.000000e+00> : vector<128x32xf32>
    %118 = tpu.matmul %115, %117, %cst_93 {dimension_numbers = #tpu.dot_dimension_numbers<[1], [0], [0], [1], [0, 0, 1, 1], [], []>} : vector<128x8xbf16>, vector<8x32xbf16>, vector<128x32xf32> -> vector<128x32xf32>
    %119 = vector.extract_strided_slice %112 {offsets = [2, 0, 0], sizes = [2, 64, 8], strides = [1, 1, 1]} : vector<8x64x8xf32> to vector<2x64x8xf32>
    %120 = vector.shape_cast %119 : vector<2x64x8xf32> to vector<128x8xf32>
    %121 = arith.truncf %120 : vector<128x8xf32> to vector<128x8xbf16>
    %c1_94 = arith.constant 1 : index
    %c0_95 = arith.constant 0 : index
    %c0_96 = arith.constant 0 : index
    %122 = vector.load %arg9[%c1_94, %c0_95, %c0_96] : memref<4x8x32xbf16, #tpu.memory_space<vmem>>, vector<1x8x32xbf16>
    %123 = vector.shape_cast %122 : vector<1x8x32xbf16> to vector<8x32xbf16>
    %cst_97 = arith.constant dense<0.000000e+00> : vector<128x32xf32>
    %124 = tpu.matmul %121, %123, %cst_97 {dimension_numbers = #tpu.dot_dimension_numbers<[1], [0], [0], [1], [0, 0, 1, 1], [], []>} : vector<128x8xbf16>, vector<8x32xbf16>, vector<128x32xf32> -> vector<128x32xf32>
    %125 = arith.addf %118, %124 : vector<128x32xf32>
    %126 = vector.extract_strided_slice %112 {offsets = [4, 0, 0], sizes = [2, 64, 8], strides = [1, 1, 1]} : vector<8x64x8xf32> to vector<2x64x8xf32>
    %127 = vector.shape_cast %126 : vector<2x64x8xf32> to vector<128x8xf32>
    %128 = arith.truncf %127 : vector<128x8xf32> to vector<128x8xbf16>
    %c2_98 = arith.constant 2 : index
    %c0_99 = arith.constant 0 : index
    %c0_100 = arith.constant 0 : index
    %129 = vector.load %arg9[%c2_98, %c0_99, %c0_100] : memref<4x8x32xbf16, #tpu.memory_space<vmem>>, vector<1x8x32xbf16>
    %130 = vector.shape_cast %129 : vector<1x8x32xbf16> to vector<8x32xbf16>
    %cst_101 = arith.constant dense<0.000000e+00> : vector<128x32xf32>
    %131 = tpu.matmul %128, %130, %cst_101 {dimension_numbers = #tpu.dot_dimension_numbers<[1], [0], [0], [1], [0, 0, 1, 1], [], []>} : vector<128x8xbf16>, vector<8x32xbf16>, vector<128x32xf32> -> vector<128x32xf32>
    %132 = arith.addf %125, %131 : vector<128x32xf32>
    %133 = vector.extract_strided_slice %112 {offsets = [6, 0, 0], sizes = [2, 64, 8], strides = [1, 1, 1]} : vector<8x64x8xf32> to vector<2x64x8xf32>
    %134 = vector.shape_cast %133 : vector<2x64x8xf32> to vector<128x8xf32>
    %135 = arith.truncf %134 : vector<128x8xf32> to vector<128x8xbf16>
    %c3_102 = arith.constant 3 : index
    %c0_103 = arith.constant 0 : index
    %c0_104 = arith.constant 0 : index
    %136 = vector.load %arg9[%c3_102, %c0_103, %c0_104] : memref<4x8x32xbf16, #tpu.memory_space<vmem>>, vector<1x8x32xbf16>
    %137 = vector.shape_cast %136 : vector<1x8x32xbf16> to vector<8x32xbf16>
    %cst_105 = arith.constant dense<0.000000e+00> : vector<128x32xf32>
    %138 = tpu.matmul %135, %137, %cst_105 {dimension_numbers = #tpu.dot_dimension_numbers<[1], [0], [0], [1], [0, 0, 1, 1], [], []>} : vector<128x8xbf16>, vector<8x32xbf16>, vector<128x32xf32> -> vector<128x32xf32>
    %139 = arith.addf %132, %138 : vector<128x32xf32>
    %c0_106 = arith.constant 0 : index
    %c0_107 = arith.constant 0 : index
    %140 = vector.load %arg10[%c0_106, %c0_107] : memref<1x32xf32, #tpu.memory_space<vmem>>, vector<1x32xf32>
    %141 = vector.broadcast %140 : vector<1x32xf32> to vector<128x32xf32>
    %142 = arith.addf %139, %141 : vector<128x32xf32>
    %143 = vector.shape_cast %142 : vector<128x32xf32> to vector<2x64x32xf32>
    %c0_108 = arith.constant 0 : index
    %c0_109 = arith.constant 0 : index
    %c0_110 = arith.constant 0 : index
    %144 = vector.load %arg11[%c0_108, %c0_109, %c0_110] : memref<2x64x32xf32, #tpu.memory_space<vmem>>, vector<2x64x32xf32>
    tpu.vector_store %arg11[%c0_108, %c0_109, %c0_110], %143 {strides = array<i32>} : memref<2x64x32xf32, #tpu.memory_space<vmem>>, vector<2x64x32xf32>,
    return
  }
  func.func @transform_0(%arg0: i32) -> (i32, i32, i32) {
    %c0_i32 = arith.constant 0 : i32
    %c0_i32_0 = arith.constant 0 : i32
    %c0_i32_1 = arith.constant 0 : i32
    return %arg0, %c0_i32, %c0_i32_0 : i32, i32, i32
  }
  func.func @transform_1(%arg0: i32) -> (i32, i32, i32) {
    %c0_i32 = arith.constant 0 : i32
    %c0_i32_0 = arith.constant 0 : i32
    %c0_i32_1 = arith.constant 0 : i32
    %c0_i32_2 = arith.constant 0 : i32
    return %c0_i32, %c0_i32_0, %c0_i32_1 : i32, i32, i32
  }
  func.func @transform_2(%arg0: i32) -> (i32, i32, i32) {
    %c0_i32 = arith.constant 0 : i32
    %c0_i32_0 = arith.constant 0 : i32
    %c0_i32_1 = arith.constant 0 : i32
    %c0_i32_2 = arith.constant 0 : i32
    return %c0_i32, %c0_i32_0, %c0_i32_1 : i32, i32, i32
  }
  func.func @transform_3(%arg0: i32) -> (i32, i32, i32) {
    %c0_i32 = arith.constant 0 : i32
    %c0_i32_0 = arith.constant 0 : i32
    %c0_i32_1 = arith.constant 0 : i32
    %c0_i32_2 = arith.constant 0 : i32
    return %c0_i32, %c0_i32_0, %c0_i32_1 : i32, i32, i32
  }
  func.func @transform_4(%arg0: i32) -> (i32, i32, i32) {
    %c0_i32 = arith.constant 0 : i32
    %c0_i32_0 = arith.constant 0 : i32
    %c0_i32_1 = arith.constant 0 : i32
    %c0_i32_2 = arith.constant 0 : i32
    return %c0_i32, %c0_i32_0, %c0_i32_1 : i32, i32, i32
  }
  func.func @transform_5(%arg0: i32) -> (i32, i32, i32) {
    %c0_i32 = arith.constant 0 : i32
    %c0_i32_0 = arith.constant 0 : i32
    %c0_i32_1 = arith.constant 0 : i32
    %c0_i32_2 = arith.constant 0 : i32
    return %c0_i32, %c0_i32_0, %c0_i32_1 : i32, i32, i32
  }
  func.func @transform_6(%arg0: i32) -> (i32, i32, i32) {
    %c0_i32 = arith.constant 0 : i32
    %c0_i32_0 = arith.constant 0 : i32
    %c0_i32_1 = arith.constant 0 : i32
    %c0_i32_2 = arith.constant 0 : i32
    return %c0_i32, %c0_i32_0, %c0_i32_1 : i32, i32, i32
  }
  func.func @transform_7(%arg0: i32) -> (i32, i32, i32, i32) {
    %c0_i32 = arith.constant 0 : i32
    %c0_i32_0 = arith.constant 0 : i32
    %c0_i32_1 = arith.constant 0 : i32
    %c0_i32_2 = arith.constant 0 : i32
    %c0_i32_3 = arith.constant 0 : i32
    return %c0_i32, %c0_i32_0, %c0_i32_1, %c0_i32_2 : i32, i32, i32, i32
  }
  func.func @transform_8(%arg0: i32) -> (i32, i32, i32) {
    %c0_i32 = arith.constant 0 : i32
    %c0_i32_0 = arith.constant 0 : i32
    %c0_i32_1 = arith.constant 0 : i32
    %c0_i32_2 = arith.constant 0 : i32
    return %c0_i32, %c0_i32_0, %c0_i32_1 : i32, i32, i32
  }
  func.func @transform_9(%arg0: i32) -> (i32, i32) {
    %c0_i32 = arith.constant 0 : i32
    %c0_i32_0 = arith.constant 0 : i32
    %c0_i32_1 = arith.constant 0 : i32
    return %c0_i32, %c0_i32_0 : i32, i32
  }
  func.func @transform_10(%arg0: i32) -> (i32, i32, i32) {
    %c0_i32 = arith.constant 0 : i32
    %c0_i32_0 = arith.constant 0 : i32
    %c0_i32_1 = arith.constant 0 : i32
    return %arg0, %c0_i32, %c0_i32_0 : i32, i32, i32
  }
}

</mosaic_0001>

<llo_original>
// kernel: tpu_custom_call.1
$region0: #{tpu_custom_call.1}
  #allocation0 [shape = 'u32[]', space=smem, size = 0x4, offset = 0x4, fixed_abs, tag = 'smem constant byte address 0x4 - core index']
  #allocation1 [shape = 'u32[144,128]{1,0:T(1,128)}', space=vmem, size = 0x12000, scoped, tag = 'internal scratch']
  %s0 = inlined_call_operand.vmem [shape: bf16[8,64,32], index: 0, kind: input, shape index: {}]
  %s1 = inlined_call_operand.vmem [shape: bf16[4,32,8], index: 1, kind: input, shape index: {}]
  %s2 = inlined_call_operand.vmem [shape: bf16[4,32,8], index: 2, kind: input, shape index: {}]
  %s3 = inlined_call_operand.vmem [shape: bf16[4,32,8], index: 3, kind: input, shape index: {}]
  %s4 = inlined_call_operand.vmem [shape: f32[4,1,8], index: 4, kind: input, shape index: {}]
  %s5 = inlined_call_operand.vmem [shape: f32[4,1,8], index: 5, kind: input, shape index: {}]
  %s6 = inlined_call_operand.vmem [shape: f32[4,1,8], index: 6, kind: input, shape index: {}]
  %s7 = inlined_call_operand.vmem [shape: f32[4,1,64,64], index: 7, kind: input, shape index: {}]
  %s8 = inlined_call_operand.vmem [shape: bf16[4,8,32], index: 8, kind: input, shape index: {}]
  %s9 = inlined_call_operand.vmem [shape: f32[1,32], index: 9, kind: input, shape index: {}]
  %s10 = inlined_call_operand.vmem [shape: f32[8,64,32], index: 10, kind: output, shape index: {}]
  %s11 = sld [smem:[#allocation0]]
  $region73: #{tpu_custom_call.1} parent=0
    _
  %s13 = ssub.s32 1, %s11
  %s14 = scalar_select 0, %s13, %s11
  loop: start=0, step=1, limit=6
  $region2: #{tpu_custom_call.1} parent=0 // loop_pre_header
    _
  $region3: #{tpu_custom_call.1} parent=0 // loop_header
    %s16 = sphi 0, %s20
    %p17 = scmp.ge.s32.totalorder %s16, 6
    %s26 = sphi 0, %s28
    %s29 = sphi 0, %s26
    %s30 = sphi 0, %s29
    %s46 = sphi 0, %s30
    %s50 = sphi 0, %s50
    %s52 = sphi 0, %s50
    %s53 = sphi 0, %s52
    %s67 = sphi 0, %s53
    %s71 = sphi 0, %s71
    %s73 = sphi 0, %s71
    %s74 = sphi 0, %s73
    %s88 = sphi 0, %s74
    %s92 = sphi 0, %s92
    %s94 = sphi 0, %s92
    %s95 = sphi 0, %s94
    %s109 = sphi 0, %s95
    %s113 = sphi 0, %s113
    %s115 = sphi 0, %s113
    %s116 = sphi 0, %s115
    %s130 = sphi 0, %s116
    %s134 = sphi 0, %s134
    %s136 = sphi 0, %s134
    %s137 = sphi 0, %s136
    %s151 = sphi 0, %s137
    %s155 = sphi 0, %s155
    %s157 = sphi 0, %s155
    %s158 = sphi 0, %s157
    %s172 = sphi 0, %s158
    %s176 = sphi 0, %s176
    %s178 = sphi 0, %s176
    %s179 = sphi 0, %s178
    %s193 = sphi 0, %s179
    %s197 = sphi 0, %s197
    %s199 = sphi 0, %s197
    %s200 = sphi 0, %s199
    %s214 = sphi 0, %s200
    %s218 = sphi 0, %s218
    %s220 = sphi 0, %s218
    %s221 = sphi 0, %s220
    %s235 = sphi 0, %s221
    %s241 = sphi 0, %s243
    %s244 = sphi 0, %s241
    %s245 = sphi 0, %s244
    %s261 = sphi 0, %s245
  $region4: #{tpu_custom_call.1} parent=0 // loop_header_branch
    %19 = sbr.rel (%p17) target = $region8
  $region5: #{tpu_custom_call.1} parent=0 // loop_body
    %s21 = ssub.s32 %s16, 1
    %s22 = ssub.s32 %s16, 2
    %s23 = sadd.s32 %s16, 1
    %s24 = ssub.s32 %s16, %s23
    %p25 = scmp.eq.s32.totalorder %s24, 0
    %s27 = sadd.s32 %s26, 1
    %s28 = scalar_select %p25, %s26, %s27
    %p31 = pneg %p25
    %p32 = scmp.eq.s32.totalorder %s16, 3
    %p33 = por %p31, %p32
    %p34 = scmp.ne.s32.totalorder %s26, %s29
    %p35 = scmp.eq.s32.totalorder %s16, 0
    %p36 = por %p34, %p35
    %p37 = scmp.ne.s32.totalorder %s26, %s29
    %p38 = scmp.eq.s32.totalorder %s21, 3
    %p39 = por %p37, %p38
    %p40 = scmp.ne.s32.totalorder %s29, %s30
    %p41 = scmp.eq.s32.totalorder %s21, 0
    %p42 = por %p40, %p41
    %p43 = scmp.ne.s32.totalorder %s29, %s30
    %p44 = scmp.eq.s32.totalorder %s22, 3
    %p45 = por %p43, %p44
    %p47 = scmp.ne.s32.totalorder %s30, %s46
    %p48 = scmp.eq.s32.totalorder %s22, 0
    %p49 = por %p47, %p48
    %s51 = sadd.s32 %s50, 1
    %p54 = scmp.eq.s32.totalorder %s16, 3
    %p55 = scmp.ne.s32.totalorder %s50, %s52
    %p56 = scmp.eq.s32.totalorder %s16, 0
    %p57 = por %p55, %p56
    %p58 = scmp.ne.s32.totalorder %s50, %s52
    %p59 = scmp.eq.s32.totalorder %s21, 3
    %p60 = por %p58, %p59
    %p61 = scmp.ne.s32.totalorder %s52, %s53
    %p62 = scmp.eq.s32.totalorder %s21, 0
    %p63 = por %p61, %p62
    %p64 = scmp.ne.s32.totalorder %s52, %s53
    %p65 = scmp.eq.s32.totalorder %s22, 3
    %p66 = por %p64, %p65
    %p68 = scmp.ne.s32.totalorder %s53, %s67
    %p69 = scmp.eq.s32.totalorder %s22, 0
    %p70 = por %p68, %p69
    %s72 = sadd.s32 %s71, 1
    %p75 = scmp.eq.s32.totalorder %s16, 3
    %p76 = scmp.ne.s32.totalorder %s71, %s73
    %p77 = scmp.eq.s32.totalorder %s16, 0
    %p78 = por %p76, %p77
    %p79 = scmp.ne.s32.totalorder %s71, %s73
    %p80 = scmp.eq.s32.totalorder %s21, 3
    %p81 = por %p79, %p80
    %p82 = scmp.ne.s32.totalorder %s73, %s74
    %p83 = scmp.eq.s32.totalorder %s21, 0
    %p84 = por %p82, %p83
    %p85 = scmp.ne.s32.totalorder %s73, %s74
    %p86 = scmp.eq.s32.totalorder %s22, 3
    %p87 = por %p85, %p86
    %p89 = scmp.ne.s32.totalorder %s74, %s88
    %p90 = scmp.eq.s32.totalorder %s22, 0
    %p91 = por %p89, %p90
    %s93 = sadd.s32 %s92, 1
    %p96 = scmp.eq.s32.totalorder %s16, 3
    %p97 = scmp.ne.s32.totalorder %s92, %s94
    %p98 = scmp.eq.s32.totalorder %s16, 0
    %p99 = por %p97, %p98
    %p100 = scmp.ne.s32.totalorder %s92, %s94
    %p101 = scmp.eq.s32.totalorder %s21, 3
    %p102 = por %p100, %p101
    %p103 = scmp.ne.s32.totalorder %s94, %s95
    %p104 = scmp.eq.s32.totalorder %s21, 0
    %p105 = por %p103, %p104
    %p106 = scmp.ne.s32.totalorder %s94, %s95
    %p107 = scmp.eq.s32.totalorder %s22, 3
    %p108 = por %p106, %p107
    %p110 = scmp.ne.s32.totalorder %s95, %s109
    %p111 = scmp.eq.s32.totalorder %s22, 0
    %p112 = por %p110, %p111
    %s114 = sadd.s32 %s113, 1
    %p117 = scmp.eq.s32.totalorder %s16, 3
    %p118 = scmp.ne.s32.totalorder %s113, %s115
    %p119 = scmp.eq.s32.totalorder %s16, 0
    %p120 = por %p118, %p119
    %p121 = scmp.ne.s32.totalorder %s113, %s115
    %p122 = scmp.eq.s32.totalorder %s21, 3
    %p123 = por %p121, %p122
    %p124 = scmp.ne.s32.totalorder %s115, %s116
    %p125 = scmp.eq.s32.totalorder %s21, 0
    %p126 = por %p124, %p125
    %p127 = scmp.ne.s32.totalorder %s115, %s116
    %p128 = scmp.eq.s32.totalorder %s22, 3
    %p129 = por %p127, %p128
    %p131 = scmp.ne.s32.totalorder %s116, %s130
    %p132 = scmp.eq.s32.totalorder %s22, 0
    %p133 = por %p131, %p132
    %s135 = sadd.s32 %s134, 1
    %p138 = scmp.eq.s32.totalorder %s16, 3
    %p139 = scmp.ne.s32.totalorder %s134, %s136
    %p140 = scmp.eq.s32.totalorder %s16, 0
    %p141 = por %p139, %p140
    %p142 = scmp.ne.s32.totalorder %s134, %s136
    %p143 = scmp.eq.s32.totalorder %s21, 3
    %p144 = por %p142, %p143
    %p145 = scmp.ne.s32.totalorder %s136, %s137
    %p146 = scmp.eq.s32.totalorder %s21, 0
    %p147 = por %p145, %p146
    %p148 = scmp.ne.s32.totalorder %s136, %s137
    %p149 = scmp.eq.s32.totalorder %s22, 3
    %p150 = por %p148, %p149
    %p152 = scmp.ne.s32.totalorder %s137, %s151
    %p153 = scmp.eq.s32.totalorder %s22, 0
    %p154 = por %p152, %p153
    %s156 = sadd.s32 %s155, 1
    %p159 = scmp.eq.s32.totalorder %s16, 3
    %p160 = scmp.ne.s32.totalorder %s155, %s157
    %p161 = scmp.eq.s32.totalorder %s16, 0
    %p162 = por %p160, %p161
    %p163 = scmp.ne.s32.totalorder %s155, %s157
    %p164 = scmp.eq.s32.totalorder %s21, 3
    %p165 = por %p163, %p164
    %p166 = scmp.ne.s32.totalorder %s157, %s158
    %p167 = scmp.eq.s32.totalorder %s21, 0
    %p168 = por %p166, %p167
    %p169 = scmp.ne.s32.totalorder %s157, %s158
    %p170 = scmp.eq.s32.totalorder %s22, 3
    %p171 = por %p169, %p170
    %p173 = scmp.ne.s32.totalorder %s158, %s172
    %p174 = scmp.eq.s32.totalorder %s22, 0
    %p175 = por %p173, %p174
    %s177 = sadd.s32 %s176, 1
    %p180 = scmp.eq.s32.totalorder %s16, 3
    %p181 = scmp.ne.s32.totalorder %s176, %s178
    %p182 = scmp.eq.s32.totalorder %s16, 0
    %p183 = por %p181, %p182
    %p184 = scmp.ne.s32.totalorder %s176, %s178
    %p185 = scmp.eq.s32.totalorder %s21, 3
    %p186 = por %p184, %p185
    %p187 = scmp.ne.s32.totalorder %s178, %s179
    %p188 = scmp.eq.s32.totalorder %s21, 0
    %p189 = por %p187, %p188
    %p190 = scmp.ne.s32.totalorder %s178, %s179
    %p191 = scmp.eq.s32.totalorder %s22, 3
    %p192 = por %p190, %p191
    %p194 = scmp.ne.s32.totalorder %s179, %s193
    %p195 = scmp.eq.s32.totalorder %s22, 0
    %p196 = por %p194, %p195
    %s198 = sadd.s32 %s197, 1
    %p201 = scmp.eq.s32.totalorder %s16, 3
    %p202 = scmp.ne.s32.totalorder %s197, %s199
    %p203 = scmp.eq.s32.totalorder %s16, 0
    %p204 = por %p202, %p203
    %p205 = scmp.ne.s32.totalorder %s197, %s199
    %p206 = scmp.eq.s32.totalorder %s21, 3
    %p207 = por %p205, %p206
    %p208 = scmp.ne.s32.totalorder %s199, %s200
    %p209 = scmp.eq.s32.totalorder %s21, 0
    %p210 = por %p208, %p209
    %p211 = scmp.ne.s32.totalorder %s199, %s200
    %p212 = scmp.eq.s32.totalorder %s22, 3
    %p213 = por %p211, %p212
    %p215 = scmp.ne.s32.totalorder %s200, %s214
    %p216 = scmp.eq.s32.totalorder %s22, 0
    %p217 = por %p215, %p216
    %s219 = sadd.s32 %s218, 1
    %p222 = scmp.eq.s32.totalorder %s16, 3
    %p223 = scmp.ne.s32.totalorder %s218, %s220
    %p224 = scmp.eq.s32.totalorder %s16, 0
    %p225 = por %p223, %p224
    %p226 = scmp.ne.s32.totalorder %s218, %s220
    %p227 = scmp.eq.s32.totalorder %s21, 3
    %p228 = por %p226, %p227
    %p229 = scmp.ne.s32.totalorder %s220, %s221
    %p230 = scmp.eq.s32.totalorder %s21, 0
    %p231 = por %p229, %p230
    %p232 = scmp.ne.s32.totalorder %s220, %s221
    %p233 = scmp.eq.s32.totalorder %s22, 3
    %p234 = por %p232, %p233
    %p236 = scmp.ne.s32.totalorder %s221, %s235
    %p237 = scmp.eq.s32.totalorder %s22, 0
    %p238 = por %p236, %p237
    %s239 = ssub.s32 %s16, %s23
    %p240 = scmp.eq.s32.totalorder %s239, 0
    %s242 = sadd.s32 %s241, 1
    %s243 = scalar_select %p240, %s241, %s242
    %p246 = pneg %p240
    %p247 = scmp.eq.s32.totalorder %s16, 3
    %p248 = por %p246, %p247
    %p249 = scmp.ne.s32.totalorder %s241, %s244
    %p250 = scmp.eq.s32.totalorder %s16, 0
    %p251 = por %p249, %p250
    %p252 = scmp.ne.s32.totalorder %s241, %s244
    %p253 = scmp.eq.s32.totalorder %s21, 3
    %p254 = por %p252, %p253
    %p255 = scmp.ne.s32.totalorder %s244, %s245
    %p256 = scmp.eq.s32.totalorder %s21, 0
    %p257 = por %p255, %p256
    %p258 = scmp.ne.s32.totalorder %s244, %s245
    %p259 = scmp.eq.s32.totalorder %s22, 3
    %p260 = por %p258, %p259
    %p262 = scmp.ne.s32.totalorder %s245, %s261
    %p263 = scmp.eq.s32.totalorder %s22, 0
    %p264 = por %p262, %p263
    %p265 = scmp.le.s32.totalorder 1, %s16
    %p266 = scmp.lt.s32.totalorder %s16, 5
    %p267 = pnand %p265, %p266
    %p268 = pneg %p267
    // Predicated region
    $region9: #{tpu_custom_call.1} parent=5 // pred_check
      _
    $region10: #{tpu_custom_call.1} parent=5 // pred_check_branch
      %270 = sbr.rel (%p267) target = $region12
    $region11: #{tpu_custom_call.1} parent=5 // pred_region
      %s271 = ssub.s32 %s16, 1
      // Predicated region
      $region13: #{tpu_custom_call.1} parent=11 // pred_check
        %p272 = pneg %p63
      $region14: #{tpu_custom_call.1} parent=11 // pred_check_branch
        %274 = sbr.rel (%p272) target = $region16
      $region15: #{tpu_custom_call.1} parent=11 // pred_region
        _
      $region16: #{tpu_custom_call.1} parent=11 // pred_fallthru
        _
      // Predicated region
      $region17: #{tpu_custom_call.1} parent=11 // pred_check
        %p275 = pneg %p84
      $region18: #{tpu_custom_call.1} parent=11 // pred_check_branch
        %277 = sbr.rel (%p275) target = $region20
      $region19: #{tpu_custom_call.1} parent=11 // pred_region
        _
      $region20: #{tpu_custom_call.1} parent=11 // pred_fallthru
        _
      // Predicated region
      $region21: #{tpu_custom_call.1} parent=11 // pred_check
        %p278 = pneg %p105
      $region22: #{tpu_custom_call.1} parent=11 // pred_check_branch
        %280 = sbr.rel (%p278) target = $region24
      $region23: #{tpu_custom_call.1} parent=11 // pred_region
        _
      $region24: #{tpu_custom_call.1} parent=11 // pred_fallthru
        _
      // Predicated region
      $region25: #{tpu_custom_call.1} parent=11 // pred_check
        %p281 = pneg %p126
      $region26: #{tpu_custom_call.1} parent=11 // pred_check_branch
        %283 = sbr.rel (%p281) target = $region28
      $region27: #{tpu_custom_call.1} parent=11 // pred_region
        _
      $region28: #{tpu_custom_call.1} parent=11 // pred_fallthru
        _
      // Predicated region
      $region29: #{tpu_custom_call.1} parent=11 // pred_check
        %p284 = pneg %p147
      $region30: #{tpu_custom_call.1} parent=11 // pred_check_branch
        %286 = sbr.rel (%p284) target = $region32
      $region31: #{tpu_custom_call.1} parent=11 // pred_region
        _
      $region32: #{tpu_custom_call.1} parent=11 // pred_fallthru
        _
      // Predicated region
      $region33: #{tpu_custom_call.1} parent=11 // pred_check
        %p287 = pneg %p168
      $region34: #{tpu_custom_call.1} parent=11 // pred_check_branch
        %289 = sbr.rel (%p287) target = $region36
      $region35: #{tpu_custom_call.1} parent=11 // pred_region
        _
      $region36: #{tpu_custom_call.1} parent=11 // pred_fallthru
        _
      // Predicated region
      $region37: #{tpu_custom_call.1} parent=11 // pred_check
        %p290 = pneg %p189
      $region38: #{tpu_custom_call.1} parent=11 // pred_check_branch
        %292 = sbr.rel (%p290) target = $region40
      $region39: #{tpu_custom_call.1} parent=11 // pred_region
        _
      $region40: #{tpu_custom_call.1} parent=11 // pred_fallthru
        _
      // Predicated region
      $region41: #{tpu_custom_call.1} parent=11 // pred_check
        %p293 = pneg %p210
      $region42: #{tpu_custom_call.1} parent=11 // pred_check_branch
        %295 = sbr.rel (%p293) target = $region44
      $region43: #{tpu_custom_call.1} parent=11 // pred_region
        _
      $region44: #{tpu_custom_call.1} parent=11 // pred_fallthru
        _
      // Predicated region
      $region45: #{tpu_custom_call.1} parent=11 // pred_check
        %p296 = pneg %p231
      $region46: #{tpu_custom_call.1} parent=11 // pred_check_branch
        %298 = sbr.rel (%p296) target = $region48
      $region47: #{tpu_custom_call.1} parent=11 // pred_region
        _
      $region48: #{tpu_custom_call.1} parent=11 // pred_fallthru
        _
    $region12: #{tpu_custom_call.1} parent=5 // pred_fallthru
      _
    %p299 = scmp.lt.s32.totalorder %s16, 4
    // Predicated region
    $region49: #{tpu_custom_call.1} parent=5 // pred_check
      %p300 = pneg %p299
    $region50: #{tpu_custom_call.1} parent=5 // pred_check_branch
      %302 = sbr.rel (%p300) target = $region52
    $region51: #{tpu_custom_call.1} parent=5 // pred_region
      // Predicated region
      $region53: #{tpu_custom_call.1} parent=51 // pred_check
        %p303 = pneg %p36
      $region54: #{tpu_custom_call.1} parent=51 // pred_check_branch
        %305 = sbr.rel (%p303) target = $region56
      $region55: #{tpu_custom_call.1} parent=51 // pred_region
        %s306 = smul.u32 2, %s16
        %p307 = scmp.lt.s32.totalorder %s306, 7
        %s308 = scalar_select %p307, %s306, 7
        %s309 = smul.addr %s308, 8
        %s310 = smul.addr %s309, 4
        %s311 = scalar_lea.vmem %s0, %s310
        %s312 = smul.u32 2, %s16
      $region56: #{tpu_custom_call.1} parent=51 // pred_fallthru
        _
    $region52: #{tpu_custom_call.1} parent=5 // pred_fallthru
      _
    %p313 = scmp.le.s32.totalorder 1, %s16
    %p314 = scmp.lt.s32.totalorder %s16, 5
    %p315 = pnand %p313, %p314
    %p316 = pneg %p315
    // Predicated region
    $region57: #{tpu_custom_call.1} parent=5 // pred_check
      _
    $region58: #{tpu_custom_call.1} parent=5 // pred_check_branch
      %318 = sbr.rel (%p315) target = $region60
    $region59: #{tpu_custom_call.1} parent=5 // pred_region
      %s319 = ssub.s32 %s16, 1
      %s320 = smul.u32 2, %s21
      %p321 = scmp.lt.s32.totalorder %s320, 7
      %s322 = scalar_select %p321, %s320, 7
      %s323 = smul.addr %s322, 8
      %s324 = smul.addr %s323, 4
      %s325 = scalar_lea.vmem %s0, %s324
      %p326 = pneg %p42
      %p327 = pneg %p39
      %p328 = pneg %p63
      %p329 = pneg %p60
      %p330 = pneg %p84
      %p331 = pneg %p81
      %p332 = pneg %p105
      %p333 = pneg %p102
      %p334 = pneg %p126
      %p335 = pneg %p123
      %p336 = pneg %p147
      %p337 = pneg %p144
      %p338 = pneg %p168
      %p339 = pneg %p165
      %p340 = pneg %p189
      %p341 = pneg %p186
      %p342 = pneg %p210
      %p343 = pneg %p207
      %p344 = pneg %p231
      %p345 = pneg %p228
      %p346 = pneg %p257
      %p347 = pneg %p254
      %s348 = smul.u32 2, %s21
      %p349 = scmp.lt.s32.totalorder %s348, 7
      %s350 = scalar_select %p349, %s348, 7
      %s351 = smul.addr %s350, 8
      %s352 = smul.addr %s351, 8
      %s353 = scalar_lea.vmem %s10, %s352
      %s354 = smul.u32 2, %s21
      %p355 = scmp.lt.s32.totalorder %s354, 7
      %s356 = scalar_select %p355, %s354, 7
      %s357 = smul.addr %s356, 8
      %s358 = smul.addr %s357, 4
      %s359 = scalar_lea.vmem %s0, %s358
      %s360 = smul.u32 2, %s21
      %s361 = smul.u32 2, %s21
      %p362 = scmp.lt.s32.totalorder %s361, 7
      %s363 = scalar_select %p362, %s361, 7
      %s364 = smul.addr %s363, 8
      %s365 = smul.addr %s364, 8
      %s366 = scalar_lea.vmem %s10, %s365
      %s367 = smul.u32 2, %s21
      %v369 = vld [vmem:[%s359] sm:$0xf]
      %v370 = vld [vmem:[%s359 + $0x4] sm:$0xf]
      %v371 = vld [vmem:[%s359 + $0x8] sm:$0xf]
      %v372 = vld [vmem:[%s359 + $0xc] sm:$0xf]
      %v373 = vld [vmem:[%s359 + $0x10] sm:$0xf]
      %v374 = vld [vmem:[%s359 + $0x14] sm:$0xf]
      %v375 = vld [vmem:[%s359 + $0x18] sm:$0xf]
      %v376 = vld [vmem:[%s359 + $0x1c] sm:$0xf]
      %v377 = vld [vmem:[%s359 + $0x20] sm:$0xf]
      %v378 = vld [vmem:[%s359 + $0x24] sm:$0xf]
      %v379 = vld [vmem:[%s359 + $0x28] sm:$0xf]
      %v380 = vld [vmem:[%s359 + $0x2c] sm:$0xf]
      %v381 = vld [vmem:[%s359 + $0x30] sm:$0xf]
      %v382 = vld [vmem:[%s359 + $0x34] sm:$0xf]
      %v383 = vld [vmem:[%s359 + $0x38] sm:$0xf]
      %v384 = vld [vmem:[%s359 + $0x3c] sm:$0xf]
      %v385 = vld [vmem:[%s1] sm:$0xf]
      %v386 = vld [vmem:[%s1 + $0x4] sm:$0xf]
      %v387 = vld [vmem:[%s1 + $0x8] sm:$0xf]
      %v388 = vld [vmem:[%s1 + $0xc] sm:$0xf]
      %v389 = vld [vmem:[%s4] sm:$0x1]
      %v391 = vlaneseq
      %v392 = vshrl.u32 %v391, 7
      %v393 = vsub.s32 0, %v392
      %v394 = vrot.slane %v389, %v393
      %v412 = vunpack.c.l.b16 %v369
      %v413 = vunpack.c.l.b16 %v370
      %v414 = vunpack.c.l.b16 %v371
      %v415 = vunpack.c.l.b16 %v372
      %v416 = vunpack.c.l.b16 %v373
      %v417 = vunpack.c.l.b16 %v374
      %v418 = vunpack.c.l.b16 %v375
      %v419 = vunpack.c.l.b16 %v376
      %v420 = vunpack.c.l.b16 %v377
      %v421 = vunpack.c.l.b16 %v378
      %v422 = vunpack.c.l.b16 %v379
      %v423 = vunpack.c.l.b16 %v380
      %v424 = vunpack.c.l.b16 %v381
      %v425 = vunpack.c.l.b16 %v382
      %v426 = vunpack.c.l.b16 %v383
      %v427 = vunpack.c.l.b16 %v384
      %v428 = vpack.c.b16 %v413, %v412
      %v429 = vpack.c.b16 %v415, %v414
      %v430 = vpack.c.b16 %v417, %v416
      %v431 = vpack.c.b16 %v419, %v418
      %v432 = vpack.c.b16 %v421, %v420
      %v433 = vpack.c.b16 %v423, %v422
      %v434 = vpack.c.b16 %v425, %v424
      %v435 = vpack.c.b16 %v427, %v426
      %v440 = vunpack.c.l.b16 %v385
      %v441 = vunpack.c.l.b16 %v386
      %v442 = vunpack.c.l.b16 %v387
      %v443 = vunpack.c.l.b16 %v388
      %v444 = vpack.c.b16 %v441, %v440
      %v445 = vpack.c.b16 %v443, %v442
      %vm448 = vcmask 261120
      %v450 = vsel %vm448, %v428, 0
      %v453 = vsel %vm448, %v429, 0
      %v456 = vsel %vm448, %v430, 0
      %v459 = vsel %vm448, %v431, 0
      %v462 = vsel %vm448, %v432, 0
      %v465 = vsel %vm448, %v433, 0
      %v468 = vsel %vm448, %v434, 0
      %v471 = vsel %vm448, %v435, 0
      %473 = vmatprep.subr.bf16.mxu0 0
      %474 = vmatpush1.bf16.msra.mxu0 %v444
      %475 = vmatprep.subr.bf16.mxu0 0
      %476 = vmatpush1.bf16.msra.mxu0 %v445
      %477 = vmatprep.subr.bf16.mxu0 0
      %478 = vmatpush1.bf16.msra.mxu0 0
      %479 = vmatprep.subr.bf16.mxu0 0
      %480 = vmatpush1.bf16.msra.mxu0 0
      %481 = vmatprep.subr.bf16.mxu0 0
      %482 = vmatpush1.bf16.msra.mxu0 0
      %483 = vmatprep.subr.bf16.mxu0 0
      %484 = vmatpush1.bf16.msra.mxu0 0
      %485 = vmatprep.subr.bf16.mxu0 0
      %486 = vmatpush1.bf16.msra.mxu0 0
      %487 = vmatprep.subr.bf16.mxu0 0
      %488 = vmatpush1.bf16.msra.mxu0 0
      %489 = vmatprep.subr.bf16.mxu0 0
      %490 = vmatpush1.bf16.msra.mxu0 0
      %491 = vmatprep.subr.bf16.mxu0 0
      %492 = vmatpush1.bf16.msra.mxu0 0
      %493 = vmatprep.subr.bf16.mxu0 0
      %494 = vmatpush1.bf16.msra.mxu0 0
      %495 = vmatprep.subr.bf16.mxu0 0
      %496 = vmatpush1.bf16.msra.mxu0 0
      %497 = vmatprep.subr.bf16.mxu0 0
      %498 = vmatpush1.bf16.msra.mxu0 0
      %499 = vmatprep.subr.bf16.mxu0 0
      %500 = vmatpush1.bf16.msra.mxu0 0
      %501 = vmatprep.subr.bf16.mxu0 0
      %502 = vmatpush1.bf16.msra.mxu0 0
      %503 = vmatprep.subr.bf16.mxu0 0
      %504 = vmatpush1.bf16.msra.mxu0 0
      %505 = vmatprep.mubr.bf16.mxu0 0
      %506 = vmatmul.mubr.bf16.gmra.mrb[0].mxu0 %v450
      %v507 = vpop.f32.mrb[0].mxu0
      %v508 = vadd.f32 %v394, %v507
      %v509 = vpop.f32.mrb[0].mxu0
      %v510 = vpop.f32.mrb[0].mxu0
      %v511 = vadd.f32 %v394, %v510
      %v512 = vpop.f32.mrb[0].mxu0
      %513 = vmatprep.mubr.bf16.mxu0 0
      %514 = vmatmul.mubr.bf16.gmra.mrb[0].mxu0 %v453
      %v515 = vpop.f32.mrb[0].mxu0
      %v516 = vadd.f32 %v394, %v515
      %v517 = vpop.f32.mrb[0].mxu0
      %v518 = vpop.f32.mrb[0].mxu0
      %v519 = vadd.f32 %v394, %v518
      %v520 = vpop.f32.mrb[0].mxu0
      %521 = vmatprep.mubr.bf16.mxu0 0
      %522 = vmatmul.mubr.bf16.gmra.mrb[0].mxu0 %v456
      %v523 = vpop.f32.mrb[0].mxu0
      %v524 = vadd.f32 %v394, %v523
      %v525 = vpop.f32.mrb[0].mxu0
      %v526 = vpop.f32.mrb[0].mxu0
      %v527 = vadd.f32 %v394, %v526
      %v528 = vpop.f32.mrb[0].mxu0
      %529 = vmatprep.mubr.bf16.mxu0 0
      %530 = vmatmul.mubr.bf16.gmra.mrb[0].mxu0 %v459
      %v531 = vpop.f32.mrb[0].mxu0
      %v532 = vadd.f32 %v394, %v531
      %v533 = vpop.f32.mrb[0].mxu0
      %v534 = vpop.f32.mrb[0].mxu0
      %v535 = vadd.f32 %v394, %v534
      %v536 = vpop.f32.mrb[0].mxu0
      %537 = vmatprep.mubr.bf16.mxu0 0
      %538 = vmatmul.mubr.bf16.gmra.mrb[0].mxu0 %v462
      %v539 = vpop.f32.mrb[0].mxu0
      %v540 = vadd.f32 %v394, %v539
      %v541 = vpop.f32.mrb[0].mxu0
      %v542 = vpop.f32.mrb[0].mxu0
      %v543 = vadd.f32 %v394, %v542
      %v544 = vpop.f32.mrb[0].mxu0
      %545 = vmatprep.mubr.bf16.mxu0 0
      %546 = vmatmul.mubr.bf16.gmra.mrb[0].mxu0 %v465
      %v547 = vpop.f32.mrb[0].mxu0
      %v548 = vadd.f32 %v394, %v547
      %v549 = vpop.f32.mrb[0].mxu0
      %v550 = vpop.f32.mrb[0].mxu0
      %v551 = vadd.f32 %v394, %v550
      %v552 = vpop.f32.mrb[0].mxu0
      %553 = vmatprep.mubr.bf16.mxu0 0
      %554 = vmatmul.mubr.bf16.gmra.mrb[0].mxu0 %v468
      %v555 = vpop.f32.mrb[0].mxu0
      %v556 = vadd.f32 %v394, %v555
      %v557 = vpop.f32.mrb[0].mxu0
      %v558 = vpop.f32.mrb[0].mxu0
      %v559 = vadd.f32 %v394, %v558
      %v560 = vpop.f32.mrb[0].mxu0
      %561 = vmatprep.mubr.bf16.mxu0 0
      %562 = vmatmul.mubr.bf16.gmra.mrb[0].mxu0 %v471
      %v563 = vpop.f32.mrb[0].mxu0
      %v564 = vadd.f32 %v394, %v563
      %v565 = vpop.f32.mrb[0].mxu0
      %v566 = vpop.f32.mrb[0].mxu0
      %v567 = vadd.f32 %v394, %v566
      %v568 = vpop.f32.mrb[0].mxu0
      %569 = vdwg.mxu0
      %s570 = scalar_lea.vmem %s1, 16
      %v571 = vld [vmem:[%s570] sm:$0xf]
      %v572 = vld [vmem:[%s570 + $0x4] sm:$0xf]
      %v573 = vld [vmem:[%s570 + $0x8] sm:$0xf]
      %v574 = vld [vmem:[%s570 + $0xc] sm:$0xf]
      %s575 = scalar_lea.vmem %s4, 1
      %v576 = vld [vmem:[%s575] sm:$0x1]
      %v578 = vlaneseq
      %v579 = vshrl.u32 %v578, 7
      %v580 = vsub.s32 0, %v579
      %v581 = vrot.slane %v576, %v580
      %v587 = vunpack.c.l.b16 %v571
      %v588 = vunpack.c.l.b16 %v572
      %v589 = vunpack.c.l.b16 %v573
      %v590 = vunpack.c.l.b16 %v574
      %v591 = vpack.c.b16 %v588, %v587
      %v592 = vpack.c.b16 %v590, %v589
      %595 = vmatprep.subr.bf16.mxu0 0
      %596 = vmatpush1.bf16.msra.mxu0 %v591
      %597 = vmatprep.subr.bf16.mxu0 0
      %598 = vmatpush1.bf16.msra.mxu0 %v592
      %599 = vmatprep.subr.bf16.mxu0 0
      %600 = vmatpush1.bf16.msra.mxu0 0
      %601 = vmatprep.subr.bf16.mxu0 0
      %602 = vmatpush1.bf16.msra.mxu0 0
      %603 = vmatprep.subr.bf16.mxu0 0
      %604 = vmatpush1.bf16.msra.mxu0 0
      %605 = vmatprep.subr.bf16.mxu0 0
      %606 = vmatpush1.bf16.msra.mxu0 0
      %607 = vmatprep.subr.bf16.mxu0 0
      %608 = vmatpush1.bf16.msra.mxu0 0
      %609 = vmatprep.subr.bf16.mxu0 0
      %610 = vmatpush1.bf16.msra.mxu0 0
      %611 = vmatprep.subr.bf16.mxu0 0
      %612 = vmatpush1.bf16.msra.mxu0 0
      %613 = vmatprep.subr.bf16.mxu0 0
      %614 = vmatpush1.bf16.msra.mxu0 0
      %615 = vmatprep.subr.bf16.mxu0 0
      %616 = vmatpush1.bf16.msra.mxu0 0
      %617 = vmatprep.subr.bf16.mxu0 0
      %618 = vmatpush1.bf16.msra.mxu0 0
      %619 = vmatprep.subr.bf16.mxu0 0
      %620 = vmatpush1.bf16.msra.mxu0 0
      %621 = vmatprep.subr.bf16.mxu0 0
      %622 = vmatpush1.bf16.msra.mxu0 0
      %623 = vmatprep.subr.bf16.mxu0 0
      %624 = vmatpush1.bf16.msra.mxu0 0
      %625 = vmatprep.subr.bf16.mxu0 0
      %626 = vmatpush1.bf16.msra.mxu0 0
      %627 = vmatprep.mubr.bf16.mxu0 0
      %628 = vmatmul.mubr.bf16.gmra.mrb[0].mxu0 %v450
      %v629 = vpop.f32.mrb[0].mxu0
      %v630 = vadd.f32 %v581, %v629
      %v631 = vpop.f32.mrb[0].mxu0
      %v632 = vpop.f32.mrb[0].mxu0
      %v633 = vadd.f32 %v581, %v632
      %v634 = vpop.f32.mrb[0].mxu0
      %635 = vmatprep.mubr.bf16.mxu0 0
      %636 = vmatmul.mubr.bf16.gmra.mrb[0].mxu0 %v453
      %v637 = vpop.f32.mrb[0].mxu0
      %v638 = vadd.f32 %v581, %v637
      %v639 = vpop.f32.mrb[0].mxu0
      %v640 = vpop.f32.mrb[0].mxu0
      %v641 = vadd.f32 %v581, %v640
      %v642 = vpop.f32.mrb[0].mxu0
      %643 = vmatprep.mubr.bf16.mxu0 0
      %644 = vmatmul.mubr.bf16.gmra.mrb[0].mxu0 %v456
      %v645 = vpop.f32.mrb[0].mxu0
      %v646 = vadd.f32 %v581, %v645
      %v647 = vpop.f32.mrb[0].mxu0
      %v648 = vpop.f32.mrb[0].mxu0
      %v649 = vadd.f32 %v581, %v648
      %v650 = vpop.f32.mrb[0].mxu0
      %651 = vmatprep.mubr.bf16.mxu0 0
      %652 = vmatmul.mubr.bf16.gmra.mrb[0].mxu0 %v459
      %v653 = vpop.f32.mrb[0].mxu0
      %v654 = vadd.f32 %v581, %v653
      %v655 = vpop.f32.mrb[0].mxu0
      %v656 = vpop.f32.mrb[0].mxu0
      %v657 = vadd.f32 %v581, %v656
      %v658 = vpop.f32.mrb[0].mxu0
      %659 = vmatprep.mubr.bf16.mxu0 0
      %660 = vmatmul.mubr.bf16.gmra.mrb[0].mxu0 %v462
      %v661 = vpop.f32.mrb[0].mxu0
      %v662 = vadd.f32 %v581, %v661
      %v663 = vpop.f32.mrb[0].mxu0
      %v664 = vpop.f32.mrb[0].mxu0
      %v665 = vadd.f32 %v581, %v664
      %v666 = vpop.f32.mrb[0].mxu0
      %667 = vmatprep.mubr.bf16.mxu0 0
      %668 = vmatmul.mubr.bf16.gmra.mrb[0].mxu0 %v465
      %v669 = vpop.f32.mrb[0].mxu0
      %v670 = vadd.f32 %v581, %v669
      %v671 = vpop.f32.mrb[0].mxu0
      %v672 = vpop.f32.mrb[0].mxu0
      %v673 = vadd.f32 %v581, %v672
      %v674 = vpop.f32.mrb[0].mxu0
      %675 = vmatprep.mubr.bf16.mxu0 0
      %676 = vmatmul.mubr.bf16.gmra.mrb[0].mxu0 %v468
      %v677 = vpop.f32.mrb[0].mxu0
      %v678 = vadd.f32 %v581, %v677
      %v679 = vpop.f32.mrb[0].mxu0
      %v680 = vpop.f32.mrb[0].mxu0
      %v681 = vadd.f32 %v581, %v680
      %v682 = vpop.f32.mrb[0].mxu0
      %683 = vmatprep.mubr.bf16.mxu0 0
      %684 = vmatmul.mubr.bf16.gmra.mrb[0].mxu0 %v471
      %v685 = vpop.f32.mrb[0].mxu0
      %v686 = vadd.f32 %v581, %v685
      %v687 = vpop.f32.mrb[0].mxu0
      %v688 = vpop.f32.mrb[0].mxu0
      %v689 = vadd.f32 %v581, %v688
      %v690 = vpop.f32.mrb[0].mxu0
      %691 = vdwg.mxu0
      %s692 = scalar_lea.vmem %s1, 32
      %v693 = vld [vmem:[%s692] sm:$0xf]
      %v694 = vld [vmem:[%s692 + $0x4] sm:$0xf]
      %v695 = vld [vmem:[%s692 + $0x8] sm:$0xf]
      %v696 = vld [vmem:[%s692 + $0xc] sm:$0xf]
      %s697 = scalar_lea.vmem %s4, 2
      %v698 = vld [vmem:[%s697] sm:$0x1]
      %v700 = vlaneseq
      %v701 = vshrl.u32 %v700, 7
      %v702 = vsub.s32 0, %v701
      %v703 = vrot.slane %v698, %v702
      %v709 = vunpack.c.l.b16 %v693
      %v710 = vunpack.c.l.b16 %v694
      %v711 = vunpack.c.l.b16 %v695
      %v712 = vunpack.c.l.b16 %v696
      %v713 = vpack.c.b16 %v710, %v709
      %v714 = vpack.c.b16 %v712, %v711
      %717 = vmatprep.subr.bf16.mxu0 0
      %718 = vmatpush1.bf16.msra.mxu0 %v713
      %719 = vmatprep.subr.bf16.mxu0 0
      %720 = vmatpush1.bf16.msra.mxu0 %v714
      %721 = vmatprep.subr.bf16.mxu0 0
      %722 = vmatpush1.bf16.msra.mxu0 0
      %723 = vmatprep.subr.bf16.mxu0 0
      %724 = vmatpush1.bf16.msra.mxu0 0
      %725 = vmatprep.subr.bf16.mxu0 0
      %726 = vmatpush1.bf16.msra.mxu0 0
      %727 = vmatprep.subr.bf16.mxu0 0
      %728 = vmatpush1.bf16.msra.mxu0 0
      %729 = vmatprep.subr.bf16.mxu0 0
      %730 = vmatpush1.bf16.msra.mxu0 0
      %731 = vmatprep.subr.bf16.mxu0 0
      %732 = vmatpush1.bf16.msra.mxu0 0
      %733 = vmatprep.subr.bf16.mxu0 0
      %734 = vmatpush1.bf16.msra.mxu0 0
      %735 = vmatprep.subr.bf16.mxu0 0
      %736 = vmatpush1.bf16.msra.mxu0 0
      %737 = vmatprep.subr.bf16.mxu0 0
      %738 = vmatpush1.bf16.msra.mxu0 0
      %739 = vmatprep.subr.bf16.mxu0 0
      %740 = vmatpush1.bf16.msra.mxu0 0
      %741 = vmatprep.subr.bf16.mxu0 0
      %742 = vmatpush1.bf16.msra.mxu0 0
      %743 = vmatprep.subr.bf16.mxu0 0
      %744 = vmatpush1.bf16.msra.mxu0 0
      %745 = vmatprep.subr.bf16.mxu0 0
      %746 = vmatpush1.bf16.msra.mxu0 0
      %747 = vmatprep.subr.bf16.mxu0 0
      %748 = vmatpush1.bf16.msra.mxu0 0
      %749 = vmatprep.mubr.bf16.mxu0 0
      %750 = vmatmul.mubr.bf16.gmra.mrb[0].mxu0 %v450
      %v751 = vpop.f32.mrb[0].mxu0
      %v752 = vadd.f32 %v703, %v751
      %v753 = vpop.f32.mrb[0].mxu0
      %v754 = vpop.f32.mrb[0].mxu0
      %v755 = vadd.f32 %v703, %v754
      %v756 = vpop.f32.mrb[0].mxu0
      %757 = vmatprep.mubr.bf16.mxu0 0
      %758 = vmatmul.mubr.bf16.gmra.mrb[0].mxu0 %v453
      %v759 = vpop.f32.mrb[0].mxu0
      %v760 = vadd.f32 %v703, %v759
      %v761 = vpop.f32.mrb[0].mxu0
      %v762 = vpop.f32.mrb[0].mxu0
      %v763 = vadd.f32 %v703, %v762
      %v764 = vpop.f32.mrb[0].mxu0
      %765 = vmatprep.mubr.bf16.mxu0 0
      %766 = vmatmul.mubr.bf16.gmra.mrb[0].mxu0 %v456
      %v767 = vpop.f32.mrb[0].mxu0
      %v768 = vadd.f32 %v703, %v767
      %v769 = vpop.f32.mrb[0].mxu0
      %v770 = vpop.f32.mrb[0].mxu0
      %v771 = vadd.f32 %v703, %v770
      %v772 = vpop.f32.mrb[0].mxu0
      %773 = vmatprep.mubr.bf16.mxu0 0
      %774 = vmatmul.mubr.bf16.gmra.mrb[0].mxu0 %v459
      %v775 = vpop.f32.mrb[0].mxu0
      %v776 = vadd.f32 %v703, %v775
      %v777 = vpop.f32.mrb[0].mxu0
      %v778 = vpop.f32.mrb[0].mxu0
      %v779 = vadd.f32 %v703, %v778
      %v780 = vpop.f32.mrb[0].mxu0
      %781 = vmatprep.mubr.bf16.mxu0 0
      %782 = vmatmul.mubr.bf16.gmra.mrb[0].mxu0 %v462
      %v783 = vpop.f32.mrb[0].mxu0
      %v784 = vadd.f32 %v703, %v783
      %v785 = vpop.f32.mrb[0].mxu0
      %v786 = vpop.f32.mrb[0].mxu0
      %v787 = vadd.f32 %v703, %v786
      %v788 = vpop.f32.mrb[0].mxu0
      %789 = vmatprep.mubr.bf16.mxu0 0
      %790 = vmatmul.mubr.bf16.gmra.mrb[0].mxu0 %v465
      %v791 = vpop.f32.mrb[0].mxu0
      %v792 = vadd.f32 %v703, %v791
      %v793 = vpop.f32.mrb[0].mxu0
      %v794 = vpop.f32.mrb[0].mxu0
      %v795 = vadd.f32 %v703, %v794
      %v796 = vpop.f32.mrb[0].mxu0
      %797 = vmatprep.mubr.bf16.mxu0 0
      %798 = vmatmul.mubr.bf16.gmra.mrb[0].mxu0 %v468
      %v799 = vpop.f32.mrb[0].mxu0
      %v800 = vadd.f32 %v703, %v799
      %v801 = vpop.f32.mrb[0].mxu0
      %v802 = vpop.f32.mrb[0].mxu0
      %v803 = vadd.f32 %v703, %v802
      %v804 = vpop.f32.mrb[0].mxu0
      %805 = vmatprep.mubr.bf16.mxu0 0
      %806 = vmatmul.mubr.bf16.gmra.mrb[0].mxu0 %v471
      %v807 = vpop.f32.mrb[0].mxu0
      %v808 = vadd.f32 %v703, %v807
      %v809 = vpop.f32.mrb[0].mxu0
      %v810 = vpop.f32.mrb[0].mxu0
      %v811 = vadd.f32 %v703, %v810
      %v812 = vpop.f32.mrb[0].mxu0
      %813 = vdwg.mxu0
      %s814 = scalar_lea.vmem %s1, 48
      %v815 = vld [vmem:[%s814] sm:$0xf]
      %v816 = vld [vmem:[%s814 + $0x4] sm:$0xf]
      %v817 = vld [vmem:[%s814 + $0x8] sm:$0xf]
      %v818 = vld [vmem:[%s814 + $0xc] sm:$0xf]
      %s819 = scalar_lea.vmem %s4, 3
      %v820 = vld [vmem:[%s819] sm:$0x1]
      %v822 = vlaneseq
      %v823 = vshrl.u32 %v822, 7
      %v824 = vsub.s32 0, %v823
      %v825 = vrot.slane %v820, %v824
      %v831 = vunpack.c.l.b16 %v815
      %v832 = vunpack.c.l.b16 %v816
      %v833 = vunpack.c.l.b16 %v817
      %v834 = vunpack.c.l.b16 %v818
      %v835 = vpack.c.b16 %v832, %v831
      %v836 = vpack.c.b16 %v834, %v833
      %839 = vmatprep.subr.bf16.mxu0 0
      %840 = vmatpush1.bf16.msra.mxu0 %v835
      %841 = vmatprep.subr.bf16.mxu0 0
      %842 = vmatpush1.bf16.msra.mxu0 %v836
      %843 = vmatprep.subr.bf16.mxu0 0
      %844 = vmatpush1.bf16.msra.mxu0 0
      %845 = vmatprep.subr.bf16.mxu0 0
      %846 = vmatpush1.bf16.msra.mxu0 0
      %847 = vmatprep.subr.bf16.mxu0 0
      %848 = vmatpush1.bf16.msra.mxu0 0
      %849 = vmatprep.subr.bf16.mxu0 0
      %850 = vmatpush1.bf16.msra.mxu0 0
      %851 = vmatprep.subr.bf16.mxu0 0
      %852 = vmatpush1.bf16.msra.mxu0 0
      %853 = vmatprep.subr.bf16.mxu0 0
      %854 = vmatpush1.bf16.msra.mxu0 0
      %855 = vmatprep.subr.bf16.mxu0 0
      %856 = vmatpush1.bf16.msra.mxu0 0
      %857 = vmatprep.subr.bf16.mxu0 0
      %858 = vmatpush1.bf16.msra.mxu0 0
      %859 = vmatprep.subr.bf16.mxu0 0
      %860 = vmatpush1.bf16.msra.mxu0 0
      %861 = vmatprep.subr.bf16.mxu0 0
      %862 = vmatpush1.bf16.msra.mxu0 0
      %863 = vmatprep.subr.bf16.mxu0 0
      %864 = vmatpush1.bf16.msra.mxu0 0
      %865 = vmatprep.subr.bf16.mxu0 0
      %866 = vmatpush1.bf16.msra.mxu0 0
      %867 = vmatprep.subr.bf16.mxu0 0
      %868 = vmatpush1.bf16.msra.mxu0 0
      %869 = vmatprep.subr.bf16.mxu0 0
      %870 = vmatpush1.bf16.msra.mxu0 0
      %871 = vmatprep.mubr.bf16.mxu0 0
      %872 = vmatmul.mubr.bf16.gmra.mrb[0].mxu0 %v450
      %v873 = vpop.f32.mrb[0].mxu0
      %v874 = vadd.f32 %v825, %v873
      %v875 = vpop.f32.mrb[0].mxu0
      %v876 = vpop.f32.mrb[0].mxu0
      %v877 = vadd.f32 %v825, %v876
      %v878 = vpop.f32.mrb[0].mxu0
      %879 = vmatprep.mubr.bf16.mxu0 0
      %880 = vmatmul.mubr.bf16.gmra.mrb[0].mxu0 %v453
      %v881 = vpop.f32.mrb[0].mxu0
      %v882 = vadd.f32 %v825, %v881
      %v883 = vpop.f32.mrb[0].mxu0
      %v884 = vpop.f32.mrb[0].mxu0
      %v885 = vadd.f32 %v825, %v884
      %v886 = vpop.f32.mrb[0].mxu0
      %887 = vmatprep.mubr.bf16.mxu0 0
      %888 = vmatmul.mubr.bf16.gmra.mrb[0].mxu0 %v456
      %v889 = vpop.f32.mrb[0].mxu0
      %v890 = vadd.f32 %v825, %v889
      %v891 = vpop.f32.mrb[0].mxu0
      %v892 = vpop.f32.mrb[0].mxu0
      %v893 = vadd.f32 %v825, %v892
      %v894 = vpop.f32.mrb[0].mxu0
      %895 = vmatprep.mubr.bf16.mxu0 0
      %896 = vmatmul.mubr.bf16.gmra.mrb[0].mxu0 %v459
      %v897 = vpop.f32.mrb[0].mxu0
      %v898 = vadd.f32 %v825, %v897
      %v899 = vpop.f32.mrb[0].mxu0
      %v900 = vpop.f32.mrb[0].mxu0
      %v901 = vadd.f32 %v825, %v900
      %v902 = vpop.f32.mrb[0].mxu0
      %903 = vmatprep.mubr.bf16.mxu0 0
      %904 = vmatmul.mubr.bf16.gmra.mrb[0].mxu0 %v462
      %v905 = vpop.f32.mrb[0].mxu0
      %v906 = vadd.f32 %v825, %v905
      %v907 = vpop.f32.mrb[0].mxu0
      %v908 = vpop.f32.mrb[0].mxu0
      %v909 = vadd.f32 %v825, %v908
      %v910 = vpop.f32.mrb[0].mxu0
      %911 = vmatprep.mubr.bf16.mxu0 0
      %912 = vmatmul.mubr.bf16.gmra.mrb[0].mxu0 %v465
      %v913 = vpop.f32.mrb[0].mxu0
      %v914 = vadd.f32 %v825, %v913
      %v915 = vpop.f32.mrb[0].mxu0
      %v916 = vpop.f32.mrb[0].mxu0
      %v917 = vadd.f32 %v825, %v916
      %v918 = vpop.f32.mrb[0].mxu0
      %919 = vmatprep.mubr.bf16.mxu0 0
      %920 = vmatmul.mubr.bf16.gmra.mrb[0].mxu0 %v468
      %v921 = vpop.f32.mrb[0].mxu0
      %v922 = vadd.f32 %v825, %v921
      %v923 = vpop.f32.mrb[0].mxu0
      %v924 = vpop.f32.mrb[0].mxu0
      %v925 = vadd.f32 %v825, %v924
      %v926 = vpop.f32.mrb[0].mxu0
      %927 = vmatprep.mubr.bf16.mxu0 0
      %928 = vmatmul.mubr.bf16.gmra.mrb[0].mxu0 %v471
      %v929 = vpop.f32.mrb[0].mxu0
      %v930 = vadd.f32 %v825, %v929
      %v931 = vpop.f32.mrb[0].mxu0
      %v932 = vpop.f32.mrb[0].mxu0
      %v933 = vadd.f32 %v825, %v932
      %v934 = vpop.f32.mrb[0].mxu0
      %935 = vdwg.mxu0
      %v936 = vld [vmem:[%s2] sm:$0xf]
      %v937 = vld [vmem:[%s2 + $0x4] sm:$0xf]
      %v938 = vld [vmem:[%s2 + $0x8] sm:$0xf]
      %v939 = vld [vmem:[%s2 + $0xc] sm:$0xf]
      %v940 = vld [vmem:[%s5] sm:$0x1]
      %v942 = vlaneseq
      %v943 = vshrl.u32 %v942, 7
      %v944 = vsub.s32 0, %v943
      %v945 = vrot.slane %v940, %v944
      %v951 = vunpack.c.l.b16 %v936
      %v952 = vunpack.c.l.b16 %v937
      %v953 = vunpack.c.l.b16 %v938
      %v954 = vunpack.c.l.b16 %v939
      %v955 = vpack.c.b16 %v952, %v951
      %v956 = vpack.c.b16 %v954, %v953
      %959 = vmatprep.subr.bf16.mxu0 0
      %960 = vmatpush1.bf16.msra.mxu0 %v955
      %961 = vmatprep.subr.bf16.mxu0 0
      %962 = vmatpush1.bf16.msra.mxu0 %v956
      %963 = vmatprep.subr.bf16.mxu0 0
      %964 = vmatpush1.bf16.msra.mxu0 0
      %965 = vmatprep.subr.bf16.mxu0 0
      %966 = vmatpush1.bf16.msra.mxu0 0
      %967 = vmatprep.subr.bf16.mxu0 0
      %968 = vmatpush1.bf16.msra.mxu0 0
      %969 = vmatprep.subr.bf16.mxu0 0
      %970 = vmatpush1.bf16.msra.mxu0 0
      %971 = vmatprep.subr.bf16.mxu0 0
      %972 = vmatpush1.bf16.msra.mxu0 0
      %973 = vmatprep.subr.bf16.mxu0 0
      %974 = vmatpush1.bf16.msra.mxu0 0
      %975 = vmatprep.subr.bf16.mxu0 0
      %976 = vmatpush1.bf16.msra.mxu0 0
      %977 = vmatprep.subr.bf16.mxu0 0
      %978 = vmatpush1.bf16.msra.mxu0 0
      %979 = vmatprep.subr.bf16.mxu0 0
      %980 = vmatpush1.bf16.msra.mxu0 0
      %981 = vmatprep.subr.bf16.mxu0 0
      %982 = vmatpush1.bf16.msra.mxu0 0
      %983 = vmatprep.subr.bf16.mxu0 0
      %984 = vmatpush1.bf16.msra.mxu0 0
      %985 = vmatprep.subr.bf16.mxu0 0
      %986 = vmatpush1.bf16.msra.mxu0 0
      %987 = vmatprep.subr.bf16.mxu0 0
      %988 = vmatpush1.bf16.msra.mxu0 0
      %989 = vmatprep.subr.bf16.mxu0 0
      %990 = vmatpush1.bf16.msra.mxu0 0
      %991 = vmatprep.mubr.bf16.mxu0 0
      %992 = vmatmul.mubr.bf16.gmra.mrb[0].mxu0 %v450
      %v993 = vpop.f32.mrb[0].mxu0
      %v994 = vadd.f32 %v945, %v993
      %v995 = vpop.f32.mrb[0].mxu0
      %v996 = vpop.f32.mrb[0].mxu0
      %v997 = vadd.f32 %v945, %v996
      %v998 = vpop.f32.mrb[0].mxu0
      %999 = vmatprep.mubr.bf16.mxu0 0
      %1000 = vmatmul.mubr.bf16.gmra.mrb[0].mxu0 %v453
      %v1001 = vpop.f32.mrb[0].mxu0
      %v1002 = vadd.f32 %v945, %v1001
      %v1003 = vpop.f32.mrb[0].mxu0
      %v1004 = vpop.f32.mrb[0].mxu0
      %v1005 = vadd.f32 %v945, %v1004
      %v1006 = vpop.f32.mrb[0].mxu0
      %1007 = vmatprep.mubr.bf16.mxu0 0
      %1008 = vmatmul.mubr.bf16.gmra.mrb[0].mxu0 %v456
      %v1009 = vpop.f32.mrb[0].mxu0
      %v1010 = vadd.f32 %v945, %v1009
      %v1011 = vpop.f32.mrb[0].mxu0
      %v1012 = vpop.f32.mrb[0].mxu0
      %v1013 = vadd.f32 %v945, %v1012
      %v1014 = vpop.f32.mrb[0].mxu0
      %1015 = vmatprep.mubr.bf16.mxu0 0
      %1016 = vmatmul.mubr.bf16.gmra.mrb[0].mxu0 %v459
      %v1017 = vpop.f32.mrb[0].mxu0
      %v1018 = vadd.f32 %v945, %v1017
      %v1019 = vpop.f32.mrb[0].mxu0
      %v1020 = vpop.f32.mrb[0].mxu0
      %v1021 = vadd.f32 %v945, %v1020
      %v1022 = vpop.f32.mrb[0].mxu0
      %1023 = vmatprep.mubr.bf16.mxu0 0
      %1024 = vmatmul.mubr.bf16.gmra.mrb[0].mxu0 %v462
      %v1025 = vpop.f32.mrb[0].mxu0
      %v1026 = vadd.f32 %v945, %v1025
      %v1027 = vpop.f32.mrb[0].mxu0
      %v1028 = vpop.f32.mrb[0].mxu0
      %v1029 = vadd.f32 %v945, %v1028
      %v1030 = vpop.f32.mrb[0].mxu0
      %1031 = vmatprep.mubr.bf16.mxu0 0
      %1032 = vmatmul.mubr.bf16.gmra.mrb[0].mxu0 %v465
      %v1033 = vpop.f32.mrb[0].mxu0
      %v1034 = vadd.f32 %v945, %v1033
      %v1035 = vpop.f32.mrb[0].mxu0
      %v1036 = vpop.f32.mrb[0].mxu0
      %v1037 = vadd.f32 %v945, %v1036
      %v1038 = vpop.f32.mrb[0].mxu0
      %1039 = vmatprep.mubr.bf16.mxu0 0
      %1040 = vmatmul.mubr.bf16.gmra.mrb[0].mxu0 %v468
      %v1041 = vpop.f32.mrb[0].mxu0
      %v1042 = vadd.f32 %v945, %v1041
      %v1043 = vpop.f32.mrb[0].mxu0
      %v1044 = vpop.f32.mrb[0].mxu0
      %v1045 = vadd.f32 %v945, %v1044
      %v1046 = vpop.f32.mrb[0].mxu0
      %1047 = vmatprep.mubr.bf16.mxu0 0
      %1048 = vmatmul.mubr.bf16.gmra.mrb[0].mxu0 %v471
      %v1049 = vpop.f32.mrb[0].mxu0
      %v1050 = vadd.f32 %v945, %v1049
      %v1051 = vpop.f32.mrb[0].mxu0
      %v1052 = vpop.f32.mrb[0].mxu0
      %v1053 = vadd.f32 %v945, %v1052
      %v1054 = vpop.f32.mrb[0].mxu0
      %1055 = vdwg.mxu0
      %s1056 = scalar_lea.vmem %s2, 16
      %v1057 = vld [vmem:[%s1056] sm:$0xf]
      %v1058 = vld [vmem:[%s1056 + $0x4] sm:$0xf]
      %v1059 = vld [vmem:[%s1056 + $0x8] sm:$0xf]
      %v1060 = vld [vmem:[%s1056 + $0xc] sm:$0xf]
      %s1061 = scalar_lea.vmem %s5, 1
      %v1062 = vld [vmem:[%s1061] sm:$0x1]
      %v1064 = vlaneseq
      %v1065 = vshrl.u32 %v1064, 7
      %v1066 = vsub.s32 0, %v1065
      %v1067 = vrot.slane %v1062, %v1066
      %v1073 = vunpack.c.l.b16 %v1057
      %v1074 = vunpack.c.l.b16 %v1058
      %v1075 = vunpack.c.l.b16 %v1059
      %v1076 = vunpack.c.l.b16 %v1060
      %v1077 = vpack.c.b16 %v1074, %v1073
      %v1078 = vpack.c.b16 %v1076, %v1075
      %1081 = vmatprep.subr.bf16.mxu0 0
      %1082 = vmatpush1.bf16.msra.mxu0 %v1077
      %1083 = vmatprep.subr.bf16.mxu0 0
      %1084 = vmatpush1.bf16.msra.mxu0 %v1078
      %1085 = vmatprep.subr.bf16.mxu0 0
      %1086 = vmatpush1.bf16.msra.mxu0 0
      %1087 = vmatprep.subr.bf16.mxu0 0
      %1088 = vmatpush1.bf16.msra.mxu0 0
      %1089 = vmatprep.subr.bf16.mxu0 0
      %1090 = vmatpush1.bf16.msra.mxu0 0
      %1091 = vmatprep.subr.bf16.mxu0 0
      %1092 = vmatpush1.bf16.msra.mxu0 0
      %1093 = vmatprep.subr.bf16.mxu0 0
      %1094 = vmatpush1.bf16.msra.mxu0 0
      %1095 = vmatprep.subr.bf16.mxu0 0
      %1096 = vmatpush1.bf16.msra.mxu0 0
      %1097 = vmatprep.subr.bf16.mxu0 0
      %1098 = vmatpush1.bf16.msra.mxu0 0
      %1099 = vmatprep.subr.bf16.mxu0 0
      %1100 = vmatpush1.bf16.msra.mxu0 0
      %1101 = vmatprep.subr.bf16.mxu0 0
      %1102 = vmatpush1.bf16.msra.mxu0 0
      %1103 = vmatprep.subr.bf16.mxu0 0
      %1104 = vmatpush1.bf16.msra.mxu0 0
      %1105 = vmatprep.subr.bf16.mxu0 0
      %1106 = vmatpush1.bf16.msra.mxu0 0
      %1107 = vmatprep.subr.bf16.mxu0 0
      %1108 = vmatpush1.bf16.msra.mxu0 0
      %1109 = vmatprep.subr.bf16.mxu0 0
      %1110 = vmatpush1.bf16.msra.mxu0 0
      %1111 = vmatprep.subr.bf16.mxu0 0
      %1112 = vmatpush1.bf16.msra.mxu0 0
      %1113 = vmatprep.mubr.bf16.mxu0 0
      %1114 = vmatmul.mubr.bf16.gmra.mrb[0].mxu0 %v450
      %v1115 = vpop.f32.mrb[0].mxu0
      %v1116 = vadd.f32 %v1067, %v1115
      %v1117 = vpop.f32.mrb[0].mxu0
      %v1118 = vpop.f32.mrb[0].mxu0
      %v1119 = vadd.f32 %v1067, %v1118
      %v1120 = vpop.f32.mrb[0].mxu0
      %1121 = vmatprep.mubr.bf16.mxu0 0
      %1122 = vmatmul.mubr.bf16.gmra.mrb[0].mxu0 %v453
      %v1123 = vpop.f32.mrb[0].mxu0
      %v1124 = vadd.f32 %v1067, %v1123
      %v1125 = vpop.f32.mrb[0].mxu0
      %v1126 = vpop.f32.mrb[0].mxu0
      %v1127 = vadd.f32 %v1067, %v1126
      %v1128 = vpop.f32.mrb[0].mxu0
      %1129 = vmatprep.mubr.bf16.mxu0 0
      %1130 = vmatmul.mubr.bf16.gmra.mrb[0].mxu0 %v456
      %v1131 = vpop.f32.mrb[0].mxu0
      %v1132 = vadd.f32 %v1067, %v1131
      %v1133 = vpop.f32.mrb[0].mxu0
      %v1134 = vpop.f32.mrb[0].mxu0
      %v1135 = vadd.f32 %v1067, %v1134
      %v1136 = vpop.f32.mrb[0].mxu0
      %1137 = vmatprep.mubr.bf16.mxu0 0
      %1138 = vmatmul.mubr.bf16.gmra.mrb[0].mxu0 %v459
      %v1139 = vpop.f32.mrb[0].mxu0
      %v1140 = vadd.f32 %v1067, %v1139
      %v1141 = vpop.f32.mrb[0].mxu0
      %v1142 = vpop.f32.mrb[0].mxu0
      %v1143 = vadd.f32 %v1067, %v1142
      %v1144 = vpop.f32.mrb[0].mxu0
      %1145 = vmatprep.mubr.bf16.mxu0 0
      %1146 = vmatmul.mubr.bf16.gmra.mrb[0].mxu0 %v462
      %v1147 = vpop.f32.mrb[0].mxu0
      %v1148 = vadd.f32 %v1067, %v1147
      %v1149 = vpop.f32.mrb[0].mxu0
      %v1150 = vpop.f32.mrb[0].mxu0
      %v1151 = vadd.f32 %v1067, %v1150
      %v1152 = vpop.f32.mrb[0].mxu0
      %1153 = vmatprep.mubr.bf16.mxu0 0
      %1154 = vmatmul.mubr.bf16.gmra.mrb[0].mxu0 %v465
      %v1155 = vpop.f32.mrb[0].mxu0
      %v1156 = vadd.f32 %v1067, %v1155
      %v1157 = vpop.f32.mrb[0].mxu0
      %v1158 = vpop.f32.mrb[0].mxu0
      %v1159 = vadd.f32 %v1067, %v1158
      %v1160 = vpop.f32.mrb[0].mxu0
      %1161 = vmatprep.mubr.bf16.mxu0 0
      %1162 = vmatmul.mubr.bf16.gmra.mrb[0].mxu0 %v468
      %v1163 = vpop.f32.mrb[0].mxu0
      %v1164 = vadd.f32 %v1067, %v1163
      %v1165 = vpop.f32.mrb[0].mxu0
      %v1166 = vpop.f32.mrb[0].mxu0
      %v1167 = vadd.f32 %v1067, %v1166
      %v1168 = vpop.f32.mrb[0].mxu0
      %1169 = vmatprep.mubr.bf16.mxu0 0
      %1170 = vmatmul.mubr.bf16.gmra.mrb[0].mxu0 %v471
      %v1171 = vpop.f32.mrb[0].mxu0
      %v1172 = vadd.f32 %v1067, %v1171
      %v1173 = vpop.f32.mrb[0].mxu0
      %v1174 = vpop.f32.mrb[0].mxu0
      %v1175 = vadd.f32 %v1067, %v1174
      %v1176 = vpop.f32.mrb[0].mxu0
      %1177 = vdwg.mxu0
      %s1178 = scalar_lea.vmem %s2, 32
      %v1179 = vld [vmem:[%s1178] sm:$0xf]
      %v1180 = vld [vmem:[%s1178 + $0x4] sm:$0xf]
      %v1181 = vld [vmem:[%s1178 + $0x8] sm:$0xf]
      %v1182 = vld [vmem:[%s1178 + $0xc] sm:$0xf]
      %s1183 = scalar_lea.vmem %s5, 2
      %v1184 = vld [vmem:[%s1183] sm:$0x1]
      %v1186 = vlaneseq
      %v1187 = vshrl.u32 %v1186, 7
      %v1188 = vsub.s32 0, %v1187
      %v1189 = vrot.slane %v1184, %v1188
      %v1195 = vunpack.c.l.b16 %v1179
      %v1196 = vunpack.c.l.b16 %v1180
      %v1197 = vunpack.c.l.b16 %v1181
      %v1198 = vunpack.c.l.b16 %v1182
      %v1199 = vpack.c.b16 %v1196, %v1195
      %v1200 = vpack.c.b16 %v1198, %v1197
      %1203 = vmatprep.subr.bf16.mxu0 0
      %1204 = vmatpush1.bf16.msra.mxu0 %v1199
      %1205 = vmatprep.subr.bf16.mxu0 0
      %1206 = vmatpush1.bf16.msra.mxu0 %v1200
      %1207 = vmatprep.subr.bf16.mxu0 0
      %1208 = vmatpush1.bf16.msra.mxu0 0
      %1209 = vmatprep.subr.bf16.mxu0 0
      %1210 = vmatpush1.bf16.msra.mxu0 0
      %1211 = vmatprep.subr.bf16.mxu0 0
      %1212 = vmatpush1.bf16.msra.mxu0 0
      %1213 = vmatprep.subr.bf16.mxu0 0
      %1214 = vmatpush1.bf16.msra.mxu0 0
      %1215 = vmatprep.subr.bf16.mxu0 0
      %1216 = vmatpush1.bf16.msra.mxu0 0
      %1217 = vmatprep.subr.bf16.mxu0 0
      %1218 = vmatpush1.bf16.msra.mxu0 0
      %1219 = vmatprep.subr.bf16.mxu0 0
      %1220 = vmatpush1.bf16.msra.mxu0 0
      %1221 = vmatprep.subr.bf16.mxu0 0
      %1222 = vmatpush1.bf16.msra.mxu0 0
      %1223 = vmatprep.subr.bf16.mxu0 0
      %1224 = vmatpush1.bf16.msra.mxu0 0
      %1225 = vmatprep.subr.bf16.mxu0 0
      %1226 = vmatpush1.bf16.msra.mxu0 0
      %1227 = vmatprep.subr.bf16.mxu0 0
      %1228 = vmatpush1.bf16.msra.mxu0 0
      %1229 = vmatprep.subr.bf16.mxu0 0
      %1230 = vmatpush1.bf16.msra.mxu0 0
      %1231 = vmatprep.subr.bf16.mxu0 0
      %1232 = vmatpush1.bf16.msra.mxu0 0
      %1233 = vmatprep.subr.bf16.mxu0 0
      %1234 = vmatpush1.bf16.msra.mxu0 0
      %1235 = vmatprep.mubr.bf16.mxu0 0
      %1236 = vmatmul.mubr.bf16.gmra.mrb[0].mxu0 %v450
      %v1237 = vpop.f32.mrb[0].mxu0
      %v1238 = vadd.f32 %v1189, %v1237
      %v1239 = vpop.f32.mrb[0].mxu0
      %v1240 = vpop.f32.mrb[0].mxu0
      %v1241 = vadd.f32 %v1189, %v1240
      %v1242 = vpop.f32.mrb[0].mxu0
      %1243 = vmatprep.mubr.bf16.mxu0 0
      %1244 = vmatmul.mubr.bf16.gmra.mrb[0].mxu0 %v453
      %v1245 = vpop.f32.mrb[0].mxu0
      %v1246 = vadd.f32 %v1189, %v1245
      %v1247 = vpop.f32.mrb[0].mxu0
      %v1248 = vpop.f32.mrb[0].mxu0
      %v1249 = vadd.f32 %v1189, %v1248
      %v1250 = vpop.f32.mrb[0].mxu0
      %1251 = vmatprep.mubr.bf16.mxu0 0
      %1252 = vmatmul.mubr.bf16.gmra.mrb[0].mxu0 %v456
      %v1253 = vpop.f32.mrb[0].mxu0
      %v1254 = vadd.f32 %v1189, %v1253
      %v1255 = vpop.f32.mrb[0].mxu0
      %v1256 = vpop.f32.mrb[0].mxu0
      %v1257 = vadd.f32 %v1189, %v1256
      %v1258 = vpop.f32.mrb[0].mxu0
      %1259 = vmatprep.mubr.bf16.mxu0 0
      %1260 = vmatmul.mubr.bf16.gmra.mrb[0].mxu0 %v459
      %v1261 = vpop.f32.mrb[0].mxu0
      %v1262 = vadd.f32 %v1189, %v1261
      %v1263 = vpop.f32.mrb[0].mxu0
      %v1264 = vpop.f32.mrb[0].mxu0
      %v1265 = vadd.f32 %v1189, %v1264
      %v1266 = vpop.f32.mrb[0].mxu0
      %1267 = vmatprep.mubr.bf16.mxu0 0
      %1268 = vmatmul.mubr.bf16.gmra.mrb[0].mxu0 %v462
      %v1269 = vpop.f32.mrb[0].mxu0
      %v1270 = vadd.f32 %v1189, %v1269
      %v1271 = vpop.f32.mrb[0].mxu0
      %v1272 = vpop.f32.mrb[0].mxu0
      %v1273 = vadd.f32 %v1189, %v1272
      %v1274 = vpop.f32.mrb[0].mxu0
      %1275 = vmatprep.mubr.bf16.mxu0 0
      %1276 = vmatmul.mubr.bf16.gmra.mrb[0].mxu0 %v465
      %v1277 = vpop.f32.mrb[0].mxu0
      %v1278 = vadd.f32 %v1189, %v1277
      %v1279 = vpop.f32.mrb[0].mxu0
      %v1280 = vpop.f32.mrb[0].mxu0
      %v1281 = vadd.f32 %v1189, %v1280
      %v1282 = vpop.f32.mrb[0].mxu0
      %1283 = vmatprep.mubr.bf16.mxu0 0
      %1284 = vmatmul.mubr.bf16.gmra.mrb[0].mxu0 %v468
      %v1285 = vpop.f32.mrb[0].mxu0
      %v1286 = vadd.f32 %v1189, %v1285
      %v1287 = vpop.f32.mrb[0].mxu0
      %v1288 = vpop.f32.mrb[0].mxu0
      %v1289 = vadd.f32 %v1189, %v1288
      %v1290 = vpop.f32.mrb[0].mxu0
      %1291 = vmatprep.mubr.bf16.mxu0 0
      %1292 = vmatmul.mubr.bf16.gmra.mrb[0].mxu0 %v471
      %v1293 = vpop.f32.mrb[0].mxu0
      %v1294 = vadd.f32 %v1189, %v1293
      %v1295 = vpop.f32.mrb[0].mxu0
      %v1296 = vpop.f32.mrb[0].mxu0
      %v1297 = vadd.f32 %v1189, %v1296
      %v1298 = vpop.f32.mrb[0].mxu0
      %1299 = vdwg.mxu0
      %s1300 = scalar_lea.vmem %s2, 48
      %v1301 = vld [vmem:[%s1300] sm:$0xf]
      %v1302 = vld [vmem:[%s1300 + $0x4] sm:$0xf]
      %v1303 = vld [vmem:[%s1300 + $0x8] sm:$0xf]
      %v1304 = vld [vmem:[%s1300 + $0xc] sm:$0xf]
      %s1305 = scalar_lea.vmem %s5, 3
      %v1306 = vld [vmem:[%s1305] sm:$0x1]
      %v1308 = vlaneseq
      %v1309 = vshrl.u32 %v1308, 7
      %v1310 = vsub.s32 0, %v1309
      %v1311 = vrot.slane %v1306, %v1310
      %v1317 = vunpack.c.l.b16 %v1301
      %v1318 = vunpack.c.l.b16 %v1302
      %v1319 = vunpack.c.l.b16 %v1303
      %v1320 = vunpack.c.l.b16 %v1304
      %v1321 = vpack.c.b16 %v1318, %v1317
      %v1322 = vpack.c.b16 %v1320, %v1319
      %1325 = vmatprep.subr.bf16.mxu0 0
      %1326 = vmatpush1.bf16.msra.mxu0 %v1321
      %1327 = vmatprep.subr.bf16.mxu0 0
      %1328 = vmatpush1.bf16.msra.mxu0 %v1322
      %1329 = vmatprep.subr.bf16.mxu0 0
      %1330 = vmatpush1.bf16.msra.mxu0 0
      %1331 = vmatprep.subr.bf16.mxu0 0
      %1332 = vmatpush1.bf16.msra.mxu0 0
      %1333 = vmatprep.subr.bf16.mxu0 0
      %1334 = vmatpush1.bf16.msra.mxu0 0
      %1335 = vmatprep.subr.bf16.mxu0 0
      %1336 = vmatpush1.bf16.msra.mxu0 0
      %1337 = vmatprep.subr.bf16.mxu0 0
      %1338 = vmatpush1.bf16.msra.mxu0 0
      %1339 = vmatprep.subr.bf16.mxu0 0
      %1340 = vmatpush1.bf16.msra.mxu0 0
      %1341 = vmatprep.subr.bf16.mxu0 0
      %1342 = vmatpush1.bf16.msra.mxu0 0
      %1343 = vmatprep.subr.bf16.mxu0 0
      %1344 = vmatpush1.bf16.msra.mxu0 0
      %1345 = vmatprep.subr.bf16.mxu0 0
      %1346 = vmatpush1.bf16.msra.mxu0 0
      %1347 = vmatprep.subr.bf16.mxu0 0
      %1348 = vmatpush1.bf16.msra.mxu0 0
      %1349 = vmatprep.subr.bf16.mxu0 0
      %1350 = vmatpush1.bf16.msra.mxu0 0
      %1351 = vmatprep.subr.bf16.mxu0 0
      %1352 = vmatpush1.bf16.msra.mxu0 0
      %1353 = vmatprep.subr.bf16.mxu0 0
      %1354 = vmatpush1.bf16.msra.mxu0 0
      %1355 = vmatprep.subr.bf16.mxu0 0
      %1356 = vmatpush1.bf16.msra.mxu0 0
      %1357 = vmatprep.mubr.bf16.mxu0 0
      %1358 = vmatmul.mubr.bf16.gmra.mrb[0].mxu0 %v450
      %v1359 = vpop.f32.mrb[0].mxu0
      %v1360 = vadd.f32 %v1311, %v1359
      %v1361 = vpop.f32.mrb[0].mxu0
      %v1362 = vpop.f32.mrb[0].mxu0
      %v1363 = vadd.f32 %v1311, %v1362
      %v1364 = vpop.f32.mrb[0].mxu0
      %1365 = vmatprep.mubr.bf16.mxu0 0
      %1366 = vmatmul.mubr.bf16.gmra.mrb[0].mxu0 %v453
      %v1367 = vpop.f32.mrb[0].mxu0
      %v1368 = vadd.f32 %v1311, %v1367
      %v1369 = vpop.f32.mrb[0].mxu0
      %v1370 = vpop.f32.mrb[0].mxu0
      %v1371 = vadd.f32 %v1311, %v1370
      %v1372 = vpop.f32.mrb[0].mxu0
      %1373 = vmatprep.mubr.bf16.mxu0 0
      %1374 = vmatmul.mubr.bf16.gmra.mrb[0].mxu0 %v456
      %v1375 = vpop.f32.mrb[0].mxu0
      %v1376 = vadd.f32 %v1311, %v1375
      %v1377 = vpop.f32.mrb[0].mxu0
      %v1378 = vpop.f32.mrb[0].mxu0
      %v1379 = vadd.f32 %v1311, %v1378
      %v1380 = vpop.f32.mrb[0].mxu0
      %1381 = vmatprep.mubr.bf16.mxu0 0
      %1382 = vmatmul.mubr.bf16.gmra.mrb[0].mxu0 %v459
      %v1383 = vpop.f32.mrb[0].mxu0
      %v1384 = vadd.f32 %v1311, %v1383
      %v1385 = vpop.f32.mrb[0].mxu0
      %v1386 = vpop.f32.mrb[0].mxu0
      %v1387 = vadd.f32 %v1311, %v1386
      %v1388 = vpop.f32.mrb[0].mxu0
      %1389 = vmatprep.mubr.bf16.mxu0 0
      %1390 = vmatmul.mubr.bf16.gmra.mrb[0].mxu0 %v462
      %v1391 = vpop.f32.mrb[0].mxu0
      %v1392 = vadd.f32 %v1311, %v1391
      %v1393 = vpop.f32.mrb[0].mxu0
      %v1394 = vpop.f32.mrb[0].mxu0
      %v1395 = vadd.f32 %v1311, %v1394
      %v1396 = vpop.f32.mrb[0].mxu0
      %1397 = vmatprep.mubr.bf16.mxu0 0
      %1398 = vmatmul.mubr.bf16.gmra.mrb[0].mxu0 %v465
      %v1399 = vpop.f32.mrb[0].mxu0
      %v1400 = vadd.f32 %v1311, %v1399
      %v1401 = vpop.f32.mrb[0].mxu0
      %v1402 = vpop.f32.mrb[0].mxu0
      %v1403 = vadd.f32 %v1311, %v1402
      %v1404 = vpop.f32.mrb[0].mxu0
      %1405 = vmatprep.mubr.bf16.mxu0 0
      %1406 = vmatmul.mubr.bf16.gmra.mrb[0].mxu0 %v468
      %v1407 = vpop.f32.mrb[0].mxu0
      %v1408 = vadd.f32 %v1311, %v1407
      %v1409 = vpop.f32.mrb[0].mxu0
      %v1410 = vpop.f32.mrb[0].mxu0
      %v1411 = vadd.f32 %v1311, %v1410
      %v1412 = vpop.f32.mrb[0].mxu0
      %1413 = vmatprep.mubr.bf16.mxu0 0
      %1414 = vmatmul.mubr.bf16.gmra.mrb[0].mxu0 %v471
      %v1415 = vpop.f32.mrb[0].mxu0
      %v1416 = vadd.f32 %v1311, %v1415
      %v1417 = vpop.f32.mrb[0].mxu0
      %v1418 = vpop.f32.mrb[0].mxu0
      %v1419 = vadd.f32 %v1311, %v1418
      %v1420 = vpop.f32.mrb[0].mxu0
      %1421 = vdwg.mxu0
      %v1422 = vld [vmem:[%s3] sm:$0xf]
      %v1423 = vld [vmem:[%s3 + $0x4] sm:$0xf]
      %v1424 = vld [vmem:[%s3 + $0x8] sm:$0xf]
      %v1425 = vld [vmem:[%s3 + $0xc] sm:$0xf]
      %v1426 = vld [vmem:[%s6] sm:$0x1]
      %v1428 = vlaneseq
      %v1429 = vshrl.u32 %v1428, 7
      %v1430 = vsub.s32 0, %v1429
      %v1431 = vrot.slane %v1426, %v1430
      %v1437 = vunpack.c.l.b16 %v1422
      %v1438 = vunpack.c.l.b16 %v1423
      %v1439 = vunpack.c.l.b16 %v1424
      %v1440 = vunpack.c.l.b16 %v1425
      %v1441 = vpack.c.b16 %v1438, %v1437
      %v1442 = vpack.c.b16 %v1440, %v1439
      %1445 = vmatprep.subr.bf16.mxu0 0
      %1446 = vmatpush1.bf16.msra.mxu0 %v1441
      %1447 = vmatprep.subr.bf16.mxu0 0
      %1448 = vmatpush1.bf16.msra.mxu0 %v1442
      %1449 = vmatprep.subr.bf16.mxu0 0
      %1450 = vmatpush1.bf16.msra.mxu0 0
      %1451 = vmatprep.subr.bf16.mxu0 0
      %1452 = vmatpush1.bf16.msra.mxu0 0
      %1453 = vmatprep.subr.bf16.mxu0 0
      %1454 = vmatpush1.bf16.msra.mxu0 0
      %1455 = vmatprep.subr.bf16.mxu0 0
      %1456 = vmatpush1.bf16.msra.mxu0 0
      %1457 = vmatprep.subr.bf16.mxu0 0
      %1458 = vmatpush1.bf16.msra.mxu0 0
      %1459 = vmatprep.subr.bf16.mxu0 0
      %1460 = vmatpush1.bf16.msra.mxu0 0
      %1461 = vmatprep.subr.bf16.mxu0 0
      %1462 = vmatpush1.bf16.msra.mxu0 0
      %1463 = vmatprep.subr.bf16.mxu0 0
      %1464 = vmatpush1.bf16.msra.mxu0 0
      %1465 = vmatprep.subr.bf16.mxu0 0
      %1466 = vmatpush1.bf16.msra.mxu0 0
      %1467 = vmatprep.subr.bf16.mxu0 0
      %1468 = vmatpush1.bf16.msra.mxu0 0
      %1469 = vmatprep.subr.bf16.mxu0 0
      %1470 = vmatpush1.bf16.msra.mxu0 0
      %1471 = vmatprep.subr.bf16.mxu0 0
      %1472 = vmatpush1.bf16.msra.mxu0 0
      %1473 = vmatprep.subr.bf16.mxu0 0
      %1474 = vmatpush1.bf16.msra.mxu0 0
      %1475 = vmatprep.subr.bf16.mxu0 0
      %1476 = vmatpush1.bf16.msra.mxu0 0
      %1477 = vmatprep.mubr.bf16.mxu0 0
      %1478 = vmatmul.mubr.bf16.gmra.mrb[0].mxu0 %v450
      %v1479 = vpop.f32.mrb[0].mxu0
      %v1480 = vadd.f32 %v1431, %v1479
      %v1481 = vpop.f32.mrb[0].mxu0
      %v1482 = vpop.f32.mrb[0].mxu0
      %v1483 = vadd.f32 %v1431, %v1482
      %v1484 = vpop.f32.mrb[0].mxu0
      %1485 = vmatprep.mubr.bf16.mxu0 0
      %1486 = vmatmul.mubr.bf16.gmra.mrb[0].mxu0 %v453
      %v1487 = vpop.f32.mrb[0].mxu0
      %v1488 = vadd.f32 %v1431, %v1487
      %v1489 = vpop.f32.mrb[0].mxu0
      %v1490 = vpop.f32.mrb[0].mxu0
      %v1491 = vadd.f32 %v1431, %v1490
      %v1492 = vpop.f32.mrb[0].mxu0
      %1493 = vmatprep.mubr.bf16.mxu0 0
      %1494 = vmatmul.mubr.bf16.gmra.mrb[0].mxu0 %v456
      %v1495 = vpop.f32.mrb[0].mxu0
      %v1496 = vadd.f32 %v1431, %v1495
      %v1497 = vpop.f32.mrb[0].mxu0
      %v1498 = vpop.f32.mrb[0].mxu0
      %v1499 = vadd.f32 %v1431, %v1498
      %v1500 = vpop.f32.mrb[0].mxu0
      %1501 = vmatprep.mubr.bf16.mxu0 0
      %1502 = vmatmul.mubr.bf16.gmra.mrb[0].mxu0 %v459
      %v1503 = vpop.f32.mrb[0].mxu0
      %v1504 = vadd.f32 %v1431, %v1503
      %v1505 = vpop.f32.mrb[0].mxu0
      %v1506 = vpop.f32.mrb[0].mxu0
      %v1507 = vadd.f32 %v1431, %v1506
      %v1508 = vpop.f32.mrb[0].mxu0
      %1509 = vmatprep.mubr.bf16.mxu0 0
      %1510 = vmatmul.mubr.bf16.gmra.mrb[0].mxu0 %v462
      %v1511 = vpop.f32.mrb[0].mxu0
      %v1512 = vadd.f32 %v1431, %v1511
      %v1513 = vpop.f32.mrb[0].mxu0
      %v1514 = vpop.f32.mrb[0].mxu0
      %v1515 = vadd.f32 %v1431, %v1514
      %v1516 = vpop.f32.mrb[0].mxu0
      %1517 = vmatprep.mubr.bf16.mxu0 0
      %1518 = vmatmul.mubr.bf16.gmra.mrb[0].mxu0 %v465
      %v1519 = vpop.f32.mrb[0].mxu0
      %v1520 = vadd.f32 %v1431, %v1519
      %v1521 = vpop.f32.mrb[0].mxu0
      %v1522 = vpop.f32.mrb[0].mxu0
      %v1523 = vadd.f32 %v1431, %v1522
      %v1524 = vpop.f32.mrb[0].mxu0
      %1525 = vmatprep.mubr.bf16.mxu0 0
      %1526 = vmatmul.mubr.bf16.gmra.mrb[0].mxu0 %v468
      %v1527 = vpop.f32.mrb[0].mxu0
      %v1528 = vadd.f32 %v1431, %v1527
      %v1529 = vpop.f32.mrb[0].mxu0
      %v1530 = vpop.f32.mrb[0].mxu0
      %v1531 = vadd.f32 %v1431, %v1530
      %v1532 = vpop.f32.mrb[0].mxu0
      %1533 = vmatprep.mubr.bf16.mxu0 0
      %1534 = vmatmul.mubr.bf16.gmra.mrb[0].mxu0 %v471
      %v1535 = vpop.f32.mrb[0].mxu0
      %v1536 = vadd.f32 %v1431, %v1535
      %v1537 = vpop.f32.mrb[0].mxu0
      %v1538 = vpop.f32.mrb[0].mxu0
      %v1539 = vadd.f32 %v1431, %v1538
      %v1540 = vpop.f32.mrb[0].mxu0
      %1541 = vdwg.mxu0
      %s1542 = scalar_lea.vmem %s3, 16
      %v1543 = vld [vmem:[%s1542] sm:$0xf]
      %v1544 = vld [vmem:[%s1542 + $0x4] sm:$0xf]
      %v1545 = vld [vmem:[%s1542 + $0x8] sm:$0xf]
      %v1546 = vld [vmem:[%s1542 + $0xc] sm:$0xf]
      %s1547 = scalar_lea.vmem %s6, 1
      %v1548 = vld [vmem:[%s1547] sm:$0x1]
      %v1550 = vlaneseq
      %v1551 = vshrl.u32 %v1550, 7
      %v1552 = vsub.s32 0, %v1551
      %v1553 = vrot.slane %v1548, %v1552
      %v1559 = vunpack.c.l.b16 %v1543
      %v1560 = vunpack.c.l.b16 %v1544
      %v1561 = vunpack.c.l.b16 %v1545
      %v1562 = vunpack.c.l.b16 %v1546
      %v1563 = vpack.c.b16 %v1560, %v1559
      %v1564 = vpack.c.b16 %v1562, %v1561
      %1567 = vmatprep.subr.bf16.mxu0 0
      %1568 = vmatpush1.bf16.msra.mxu0 %v1563
      %1569 = vmatprep.subr.bf16.mxu0 0
      %1570 = vmatpush1.bf16.msra.mxu0 %v1564
      %1571 = vmatprep.subr.bf16.mxu0 0
      %1572 = vmatpush1.bf16.msra.mxu0 0
      %1573 = vmatprep.subr.bf16.mxu0 0
      %1574 = vmatpush1.bf16.msra.mxu0 0
      %1575 = vmatprep.subr.bf16.mxu0 0
      %1576 = vmatpush1.bf16.msra.mxu0 0
      %1577 = vmatprep.subr.bf16.mxu0 0
      %1578 = vmatpush1.bf16.msra.mxu0 0
      %1579 = vmatprep.subr.bf16.mxu0 0
      %1580 = vmatpush1.bf16.msra.mxu0 0
      %1581 = vmatprep.subr.bf16.mxu0 0
      %1582 = vmatpush1.bf16.msra.mxu0 0
      %1583 = vmatprep.subr.bf16.mxu0 0
      %1584 = vmatpush1.bf16.msra.mxu0 0
      %1585 = vmatprep.subr.bf16.mxu0 0
      %1586 = vmatpush1.bf16.msra.mxu0 0
      %1587 = vmatprep.subr.bf16.mxu0 0
      %1588 = vmatpush1.bf16.msra.mxu0 0
      %1589 = vmatprep.subr.bf16.mxu0 0
      %1590 = vmatpush1.bf16.msra.mxu0 0
      %1591 = vmatprep.subr.bf16.mxu0 0
      %1592 = vmatpush1.bf16.msra.mxu0 0
      %1593 = vmatprep.subr.bf16.mxu0 0
      %1594 = vmatpush1.bf16.msra.mxu0 0
      %1595 = vmatprep.subr.bf16.mxu0 0
      %1596 = vmatpush1.bf16.msra.mxu0 0
      %1597 = vmatprep.subr.bf16.mxu0 0
      %1598 = vmatpush1.bf16.msra.mxu0 0
      %1599 = vmatprep.mubr.bf16.mxu0 0
      %1600 = vmatmul.mubr.bf16.gmra.mrb[0].mxu0 %v450
      %v1601 = vpop.f32.mrb[0].mxu0
      %v1602 = vadd.f32 %v1553, %v1601
      %v1603 = vpop.f32.mrb[0].mxu0
      %v1604 = vpop.f32.mrb[0].mxu0
      %v1605 = vadd.f32 %v1553, %v1604
      %v1606 = vpop.f32.mrb[0].mxu0
      %1607 = vmatprep.mubr.bf16.mxu0 0
      %1608 = vmatmul.mubr.bf16.gmra.mrb[0].mxu0 %v453
      %v1609 = vpop.f32.mrb[0].mxu0
      %v1610 = vadd.f32 %v1553, %v1609
      %v1611 = vpop.f32.mrb[0].mxu0
      %v1612 = vpop.f32.mrb[0].mxu0
      %v1613 = vadd.f32 %v1553, %v1612
      %v1614 = vpop.f32.mrb[0].mxu0
      %1615 = vmatprep.mubr.bf16.mxu0 0
      %1616 = vmatmul.mubr.bf16.gmra.mrb[0].mxu0 %v456
      %v1617 = vpop.f32.mrb[0].mxu0
      %v1618 = vadd.f32 %v1553, %v1617
      %v1619 = vpop.f32.mrb[0].mxu0
      %v1620 = vpop.f32.mrb[0].mxu0
      %v1621 = vadd.f32 %v1553, %v1620
      %v1622 = vpop.f32.mrb[0].mxu0
      %1623 = vmatprep.mubr.bf16.mxu0 0
      %1624 = vmatmul.mubr.bf16.gmra.mrb[0].mxu0 %v459
      %v1625 = vpop.f32.mrb[0].mxu0
      %v1626 = vadd.f32 %v1553, %v1625
      %v1627 = vpop.f32.mrb[0].mxu0
      %v1628 = vpop.f32.mrb[0].mxu0
      %v1629 = vadd.f32 %v1553, %v1628
      %v1630 = vpop.f32.mrb[0].mxu0
      %1631 = vmatprep.mubr.bf16.mxu0 0
      %1632 = vmatmul.mubr.bf16.gmra.mrb[0].mxu0 %v462
      %v1633 = vpop.f32.mrb[0].mxu0
      %v1634 = vadd.f32 %v1553, %v1633
      %v1635 = vpop.f32.mrb[0].mxu0
      %v1636 = vpop.f32.mrb[0].mxu0
      %v1637 = vadd.f32 %v1553, %v1636
      %v1638 = vpop.f32.mrb[0].mxu0
      %1639 = vmatprep.mubr.bf16.mxu0 0
      %1640 = vmatmul.mubr.bf16.gmra.mrb[0].mxu0 %v465
      %v1641 = vpop.f32.mrb[0].mxu0
      %v1642 = vadd.f32 %v1553, %v1641
      %v1643 = vpop.f32.mrb[0].mxu0
      %v1644 = vpop.f32.mrb[0].mxu0
      %v1645 = vadd.f32 %v1553, %v1644
      %v1646 = vpop.f32.mrb[0].mxu0
      %1647 = vmatprep.mubr.bf16.mxu0 0
      %1648 = vmatmul.mubr.bf16.gmra.mrb[0].mxu0 %v468
      %v1649 = vpop.f32.mrb[0].mxu0
      %v1650 = vadd.f32 %v1553, %v1649
      %v1651 = vpop.f32.mrb[0].mxu0
      %v1652 = vpop.f32.mrb[0].mxu0
      %v1653 = vadd.f32 %v1553, %v1652
      %v1654 = vpop.f32.mrb[0].mxu0
      %1655 = vmatprep.mubr.bf16.mxu0 0
      %1656 = vmatmul.mubr.bf16.gmra.mrb[0].mxu0 %v471
      %v1657 = vpop.f32.mrb[0].mxu0
      %v1658 = vadd.f32 %v1553, %v1657
      %v1659 = vpop.f32.mrb[0].mxu0
      %v1660 = vpop.f32.mrb[0].mxu0
      %v1661 = vadd.f32 %v1553, %v1660
      %v1662 = vpop.f32.mrb[0].mxu0
      %1663 = vdwg.mxu0
      %s1664 = scalar_lea.vmem %s3, 32
      %v1665 = vld [vmem:[%s1664] sm:$0xf]
      %v1666 = vld [vmem:[%s1664 + $0x4] sm:$0xf]
      %v1667 = vld [vmem:[%s1664 + $0x8] sm:$0xf]
      %v1668 = vld [vmem:[%s1664 + $0xc] sm:$0xf]
      %s1669 = scalar_lea.vmem %s6, 2
      %v1670 = vld [vmem:[%s1669] sm:$0x1]
      %v1672 = vlaneseq
      %v1673 = vshrl.u32 %v1672, 7
      %v1674 = vsub.s32 0, %v1673
      %v1675 = vrot.slane %v1670, %v1674
      %v1681 = vunpack.c.l.b16 %v1665
      %v1682 = vunpack.c.l.b16 %v1666
      %v1683 = vunpack.c.l.b16 %v1667
      %v1684 = vunpack.c.l.b16 %v1668
      %v1685 = vpack.c.b16 %v1682, %v1681
      %v1686 = vpack.c.b16 %v1684, %v1683
      %1689 = vmatprep.subr.bf16.mxu0 0
      %1690 = vmatpush1.bf16.msra.mxu0 %v1685
      %1691 = vmatprep.subr.bf16.mxu0 0
      %1692 = vmatpush1.bf16.msra.mxu0 %v1686
      %1693 = vmatprep.subr.bf16.mxu0 0
      %1694 = vmatpush1.bf16.msra.mxu0 0
      %1695 = vmatprep.subr.bf16.mxu0 0
      %1696 = vmatpush1.bf16.msra.mxu0 0
      %1697 = vmatprep.subr.bf16.mxu0 0
      %1698 = vmatpush1.bf16.msra.mxu0 0
      %1699 = vmatprep.subr.bf16.mxu0 0
      %1700 = vmatpush1.bf16.msra.mxu0 0
      %1701 = vmatprep.subr.bf16.mxu0 0
      %1702 = vmatpush1.bf16.msra.mxu0 0
      %1703 = vmatprep.subr.bf16.mxu0 0
      %1704 = vmatpush1.bf16.msra.mxu0 0
      %1705 = vmatprep.subr.bf16.mxu0 0
      %1706 = vmatpush1.bf16.msra.mxu0 0
      %1707 = vmatprep.subr.bf16.mxu0 0
      %1708 = vmatpush1.bf16.msra.mxu0 0
      %1709 = vmatprep.subr.bf16.mxu0 0
      %1710 = vmatpush1.bf16.msra.mxu0 0
      %1711 = vmatprep.subr.bf16.mxu0 0
      %1712 = vmatpush1.bf16.msra.mxu0 0
      %1713 = vmatprep.subr.bf16.mxu0 0
      %1714 = vmatpush1.bf16.msra.mxu0 0
      %1715 = vmatprep.subr.bf16.mxu0 0
      %1716 = vmatpush1.bf16.msra.mxu0 0
      %1717 = vmatprep.subr.bf16.mxu0 0
      %1718 = vmatpush1.bf16.msra.mxu0 0
      %1719 = vmatprep.subr.bf16.mxu0 0
      %1720 = vmatpush1.bf16.msra.mxu0 0
      %1721 = vmatprep.mubr.bf16.mxu0 0
      %1722 = vmatmul.mubr.bf16.gmra.mrb[0].mxu0 %v450
      %v1723 = vpop.f32.mrb[0].mxu0
      %v1724 = vadd.f32 %v1675, %v1723
      %v1725 = vpop.f32.mrb[0].mxu0
      %v1726 = vpop.f32.mrb[0].mxu0
      %v1727 = vadd.f32 %v1675, %v1726
      %v1728 = vpop.f32.mrb[0].mxu0
      %1729 = vmatprep.mubr.bf16.mxu0 0
      %1730 = vmatmul.mubr.bf16.gmra.mrb[0].mxu0 %v453
      %v1731 = vpop.f32.mrb[0].mxu0
      %v1732 = vadd.f32 %v1675, %v1731
      %v1733 = vpop.f32.mrb[0].mxu0
      %v1734 = vpop.f32.mrb[0].mxu0
      %v1735 = vadd.f32 %v1675, %v1734
      %v1736 = vpop.f32.mrb[0].mxu0
      %1737 = vmatprep.mubr.bf16.mxu0 0
      %1738 = vmatmul.mubr.bf16.gmra.mrb[0].mxu0 %v456
      %v1739 = vpop.f32.mrb[0].mxu0
      %v1740 = vadd.f32 %v1675, %v1739
      %v1741 = vpop.f32.mrb[0].mxu0
      %v1742 = vpop.f32.mrb[0].mxu0
      %v1743 = vadd.f32 %v1675, %v1742
      %v1744 = vpop.f32.mrb[0].mxu0
      %1745 = vmatprep.mubr.bf16.mxu0 0
      %1746 = vmatmul.mubr.bf16.gmra.mrb[0].mxu0 %v459
      %v1747 = vpop.f32.mrb[0].mxu0
      %v1748 = vadd.f32 %v1675, %v1747
      %v1749 = vpop.f32.mrb[0].mxu0
      %v1750 = vpop.f32.mrb[0].mxu0
      %v1751 = vadd.f32 %v1675, %v1750
      %v1752 = vpop.f32.mrb[0].mxu0
      %1753 = vmatprep.mubr.bf16.mxu0 0
      %1754 = vmatmul.mubr.bf16.gmra.mrb[0].mxu0 %v462
      %v1755 = vpop.f32.mrb[0].mxu0
      %v1756 = vadd.f32 %v1675, %v1755
      %v1757 = vpop.f32.mrb[0].mxu0
      %v1758 = vpop.f32.mrb[0].mxu0
      %v1759 = vadd.f32 %v1675, %v1758
      %v1760 = vpop.f32.mrb[0].mxu0
      %1761 = vmatprep.mubr.bf16.mxu0 0
      %1762 = vmatmul.mubr.bf16.gmra.mrb[0].mxu0 %v465
      %v1763 = vpop.f32.mrb[0].mxu0
      %v1764 = vadd.f32 %v1675, %v1763
      %v1765 = vpop.f32.mrb[0].mxu0
      %v1766 = vpop.f32.mrb[0].mxu0
      %v1767 = vadd.f32 %v1675, %v1766
      %v1768 = vpop.f32.mrb[0].mxu0
      %1769 = vmatprep.mubr.bf16.mxu0 0
      %1770 = vmatmul.mubr.bf16.gmra.mrb[0].mxu0 %v468
      %v1771 = vpop.f32.mrb[0].mxu0
      %v1772 = vadd.f32 %v1675, %v1771
      %v1773 = vpop.f32.mrb[0].mxu0
      %v1774 = vpop.f32.mrb[0].mxu0
      %v1775 = vadd.f32 %v1675, %v1774
      %v1776 = vpop.f32.mrb[0].mxu0
      %1777 = vmatprep.mubr.bf16.mxu0 0
      %1778 = vmatmul.mubr.bf16.gmra.mrb[0].mxu0 %v471
      %v1779 = vpop.f32.mrb[0].mxu0
      %v1780 = vadd.f32 %v1675, %v1779
      %v1781 = vpop.f32.mrb[0].mxu0
      %v1782 = vpop.f32.mrb[0].mxu0
      %v1783 = vadd.f32 %v1675, %v1782
      %v1784 = vpop.f32.mrb[0].mxu0
      %1785 = vdwg.mxu0
      %s1786 = scalar_lea.vmem %s3, 48
      %v1787 = vld [vmem:[%s1786] sm:$0xf]
      %v1788 = vld [vmem:[%s1786 + $0x4] sm:$0xf]
      %v1789 = vld [vmem:[%s1786 + $0x8] sm:$0xf]
      %v1790 = vld [vmem:[%s1786 + $0xc] sm:$0xf]
      %s1791 = scalar_lea.vmem %s6, 3
      %v1792 = vld [vmem:[%s1791] sm:$0x1]
      %v1794 = vlaneseq
      %v1795 = vshrl.u32 %v1794, 7
      %v1796 = vsub.s32 0, %v1795
      %v1797 = vrot.slane %v1792, %v1796
      %v1803 = vunpack.c.l.b16 %v1787
      %v1804 = vunpack.c.l.b16 %v1788
      %v1805 = vunpack.c.l.b16 %v1789
      %v1806 = vunpack.c.l.b16 %v1790
      %v1807 = vpack.c.b16 %v1804, %v1803
      %v1808 = vpack.c.b16 %v1806, %v1805
      %1811 = vmatprep.subr.bf16.mxu0 0
      %1812 = vmatpush1.bf16.msra.mxu0 %v1807
      %1813 = vmatprep.subr.bf16.mxu0 0
      %1814 = vmatpush1.bf16.msra.mxu0 %v1808
      %1815 = vmatprep.subr.bf16.mxu0 0
      %1816 = vmatpush1.bf16.msra.mxu0 0
      %1817 = vmatprep.subr.bf16.mxu0 0
      %1818 = vmatpush1.bf16.msra.mxu0 0
      %1819 = vmatprep.subr.bf16.mxu0 0
      %1820 = vmatpush1.bf16.msra.mxu0 0
      %1821 = vmatprep.subr.bf16.mxu0 0
      %1822 = vmatpush1.bf16.msra.mxu0 0
      %1823 = vmatprep.subr.bf16.mxu0 0
      %1824 = vmatpush1.bf16.msra.mxu0 0
      %1825 = vmatprep.subr.bf16.mxu0 0
      %1826 = vmatpush1.bf16.msra.mxu0 0
      %1827 = vmatprep.subr.bf16.mxu0 0
      %1828 = vmatpush1.bf16.msra.mxu0 0
      %1829 = vmatprep.subr.bf16.mxu0 0
      %1830 = vmatpush1.bf16.msra.mxu0 0
      %1831 = vmatprep.subr.bf16.mxu0 0
      %1832 = vmatpush1.bf16.msra.mxu0 0
      %1833 = vmatprep.subr.bf16.mxu0 0
      %1834 = vmatpush1.bf16.msra.mxu0 0
      %1835 = vmatprep.subr.bf16.mxu0 0
      %1836 = vmatpush1.bf16.msra.mxu0 0
      %1837 = vmatprep.subr.bf16.mxu0 0
      %1838 = vmatpush1.bf16.msra.mxu0 0
      %1839 = vmatprep.subr.bf16.mxu0 0
      %1840 = vmatpush1.bf16.msra.mxu0 0
      %1841 = vmatprep.subr.bf16.mxu0 0
      %1842 = vmatpush1.bf16.msra.mxu0 0
      %1843 = vmatprep.mubr.bf16.mxu0 0
      %1844 = vmatmul.mubr.bf16.gmra.mrb[0].mxu0 %v450
      %v1845 = vpop.f32.mrb[0].mxu0
      %v1846 = vadd.f32 %v1797, %v1845
      %v1847 = vpop.f32.mrb[0].mxu0
      %v1848 = vpop.f32.mrb[0].mxu0
      %v1849 = vadd.f32 %v1797, %v1848
      %v1850 = vpop.f32.mrb[0].mxu0
      %1851 = vmatprep.mubr.bf16.mxu0 0
      %1852 = vmatmul.mubr.bf16.gmra.mrb[0].mxu0 %v453
      %v1853 = vpop.f32.mrb[0].mxu0
      %v1854 = vadd.f32 %v1797, %v1853
      %v1855 = vpop.f32.mrb[0].mxu0
      %v1856 = vpop.f32.mrb[0].mxu0
      %v1857 = vadd.f32 %v1797, %v1856
      %v1858 = vpop.f32.mrb[0].mxu0
      %1859 = vmatprep.mubr.bf16.mxu0 0
      %1860 = vmatmul.mubr.bf16.gmra.mrb[0].mxu0 %v456
      %v1861 = vpop.f32.mrb[0].mxu0
      %v1862 = vadd.f32 %v1797, %v1861
      %v1863 = vpop.f32.mrb[0].mxu0
      %v1864 = vpop.f32.mrb[0].mxu0
      %v1865 = vadd.f32 %v1797, %v1864
      %v1866 = vpop.f32.mrb[0].mxu0
      %1867 = vmatprep.mubr.bf16.mxu0 0
      %1868 = vmatmul.mubr.bf16.gmra.mrb[0].mxu0 %v459
      %v1869 = vpop.f32.mrb[0].mxu0
      %v1870 = vadd.f32 %v1797, %v1869
      %v1871 = vpop.f32.mrb[0].mxu0
      %v1872 = vpop.f32.mrb[0].mxu0
      %v1873 = vadd.f32 %v1797, %v1872
      %v1874 = vpop.f32.mrb[0].mxu0
      %1875 = vmatprep.mubr.bf16.mxu0 0
      %1876 = vmatmul.mubr.bf16.gmra.mrb[0].mxu0 %v462
      %v1877 = vpop.f32.mrb[0].mxu0
      %v1878 = vadd.f32 %v1797, %v1877
      %v1879 = vpop.f32.mrb[0].mxu0
      %v1880 = vpop.f32.mrb[0].mxu0
      %v1881 = vadd.f32 %v1797, %v1880
      %v1882 = vpop.f32.mrb[0].mxu0
      %1883 = vmatprep.mubr.bf16.mxu0 0
      %1884 = vmatmul.mubr.bf16.gmra.mrb[0].mxu0 %v465
      %v1885 = vpop.f32.mrb[0].mxu0
      %v1886 = vadd.f32 %v1797, %v1885
      %v1887 = vpop.f32.mrb[0].mxu0
      %v1888 = vpop.f32.mrb[0].mxu0
      %v1889 = vadd.f32 %v1797, %v1888
      %v1890 = vpop.f32.mrb[0].mxu0
      %1891 = vmatprep.mubr.bf16.mxu0 0
      %1892 = vmatmul.mubr.bf16.gmra.mrb[0].mxu0 %v468
      %v1893 = vpop.f32.mrb[0].mxu0
      %v1894 = vadd.f32 %v1797, %v1893
      %v1895 = vpop.f32.mrb[0].mxu0
      %v1896 = vpop.f32.mrb[0].mxu0
      %v1897 = vadd.f32 %v1797, %v1896
      %v1898 = vpop.f32.mrb[0].mxu0
      %1899 = vmatprep.mubr.bf16.mxu0 0
      %1900 = vmatmul.mubr.bf16.gmra.mrb[0].mxu0 %v471
      %v1901 = vpop.f32.mrb[0].mxu0
      %v1902 = vadd.f32 %v1797, %v1901
      %v1903 = vpop.f32.mrb[0].mxu0
      %v1904 = vpop.f32.mrb[0].mxu0
      %v1905 = vadd.f32 %v1797, %v1904
      %v1906 = vpop.f32.mrb[0].mxu0
      %1907 = vdwg.mxu0
      %v1908 = vpack.c.bf16 %v511, %v508
      %v1909 = vpack.c.bf16 %v519, %v516
      %v1910 = vpack.c.bf16 %v527, %v524
      %v1911 = vpack.c.bf16 %v535, %v532
      %v1912 = vpack.c.bf16 %v543, %v540
      %v1913 = vpack.c.bf16 %v551, %v548
      %v1914 = vpack.c.bf16 %v559, %v556
      %v1915 = vpack.c.bf16 %v567, %v564
      %v1916 = vpack.c.bf16 %v633, %v630
      %v1917 = vpack.c.bf16 %v641, %v638
      %v1918 = vpack.c.bf16 %v649, %v646
      %v1919 = vpack.c.bf16 %v657, %v654
      %v1920 = vpack.c.bf16 %v665, %v662
      %v1921 = vpack.c.bf16 %v673, %v670
      %v1922 = vpack.c.bf16 %v681, %v678
      %v1923 = vpack.c.bf16 %v689, %v686
      %v1924 = vpack.c.bf16 %v755, %v752
      %v1925 = vpack.c.bf16 %v763, %v760
      %v1926 = vpack.c.bf16 %v771, %v768
      %v1927 = vpack.c.bf16 %v779, %v776
      %v1928 = vpack.c.bf16 %v787, %v784
      %v1929 = vpack.c.bf16 %v795, %v792
      %v1930 = vpack.c.bf16 %v803, %v800
      %v1931 = vpack.c.bf16 %v811, %v808
      %v1932 = vpack.c.bf16 %v877, %v874
      %v1933 = vpack.c.bf16 %v885, %v882
      %v1934 = vpack.c.bf16 %v893, %v890
      %v1935 = vpack.c.bf16 %v901, %v898
      %v1936 = vpack.c.bf16 %v909, %v906
      %v1937 = vpack.c.bf16 %v917, %v914
      %v1938 = vpack.c.bf16 %v925, %v922
      %v1939 = vpack.c.bf16 %v933, %v930
      %v1940 = vpack.c.bf16 %v997, %v994
      %v1941 = vpack.c.bf16 %v1005, %v1002
      %v1942 = vpack.c.bf16 %v1013, %v1010
      %v1943 = vpack.c.bf16 %v1021, %v1018
      %v1944 = vpack.c.bf16 %v1029, %v1026
      %v1945 = vpack.c.bf16 %v1037, %v1034
      %v1946 = vpack.c.bf16 %v1045, %v1042
      %v1947 = vpack.c.bf16 %v1053, %v1050
      %v1948 = vpack.c.bf16 %v1119, %v1116
      %v1949 = vpack.c.bf16 %v1127, %v1124
      %v1950 = vpack.c.bf16 %v1135, %v1132
      %v1951 = vpack.c.bf16 %v1143, %v1140
      %v1952 = vpack.c.bf16 %v1151, %v1148
      %v1953 = vpack.c.bf16 %v1159, %v1156
      %v1954 = vpack.c.bf16 %v1167, %v1164
      %v1955 = vpack.c.bf16 %v1175, %v1172
      %v1956 = vpack.c.bf16 %v1241, %v1238
      %v1957 = vpack.c.bf16 %v1249, %v1246
      %v1958 = vpack.c.bf16 %v1257, %v1254
      %v1959 = vpack.c.bf16 %v1265, %v1262
      %v1960 = vpack.c.bf16 %v1273, %v1270
      %v1961 = vpack.c.bf16 %v1281, %v1278
      %v1962 = vpack.c.bf16 %v1289, %v1286
      %v1963 = vpack.c.bf16 %v1297, %v1294
      %v1964 = vpack.c.bf16 %v1363, %v1360
      %v1965 = vpack.c.bf16 %v1371, %v1368
      %v1966 = vpack.c.bf16 %v1379, %v1376
      %v1967 = vpack.c.bf16 %v1387, %v1384
      %v1968 = vpack.c.bf16 %v1395, %v1392
      %v1969 = vpack.c.bf16 %v1403, %v1400
      %v1970 = vpack.c.bf16 %v1411, %v1408
      %v1971 = vpack.c.bf16 %v1419, %v1416
      %vm1972 = vcmask 64512
      %v1974 = vsel %vm1972, %v1908, 0
      %v1977 = vsel %vm1972, %v1909, 0
      %v1980 = vsel %vm1972, %v1910, 0
      %v1983 = vsel %vm1972, %v1911, 0
      %v1986 = vsel %vm1972, %v1940, 0
      %v1989 = vsel %vm1972, %v1941, 0
      %v1992 = vsel %vm1972, %v1942, 0
      %v1995 = vsel %vm1972, %v1943, 0
      %1997 = vmatprep.subr.bf16.mxu0 0
      %1998 = vmatpush1.bf16.xpose.msra.mxu0 %v1986
      %1999 = vmatprep.subr.bf16.mxu0 0
      %2000 = vmatpush1.bf16.xpose.msra.mxu0 %v1989
      %2001 = vmatprep.subr.bf16.mxu0 0
      %2002 = vmatpush1.bf16.xpose.msra.mxu0 %v1992
      %2003 = vmatprep.subr.bf16.mxu0 0
      %2004 = vmatpush1.bf16.xpose.msra.mxu0 %v1995
      %2005 = vmatprep.subr.bf16.mxu0 0
      %2006 = vmatpush1.bf16.xpose.msra.mxu0 0
      %2007 = vmatprep.subr.bf16.mxu0 0
      %2008 = vmatpush1.bf16.xpose.msra.mxu0 0
      %2009 = vmatprep.subr.bf16.mxu0 0
      %2010 = vmatpush1.bf16.xpose.msra.mxu0 0
      %2011 = vmatprep.subr.bf16.mxu0 0
      %2012 = vmatpush1.bf16.xpose.msra.mxu0 0
      %2013 = vmatprep.subr.bf16.mxu0 0
      %2014 = vmatpush1.bf16.xpose.msra.mxu0 0
      %2015 = vmatprep.subr.bf16.mxu0 0
      %2016 = vmatpush1.bf16.xpose.msra.mxu0 0
      %2017 = vmatprep.subr.bf16.mxu0 0
      %2018 = vmatpush1.bf16.xpose.msra.mxu0 0
      %2019 = vmatprep.subr.bf16.mxu0 0
      %2020 = vmatpush1.bf16.xpose.msra.mxu0 0
      %2021 = vmatprep.subr.bf16.mxu0 0
      %2022 = vmatpush1.bf16.xpose.msra.mxu0 0
      %2023 = vmatprep.subr.bf16.mxu0 0
      %2024 = vmatpush1.bf16.xpose.msra.mxu0 0
      %2025 = vmatprep.subr.bf16.mxu0 0
      %2026 = vmatpush1.bf16.xpose.msra.mxu0 0
      %2027 = vmatprep.subr.bf16.mxu0 0
      %2028 = vmatpush1.bf16.xpose.msra.mxu0 0
      %2029 = vmatprep.mubr.bf16.mxu0 0
      %2030 = vmatmul.mubr.bf16.gmra.mrb[0].mxu0 %v1974
      %v2031 = vpop.f32.mrb[0].mxu0
      %v2032 = vadd.f32 0.0, %v2031
      %v2033 = vpop.f32.mrb[0].mxu0
      %v2034 = vpop.f32.mrb[0].mxu0
      %v2035 = vadd.f32 0.0, %v2034
      %v2036 = vpop.f32.mrb[0].mxu0
      %2037 = vmatprep.mubr.bf16.mxu0 0
      %2038 = vmatmul.mubr.bf16.gmra.mrb[0].mxu0 %v1977
      %v2039 = vpop.f32.mrb[0].mxu0
      %v2040 = vadd.f32 0.0, %v2039
      %v2041 = vpop.f32.mrb[0].mxu0
      %v2042 = vpop.f32.mrb[0].mxu0
      %v2043 = vadd.f32 0.0, %v2042
      %v2044 = vpop.f32.mrb[0].mxu0
      %2045 = vmatprep.mubr.bf16.mxu0 0
      %2046 = vmatmul.mubr.bf16.gmra.mrb[0].mxu0 %v1980
      %v2047 = vpop.f32.mrb[0].mxu0
      %v2048 = vadd.f32 0.0, %v2047
      %v2049 = vpop.f32.mrb[0].mxu0
      %v2050 = vpop.f32.mrb[0].mxu0
      %v2051 = vadd.f32 0.0, %v2050
      %v2052 = vpop.f32.mrb[0].mxu0
      %2053 = vmatprep.mubr.bf16.mxu0 0
      %2054 = vmatmul.mubr.bf16.gmra.mrb[0].mxu0 %v1983
      %v2055 = vpop.f32.mrb[0].mxu0
      %v2056 = vadd.f32 0.0, %v2055
      %v2057 = vpop.f32.mrb[0].mxu0
      %v2058 = vpop.f32.mrb[0].mxu0
      %v2059 = vadd.f32 0.0, %v2058
      %v2060 = vpop.f32.mrb[0].mxu0
      %2061 = vdwg.mxu0
      %v2063 = vsel %vm1972, %v1912, 0
      %v2066 = vsel %vm1972, %v1913, 0
      %v2069 = vsel %vm1972, %v1914, 0
      %v2072 = vsel %vm1972, %v1915, 0
      %v2075 = vsel %vm1972, %v1944, 0
      %v2078 = vsel %vm1972, %v1945, 0
      %v2081 = vsel %vm1972, %v1946, 0
      %v2084 = vsel %vm1972, %v1947, 0
      %2086 = vmatprep.subr.bf16.mxu0 0
      %2087 = vmatpush1.bf16.xpose.msra.mxu0 %v2075
      %2088 = vmatprep.subr.bf16.mxu0 0
      %2089 = vmatpush1.bf16.xpose.msra.mxu0 %v2078
      %2090 = vmatprep.subr.bf16.mxu0 0
      %2091 = vmatpush1.bf16.xpose.msra.mxu0 %v2081
      %2092 = vmatprep.subr.bf16.mxu0 0
      %2093 = vmatpush1.bf16.xpose.msra.mxu0 %v2084
      %2094 = vmatprep.subr.bf16.mxu0 0
      %2095 = vmatpush1.bf16.xpose.msra.mxu0 0
      %2096 = vmatprep.subr.bf16.mxu0 0
      %2097 = vmatpush1.bf16.xpose.msra.mxu0 0
      %2098 = vmatprep.subr.bf16.mxu0 0
      %2099 = vmatpush1.bf16.xpose.msra.mxu0 0
      %2100 = vmatprep.subr.bf16.mxu0 0
      %2101 = vmatpush1.bf16.xpose.msra.mxu0 0
      %2102 = vmatprep.subr.bf16.mxu0 0
      %2103 = vmatpush1.bf16.xpose.msra.mxu0 0
      %2104 = vmatprep.subr.bf16.mxu0 0
      %2105 = vmatpush1.bf16.xpose.msra.mxu0 0
      %2106 = vmatprep.subr.bf16.mxu0 0
      %2107 = vmatpush1.bf16.xpose.msra.mxu0 0
      %2108 = vmatprep.subr.bf16.mxu0 0
      %2109 = vmatpush1.bf16.xpose.msra.mxu0 0
      %2110 = vmatprep.subr.bf16.mxu0 0
      %2111 = vmatpush1.bf16.xpose.msra.mxu0 0
      %2112 = vmatprep.subr.bf16.mxu0 0
      %2113 = vmatpush1.bf16.xpose.msra.mxu0 0
      %2114 = vmatprep.subr.bf16.mxu0 0
      %2115 = vmatpush1.bf16.xpose.msra.mxu0 0
      %2116 = vmatprep.subr.bf16.mxu0 0
      %2117 = vmatpush1.bf16.xpose.msra.mxu0 0
      %2118 = vmatprep.mubr.bf16.mxu0 0
      %2119 = vmatmul.mubr.bf16.gmra.mrb[0].mxu0 %v2063
      %v2120 = vpop.f32.mrb[0].mxu0
      %v2121 = vadd.f32 0.0, %v2120
      %v2122 = vpop.f32.mrb[0].mxu0
      %v2123 = vpop.f32.mrb[0].mxu0
      %v2124 = vadd.f32 0.0, %v2123
      %v2125 = vpop.f32.mrb[0].mxu0
      %2126 = vmatprep.mubr.bf16.mxu0 0
      %2127 = vmatmul.mubr.bf16.gmra.mrb[0].mxu0 %v2066
      %v2128 = vpop.f32.mrb[0].mxu0
      %v2129 = vadd.f32 0.0, %v2128
      %v2130 = vpop.f32.mrb[0].mxu0
      %v2131 = vpop.f32.mrb[0].mxu0
      %v2132 = vadd.f32 0.0, %v2131
      %v2133 = vpop.f32.mrb[0].mxu0
      %2134 = vmatprep.mubr.bf16.mxu0 0
      %2135 = vmatmul.mubr.bf16.gmra.mrb[0].mxu0 %v2069
      %v2136 = vpop.f32.mrb[0].mxu0
      %v2137 = vadd.f32 0.0, %v2136
      %v2138 = vpop.f32.mrb[0].mxu0
      %v2139 = vpop.f32.mrb[0].mxu0
      %v2140 = vadd.f32 0.0, %v2139
      %v2141 = vpop.f32.mrb[0].mxu0
      %2142 = vmatprep.mubr.bf16.mxu0 0
      %2143 = vmatmul.mubr.bf16.gmra.mrb[0].mxu0 %v2072
      %v2144 = vpop.f32.mrb[0].mxu0
      %v2145 = vadd.f32 0.0, %v2144
      %v2146 = vpop.f32.mrb[0].mxu0
      %v2147 = vpop.f32.mrb[0].mxu0
      %v2148 = vadd.f32 0.0, %v2147
      %v2149 = vpop.f32.mrb[0].mxu0
      %2150 = vdwg.mxu0
      %v2152 = vsel %vm1972, %v1916, 0
      %v2155 = vsel %vm1972, %v1917, 0
      %v2158 = vsel %vm1972, %v1918, 0
      %v2161 = vsel %vm1972, %v1919, 0
      %v2164 = vsel %vm1972, %v1948, 0
      %v2167 = vsel %vm1972, %v1949, 0
      %v2170 = vsel %vm1972, %v1950, 0
      %v2173 = vsel %vm1972, %v1951, 0
      %2175 = vmatprep.subr.bf16.mxu0 0
      %2176 = vmatpush1.bf16.xpose.msra.mxu0 %v2164
      %2177 = vmatprep.subr.bf16.mxu0 0
      %2178 = vmatpush1.bf16.xpose.msra.mxu0 %v2167
      %2179 = vmatprep.subr.bf16.mxu0 0
      %2180 = vmatpush1.bf16.xpose.msra.mxu0 %v2170
      %2181 = vmatprep.subr.bf16.mxu0 0
      %2182 = vmatpush1.bf16.xpose.msra.mxu0 %v2173
      %2183 = vmatprep.subr.bf16.mxu0 0
      %2184 = vmatpush1.bf16.xpose.msra.mxu0 0
      %2185 = vmatprep.subr.bf16.mxu0 0
      %2186 = vmatpush1.bf16.xpose.msra.mxu0 0
      %2187 = vmatprep.subr.bf16.mxu0 0
      %2188 = vmatpush1.bf16.xpose.msra.mxu0 0
      %2189 = vmatprep.subr.bf16.mxu0 0
      %2190 = vmatpush1.bf16.xpose.msra.mxu0 0
      %2191 = vmatprep.subr.bf16.mxu0 0
      %2192 = vmatpush1.bf16.xpose.msra.mxu0 0
      %2193 = vmatprep.subr.bf16.mxu0 0
      %2194 = vmatpush1.bf16.xpose.msra.mxu0 0
      %2195 = vmatprep.subr.bf16.mxu0 0
      %2196 = vmatpush1.bf16.xpose.msra.mxu0 0
      %2197 = vmatprep.subr.bf16.mxu0 0
      %2198 = vmatpush1.bf16.xpose.msra.mxu0 0
      %2199 = vmatprep.subr.bf16.mxu0 0
      %2200 = vmatpush1.bf16.xpose.msra.mxu0 0
      %2201 = vmatprep.subr.bf16.mxu0 0
      %2202 = vmatpush1.bf16.xpose.msra.mxu0 0
      %2203 = vmatprep.subr.bf16.mxu0 0
      %2204 = vmatpush1.bf16.xpose.msra.mxu0 0
      %2205 = vmatprep.subr.bf16.mxu0 0
      %2206 = vmatpush1.bf16.xpose.msra.mxu0 0
      %2207 = vmatprep.mubr.bf16.mxu0 0
      %2208 = vmatmul.mubr.bf16.gmra.mrb[0].mxu0 %v2152
      %v2209 = vpop.f32.mrb[0].mxu0
      %v2210 = vadd.f32 0.0, %v2209
      %v2211 = vpop.f32.mrb[0].mxu0
      %v2212 = vpop.f32.mrb[0].mxu0
      %v2213 = vadd.f32 0.0, %v2212
      %v2214 = vpop.f32.mrb[0].mxu0
      %2215 = vmatprep.mubr.bf16.mxu0 0
      %2216 = vmatmul.mubr.bf16.gmra.mrb[0].mxu0 %v2155
      %v2217 = vpop.f32.mrb[0].mxu0
      %v2218 = vadd.f32 0.0, %v2217
      %v2219 = vpop.f32.mrb[0].mxu0
      %v2220 = vpop.f32.mrb[0].mxu0
      %v2221 = vadd.f32 0.0, %v2220
      %v2222 = vpop.f32.mrb[0].mxu0
      %2223 = vmatprep.mubr.bf16.mxu0 0
      %2224 = vmatmul.mubr.bf16.gmra.mrb[0].mxu0 %v2158
      %v2225 = vpop.f32.mrb[0].mxu0
      %v2226 = vadd.f32 0.0, %v2225
      %v2227 = vpop.f32.mrb[0].mxu0
      %v2228 = vpop.f32.mrb[0].mxu0
      %v2229 = vadd.f32 0.0, %v2228
      %v2230 = vpop.f32.mrb[0].mxu0
      %2231 = vmatprep.mubr.bf16.mxu0 0
      %2232 = vmatmul.mubr.bf16.gmra.mrb[0].mxu0 %v2161
      %v2233 = vpop.f32.mrb[0].mxu0
      %v2234 = vadd.f32 0.0, %v2233
      %v2235 = vpop.f32.mrb[0].mxu0
      %v2236 = vpop.f32.mrb[0].mxu0
      %v2237 = vadd.f32 0.0, %v2236
      %v2238 = vpop.f32.mrb[0].mxu0
      %2239 = vdwg.mxu0
      %v2241 = vsel %vm1972, %v1920, 0
      %v2244 = vsel %vm1972, %v1921, 0
      %v2247 = vsel %vm1972, %v1922, 0
      %v2250 = vsel %vm1972, %v1923, 0
      %v2253 = vsel %vm1972, %v1952, 0
      %v2256 = vsel %vm1972, %v1953, 0
      %v2259 = vsel %vm1972, %v1954, 0
      %v2262 = vsel %vm1972, %v1955, 0
      %2264 = vmatprep.subr.bf16.mxu0 0
      %2265 = vmatpush1.bf16.xpose.msra.mxu0 %v2253
      %2266 = vmatprep.subr.bf16.mxu0 0
      %2267 = vmatpush1.bf16.xpose.msra.mxu0 %v2256
      %2268 = vmatprep.subr.bf16.mxu0 0
      %2269 = vmatpush1.bf16.xpose.msra.mxu0 %v2259
      %2270 = vmatprep.subr.bf16.mxu0 0
      %2271 = vmatpush1.bf16.xpose.msra.mxu0 %v2262
      %2272 = vmatprep.subr.bf16.mxu0 0
      %2273 = vmatpush1.bf16.xpose.msra.mxu0 0
      %2274 = vmatprep.subr.bf16.mxu0 0
      %2275 = vmatpush1.bf16.xpose.msra.mxu0 0
      %2276 = vmatprep.subr.bf16.mxu0 0
      %2277 = vmatpush1.bf16.xpose.msra.mxu0 0
      %2278 = vmatprep.subr.bf16.mxu0 0
      %2279 = vmatpush1.bf16.xpose.msra.mxu0 0
      %2280 = vmatprep.subr.bf16.mxu0 0
      %2281 = vmatpush1.bf16.xpose.msra.mxu0 0
      %2282 = vmatprep.subr.bf16.mxu0 0
      %2283 = vmatpush1.bf16.xpose.msra.mxu0 0
      %2284 = vmatprep.subr.bf16.mxu0 0
      %2285 = vmatpush1.bf16.xpose.msra.mxu0 0
      %2286 = vmatprep.subr.bf16.mxu0 0
      %2287 = vmatpush1.bf16.xpose.msra.mxu0 0
      %2288 = vmatprep.subr.bf16.mxu0 0
      %2289 = vmatpush1.bf16.xpose.msra.mxu0 0
      %2290 = vmatprep.subr.bf16.mxu0 0
      %2291 = vmatpush1.bf16.xpose.msra.mxu0 0
      %2292 = vmatprep.subr.bf16.mxu0 0
      %2293 = vmatpush1.bf16.xpose.msra.mxu0 0
      %2294 = vmatprep.subr.bf16.mxu0 0
      %2295 = vmatpush1.bf16.xpose.msra.mxu0 0
      %2296 = vmatprep.mubr.bf16.mxu0 0
      %2297 = vmatmul.mubr.bf16.gmra.mrb[0].mxu0 %v2241
      %v2298 = vpop.f32.mrb[0].mxu0
      %v2299 = vadd.f32 0.0, %v2298
      %v2300 = vpop.f32.mrb[0].mxu0
      %v2301 = vpop.f32.mrb[0].mxu0
      %v2302 = vadd.f32 0.0, %v2301
      %v2303 = vpop.f32.mrb[0].mxu0
      %2304 = vmatprep.mubr.bf16.mxu0 0
      %2305 = vmatmul.mubr.bf16.gmra.mrb[0].mxu0 %v2244
      %v2306 = vpop.f32.mrb[0].mxu0
      %v2307 = vadd.f32 0.0, %v2306
      %v2308 = vpop.f32.mrb[0].mxu0
      %v2309 = vpop.f32.mrb[0].mxu0
      %v2310 = vadd.f32 0.0, %v2309
      %v2311 = vpop.f32.mrb[0].mxu0
      %2312 = vmatprep.mubr.bf16.mxu0 0
      %2313 = vmatmul.mubr.bf16.gmra.mrb[0].mxu0 %v2247
      %v2314 = vpop.f32.mrb[0].mxu0
      %v2315 = vadd.f32 0.0, %v2314
      %v2316 = vpop.f32.mrb[0].mxu0
      %v2317 = vpop.f32.mrb[0].mxu0
      %v2318 = vadd.f32 0.0, %v2317
      %v2319 = vpop.f32.mrb[0].mxu0
      %2320 = vmatprep.mubr.bf16.mxu0 0
      %2321 = vmatmul.mubr.bf16.gmra.mrb[0].mxu0 %v2250
      %v2322 = vpop.f32.mrb[0].mxu0
      %v2323 = vadd.f32 0.0, %v2322
      %v2324 = vpop.f32.mrb[0].mxu0
      %v2325 = vpop.f32.mrb[0].mxu0
      %v2326 = vadd.f32 0.0, %v2325
      %v2327 = vpop.f32.mrb[0].mxu0
      %2328 = vdwg.mxu0
      %v2330 = vsel %vm1972, %v1924, 0
      %v2333 = vsel %vm1972, %v1925, 0
      %v2336 = vsel %vm1972, %v1926, 0
      %v2339 = vsel %vm1972, %v1927, 0
      %v2342 = vsel %vm1972, %v1956, 0
      %v2345 = vsel %vm1972, %v1957, 0
      %v2348 = vsel %vm1972, %v1958, 0
      %v2351 = vsel %vm1972, %v1959, 0
      %2353 = vmatprep.subr.bf16.mxu0 0
      %2354 = vmatpush1.bf16.xpose.msra.mxu0 %v2342
      %2355 = vmatprep.subr.bf16.mxu0 0
      %2356 = vmatpush1.bf16.xpose.msra.mxu0 %v2345
      %2357 = vmatprep.subr.bf16.mxu0 0
      %2358 = vmatpush1.bf16.xpose.msra.mxu0 %v2348
      %2359 = vmatprep.subr.bf16.mxu0 0
      %2360 = vmatpush1.bf16.xpose.msra.mxu0 %v2351
      %2361 = vmatprep.subr.bf16.mxu0 0
      %2362 = vmatpush1.bf16.xpose.msra.mxu0 0
      %2363 = vmatprep.subr.bf16.mxu0 0
      %2364 = vmatpush1.bf16.xpose.msra.mxu0 0
      %2365 = vmatprep.subr.bf16.mxu0 0
      %2366 = vmatpush1.bf16.xpose.msra.mxu0 0
      %2367 = vmatprep.subr.bf16.mxu0 0
      %2368 = vmatpush1.bf16.xpose.msra.mxu0 0
      %2369 = vmatprep.subr.bf16.mxu0 0
      %2370 = vmatpush1.bf16.xpose.msra.mxu0 0
      %2371 = vmatprep.subr.bf16.mxu0 0
      %2372 = vmatpush1.bf16.xpose.msra.mxu0 0
      %2373 = vmatprep.subr.bf16.mxu0 0
      %2374 = vmatpush1.bf16.xpose.msra.mxu0 0
      %2375 = vmatprep.subr.bf16.mxu0 0
      %2376 = vmatpush1.bf16.xpose.msra.mxu0 0
      %2377 = vmatprep.subr.bf16.mxu0 0
      %2378 = vmatpush1.bf16.xpose.msra.mxu0 0
      %2379 = vmatprep.subr.bf16.mxu0 0
      %2380 = vmatpush1.bf16.xpose.msra.mxu0 0
      %2381 = vmatprep.subr.bf16.mxu0 0
      %2382 = vmatpush1.bf16.xpose.msra.mxu0 0
      %2383 = vmatprep.subr.bf16.mxu0 0
      %2384 = vmatpush1.bf16.xpose.msra.mxu0 0
      %2385 = vmatprep.mubr.bf16.mxu0 0
      %2386 = vmatmul.mubr.bf16.gmra.mrb[0].mxu0 %v2330
      %v2387 = vpop.f32.mrb[0].mxu0
      %v2388 = vadd.f32 0.0, %v2387
      %v2389 = vpop.f32.mrb[0].mxu0
      %v2390 = vpop.f32.mrb[0].mxu0
      %v2391 = vadd.f32 0.0, %v2390
      %v2392 = vpop.f32.mrb[0].mxu0
      %2393 = vmatprep.mubr.bf16.mxu0 0
      %2394 = vmatmul.mubr.bf16.gmra.mrb[0].mxu0 %v2333
      %v2395 = vpop.f32.mrb[0].mxu0
      %v2396 = vadd.f32 0.0, %v2395
      %v2397 = vpop.f32.mrb[0].mxu0
      %v2398 = vpop.f32.mrb[0].mxu0
      %v2399 = vadd.f32 0.0, %v2398
      %v2400 = vpop.f32.mrb[0].mxu0
      %2401 = vmatprep.mubr.bf16.mxu0 0
      %2402 = vmatmul.mubr.bf16.gmra.mrb[0].mxu0 %v2336
      %v2403 = vpop.f32.mrb[0].mxu0
      %v2404 = vadd.f32 0.0, %v2403
      %v2405 = vpop.f32.mrb[0].mxu0
      %v2406 = vpop.f32.mrb[0].mxu0
      %v2407 = vadd.f32 0.0, %v2406
      %v2408 = vpop.f32.mrb[0].mxu0
      %2409 = vmatprep.mubr.bf16.mxu0 0
      %2410 = vmatmul.mubr.bf16.gmra.mrb[0].mxu0 %v2339
      %v2411 = vpop.f32.mrb[0].mxu0
      %v2412 = vadd.f32 0.0, %v2411
      %v2413 = vpop.f32.mrb[0].mxu0
      %v2414 = vpop.f32.mrb[0].mxu0
      %v2415 = vadd.f32 0.0, %v2414
      %v2416 = vpop.f32.mrb[0].mxu0
      %2417 = vdwg.mxu0
      %v2419 = vsel %vm1972, %v1928, 0
      %v2422 = vsel %vm1972, %v1929, 0
      %v2425 = vsel %vm1972, %v1930, 0
      %v2428 = vsel %vm1972, %v1931, 0
      %v2431 = vsel %vm1972, %v1960, 0
      %v2434 = vsel %vm1972, %v1961, 0
      %v2437 = vsel %vm1972, %v1962, 0
      %v2440 = vsel %vm1972, %v1963, 0
      %2442 = vmatprep.subr.bf16.mxu0 0
      %2443 = vmatpush1.bf16.xpose.msra.mxu0 %v2431
      %2444 = vmatprep.subr.bf16.mxu0 0
      %2445 = vmatpush1.bf16.xpose.msra.mxu0 %v2434
      %2446 = vmatprep.subr.bf16.mxu0 0
      %2447 = vmatpush1.bf16.xpose.msra.mxu0 %v2437
      %2448 = vmatprep.subr.bf16.mxu0 0
      %2449 = vmatpush1.bf16.xpose.msra.mxu0 %v2440
      %2450 = vmatprep.subr.bf16.mxu0 0
      %2451 = vmatpush1.bf16.xpose.msra.mxu0 0
      %2452 = vmatprep.subr.bf16.mxu0 0
      %2453 = vmatpush1.bf16.xpose.msra.mxu0 0
      %2454 = vmatprep.subr.bf16.mxu0 0
      %2455 = vmatpush1.bf16.xpose.msra.mxu0 0
      %2456 = vmatprep.subr.bf16.mxu0 0
      %2457 = vmatpush1.bf16.xpose.msra.mxu0 0
      %2458 = vmatprep.subr.bf16.mxu0 0
      %2459 = vmatpush1.bf16.xpose.msra.mxu0 0
      %2460 = vmatprep.subr.bf16.mxu0 0
      %2461 = vmatpush1.bf16.xpose.msra.mxu0 0
      %2462 = vmatprep.subr.bf16.mxu0 0
      %2463 = vmatpush1.bf16.xpose.msra.mxu0 0
      %2464 = vmatprep.subr.bf16.mxu0 0
      %2465 = vmatpush1.bf16.xpose.msra.mxu0 0
      %2466 = vmatprep.subr.bf16.mxu0 0
      %2467 = vmatpush1.bf16.xpose.msra.mxu0 0
      %2468 = vmatprep.subr.bf16.mxu0 0
      %2469 = vmatpush1.bf16.xpose.msra.mxu0 0
      %2470 = vmatprep.subr.bf16.mxu0 0
      %2471 = vmatpush1.bf16.xpose.msra.mxu0 0
      %2472 = vmatprep.subr.bf16.mxu0 0
      %2473 = vmatpush1.bf16.xpose.msra.mxu0 0
      %2474 = vmatprep.mubr.bf16.mxu0 0
      %2475 = vmatmul.mubr.bf16.gmra.mrb[0].mxu0 %v2419
      %v2476 = vpop.f32.mrb[0].mxu0
      %v2477 = vadd.f32 0.0, %v2476
      %v2478 = vpop.f32.mrb[0].mxu0
      %v2479 = vpop.f32.mrb[0].mxu0
      %v2480 = vadd.f32 0.0, %v2479
      %v2481 = vpop.f32.mrb[0].mxu0
      %2482 = vmatprep.mubr.bf16.mxu0 0
      %2483 = vmatmul.mubr.bf16.gmra.mrb[0].mxu0 %v2422
      %v2484 = vpop.f32.mrb[0].mxu0
      %v2485 = vadd.f32 0.0, %v2484
      %v2486 = vpop.f32.mrb[0].mxu0
      %v2487 = vpop.f32.mrb[0].mxu0
      %v2488 = vadd.f32 0.0, %v2487
      %v2489 = vpop.f32.mrb[0].mxu0
      %2490 = vmatprep.mubr.bf16.mxu0 0
      %2491 = vmatmul.mubr.bf16.gmra.mrb[0].mxu0 %v2425
      %v2492 = vpop.f32.mrb[0].mxu0
      %v2493 = vadd.f32 0.0, %v2492
      %v2494 = vpop.f32.mrb[0].mxu0
      %v2495 = vpop.f32.mrb[0].mxu0
      %v2496 = vadd.f32 0.0, %v2495
      %v2497 = vpop.f32.mrb[0].mxu0
      %2498 = vmatprep.mubr.bf16.mxu0 0
      %2499 = vmatmul.mubr.bf16.gmra.mrb[0].mxu0 %v2428
      %v2500 = vpop.f32.mrb[0].mxu0
      %v2501 = vadd.f32 0.0, %v2500
      %v2502 = vpop.f32.mrb[0].mxu0
      %v2503 = vpop.f32.mrb[0].mxu0
      %v2504 = vadd.f32 0.0, %v2503
      %v2505 = vpop.f32.mrb[0].mxu0
      %2506 = vdwg.mxu0
      %v2508 = vsel %vm1972, %v1932, 0
      %v2511 = vsel %vm1972, %v1933, 0
      %v2514 = vsel %vm1972, %v1934, 0
      %v2517 = vsel %vm1972, %v1935, 0
      %v2520 = vsel %vm1972, %v1964, 0
      %v2523 = vsel %vm1972, %v1965, 0
      %v2526 = vsel %vm1972, %v1966, 0
      %v2529 = vsel %vm1972, %v1967, 0
      %2531 = vmatprep.subr.bf16.mxu0 0
      %2532 = vmatpush1.bf16.xpose.msra.mxu0 %v2520
      %2533 = vmatprep.subr.bf16.mxu0 0
      %2534 = vmatpush1.bf16.xpose.msra.mxu0 %v2523
      %2535 = vmatprep.subr.bf16.mxu0 0
      %2536 = vmatpush1.bf16.xpose.msra.mxu0 %v2526
      %2537 = vmatprep.subr.bf16.mxu0 0
      %2538 = vmatpush1.bf16.xpose.msra.mxu0 %v2529
      %2539 = vmatprep.subr.bf16.mxu0 0
      %2540 = vmatpush1.bf16.xpose.msra.mxu0 0
      %2541 = vmatprep.subr.bf16.mxu0 0
      %2542 = vmatpush1.bf16.xpose.msra.mxu0 0
      %2543 = vmatprep.subr.bf16.mxu0 0
      %2544 = vmatpush1.bf16.xpose.msra.mxu0 0
      %2545 = vmatprep.subr.bf16.mxu0 0
      %2546 = vmatpush1.bf16.xpose.msra.mxu0 0
      %2547 = vmatprep.subr.bf16.mxu0 0
      %2548 = vmatpush1.bf16.xpose.msra.mxu0 0
      %2549 = vmatprep.subr.bf16.mxu0 0
      %2550 = vmatpush1.bf16.xpose.msra.mxu0 0
      %2551 = vmatprep.subr.bf16.mxu0 0
      %2552 = vmatpush1.bf16.xpose.msra.mxu0 0
      %2553 = vmatprep.subr.bf16.mxu0 0
      %2554 = vmatpush1.bf16.xpose.msra.mxu0 0
      %2555 = vmatprep.subr.bf16.mxu0 0
      %2556 = vmatpush1.bf16.xpose.msra.mxu0 0
      %2557 = vmatprep.subr.bf16.mxu0 0
      %2558 = vmatpush1.bf16.xpose.msra.mxu0 0
      %2559 = vmatprep.subr.bf16.mxu0 0
      %2560 = vmatpush1.bf16.xpose.msra.mxu0 0
      %2561 = vmatprep.subr.bf16.mxu0 0
      %2562 = vmatpush1.bf16.xpose.msra.mxu0 0
      %2563 = vmatprep.mubr.bf16.mxu0 0
      %2564 = vmatmul.mubr.bf16.gmra.mrb[0].mxu0 %v2508
      %v2565 = vpop.f32.mrb[0].mxu0
      %v2566 = vadd.f32 0.0, %v2565
      %v2567 = vpop.f32.mrb[0].mxu0
      %v2568 = vpop.f32.mrb[0].mxu0
      %v2569 = vadd.f32 0.0, %v2568
      %v2570 = vpop.f32.mrb[0].mxu0
      %2571 = vmatprep.mubr.bf16.mxu0 0
      %2572 = vmatmul.mubr.bf16.gmra.mrb[0].mxu0 %v2511
      %v2573 = vpop.f32.mrb[0].mxu0
      %v2574 = vadd.f32 0.0, %v2573
      %v2575 = vpop.f32.mrb[0].mxu0
      %v2576 = vpop.f32.mrb[0].mxu0
      %v2577 = vadd.f32 0.0, %v2576
      %v2578 = vpop.f32.mrb[0].mxu0
      %2579 = vmatprep.mubr.bf16.mxu0 0
      %2580 = vmatmul.mubr.bf16.gmra.mrb[0].mxu0 %v2514
      %v2581 = vpop.f32.mrb[0].mxu0
      %v2582 = vadd.f32 0.0, %v2581
      %v2583 = vpop.f32.mrb[0].mxu0
      %v2584 = vpop.f32.mrb[0].mxu0
      %v2585 = vadd.f32 0.0, %v2584
      %v2586 = vpop.f32.mrb[0].mxu0
      %2587 = vmatprep.mubr.bf16.mxu0 0
      %2588 = vmatmul.mubr.bf16.gmra.mrb[0].mxu0 %v2517
      %v2589 = vpop.f32.mrb[0].mxu0
      %v2590 = vadd.f32 0.0, %v2589
      %v2591 = vpop.f32.mrb[0].mxu0
      %v2592 = vpop.f32.mrb[0].mxu0
      %v2593 = vadd.f32 0.0, %v2592
      %v2594 = vpop.f32.mrb[0].mxu0
      %2595 = vdwg.mxu0
      %v2597 = vsel %vm1972, %v1936, 0
      %v2600 = vsel %vm1972, %v1937, 0
      %v2603 = vsel %vm1972, %v1938, 0
      %v2606 = vsel %vm1972, %v1939, 0
      %v2609 = vsel %vm1972, %v1968, 0
      %v2612 = vsel %vm1972, %v1969, 0
      %v2615 = vsel %vm1972, %v1970, 0
      %v2618 = vsel %vm1972, %v1971, 0
      %2620 = vmatprep.subr.bf16.mxu0 0
      %2621 = vmatpush1.bf16.xpose.msra.mxu0 %v2609
      %2622 = vmatprep.subr.bf16.mxu0 0
      %2623 = vmatpush1.bf16.xpose.msra.mxu0 %v2612
      %2624 = vmatprep.subr.bf16.mxu0 0
      %2625 = vmatpush1.bf16.xpose.msra.mxu0 %v2615
      %2626 = vmatprep.subr.bf16.mxu0 0
      %2627 = vmatpush1.bf16.xpose.msra.mxu0 %v2618
      %2628 = vmatprep.subr.bf16.mxu0 0
      %2629 = vmatpush1.bf16.xpose.msra.mxu0 0
      %2630 = vmatprep.subr.bf16.mxu0 0
      %2631 = vmatpush1.bf16.xpose.msra.mxu0 0
      %2632 = vmatprep.subr.bf16.mxu0 0
      %2633 = vmatpush1.bf16.xpose.msra.mxu0 0
      %2634 = vmatprep.subr.bf16.mxu0 0
      %2635 = vmatpush1.bf16.xpose.msra.mxu0 0
      %2636 = vmatprep.subr.bf16.mxu0 0
      %2637 = vmatpush1.bf16.xpose.msra.mxu0 0
      %2638 = vmatprep.subr.bf16.mxu0 0
      %2639 = vmatpush1.bf16.xpose.msra.mxu0 0
      %2640 = vmatprep.subr.bf16.mxu0 0
      %2641 = vmatpush1.bf16.xpose.msra.mxu0 0
      %2642 = vmatprep.subr.bf16.mxu0 0
      %2643 = vmatpush1.bf16.xpose.msra.mxu0 0
      %2644 = vmatprep.subr.bf16.mxu0 0
      %2645 = vmatpush1.bf16.xpose.msra.mxu0 0
      %2646 = vmatprep.subr.bf16.mxu0 0
      %2647 = vmatpush1.bf16.xpose.msra.mxu0 0
      %2648 = vmatprep.subr.bf16.mxu0 0
      %2649 = vmatpush1.bf16.xpose.msra.mxu0 0
      %2650 = vmatprep.subr.bf16.mxu0 0
      %2651 = vmatpush1.bf16.xpose.msra.mxu0 0
      %2652 = vmatprep.mubr.bf16.mxu0 0
      %2653 = vmatmul.mubr.bf16.gmra.mrb[0].mxu0 %v2597
      %v2654 = vpop.f32.mrb[0].mxu0
      %v2655 = vadd.f32 0.0, %v2654
      %v2656 = vpop.f32.mrb[0].mxu0
      %v2657 = vpop.f32.mrb[0].mxu0
      %v2658 = vadd.f32 0.0, %v2657
      %v2659 = vpop.f32.mrb[0].mxu0
      %2660 = vmatprep.mubr.bf16.mxu0 0
      %2661 = vmatmul.mubr.bf16.gmra.mrb[0].mxu0 %v2600
      %v2662 = vpop.f32.mrb[0].mxu0
      %v2663 = vadd.f32 0.0, %v2662
      %v2664 = vpop.f32.mrb[0].mxu0
      %v2665 = vpop.f32.mrb[0].mxu0
      %v2666 = vadd.f32 0.0, %v2665
      %v2667 = vpop.f32.mrb[0].mxu0
      %2668 = vmatprep.mubr.bf16.mxu0 0
      %2669 = vmatmul.mubr.bf16.gmra.mrb[0].mxu0 %v2603
      %v2670 = vpop.f32.mrb[0].mxu0
      %v2671 = vadd.f32 0.0, %v2670
      %v2672 = vpop.f32.mrb[0].mxu0
      %v2673 = vpop.f32.mrb[0].mxu0
      %v2674 = vadd.f32 0.0, %v2673
      %v2675 = vpop.f32.mrb[0].mxu0
      %2676 = vmatprep.mubr.bf16.mxu0 0
      %2677 = vmatmul.mubr.bf16.gmra.mrb[0].mxu0 %v2606
      %v2678 = vpop.f32.mrb[0].mxu0
      %v2679 = vadd.f32 0.0, %v2678
      %v2680 = vpop.f32.mrb[0].mxu0
      %v2681 = vpop.f32.mrb[0].mxu0
      %v2682 = vadd.f32 0.0, %v2681
      %v2683 = vpop.f32.mrb[0].mxu0
      %2684 = vdwg.mxu0
      %v2685 = vld [vmem:[%s7] sm:$0xff]
      %v2686 = vld [vmem:[%s7 + $0x8] sm:$0xff]
      %v2687 = vld [vmem:[%s7 + $0x10] sm:$0xff]
      %v2688 = vld [vmem:[%s7 + $0x18] sm:$0xff]
      %v2689 = vld [vmem:[%s7 + $0x20] sm:$0xff]
      %v2690 = vld [vmem:[%s7 + $0x28] sm:$0xff]
      %v2691 = vld [vmem:[%s7 + $0x30] sm:$0xff]
      %v2692 = vld [vmem:[%s7 + $0x38] sm:$0xff]
      %v2693 = vld [vmem:[%s7 + $0x40] sm:$0xff]
      %v2694 = vld [vmem:[%s7 + $0x48] sm:$0xff]
      %v2695 = vld [vmem:[%s7 + $0x50] sm:$0xff]
      %v2696 = vld [vmem:[%s7 + $0x58] sm:$0xff]
      %v2697 = vld [vmem:[%s7 + $0x60] sm:$0xff]
      %v2698 = vld [vmem:[%s7 + $0x68] sm:$0xff]
      %v2699 = vld [vmem:[%s7 + $0x70] sm:$0xff]
      %v2700 = vld [vmem:[%s7 + $0x78] sm:$0xff]
      %v2701 = vld [vmem:[%s7 + $0x80] sm:$0xff]
      %v2702 = vld [vmem:[%s7 + $0x88] sm:$0xff]
      %v2703 = vld [vmem:[%s7 + $0x90] sm:$0xff]
      %v2704 = vld [vmem:[%s7 + $0x98] sm:$0xff]
      %v2705 = vld [vmem:[%s7 + $0xa0] sm:$0xff]
      %v2706 = vld [vmem:[%s7 + $0xa8] sm:$0xff]
      %v2707 = vld [vmem:[%s7 + $0xb0] sm:$0xff]
      %v2708 = vld [vmem:[%s7 + $0xb8] sm:$0xff]
      %v2709 = vld [vmem:[%s7 + $0xc0] sm:$0xff]
      %v2710 = vld [vmem:[%s7 + $0xc8] sm:$0xff]
      %v2711 = vld [vmem:[%s7 + $0xd0] sm:$0xff]
      %v2712 = vld [vmem:[%s7 + $0xd8] sm:$0xff]
      %v2713 = vld [vmem:[%s7 + $0xe0] sm:$0xff]
      %v2714 = vld [vmem:[%s7 + $0xe8] sm:$0xff]
      %v2715 = vld [vmem:[%s7 + $0xf0] sm:$0xff]
      %v2716 = vld [vmem:[%s7 + $0xf8] sm:$0xff]
      %v2717 = vadd.f32 %v2032, %v2685
      %v2718 = vadd.f32 %v2035, %v2686
      %v2719 = vadd.f32 %v2040, %v2687
      %v2720 = vadd.f32 %v2043, %v2688
      %v2721 = vadd.f32 %v2048, %v2689
      %v2722 = vadd.f32 %v2051, %v2690
      %v2723 = vadd.f32 %v2056, %v2691
      %v2724 = vadd.f32 %v2059, %v2692
      %v2725 = vadd.f32 %v2121, %v2685
      %v2726 = vadd.f32 %v2124, %v2686
      %v2727 = vadd.f32 %v2129, %v2687
      %v2728 = vadd.f32 %v2132, %v2688
      %v2729 = vadd.f32 %v2137, %v2689
      %v2730 = vadd.f32 %v2140, %v2690
      %v2731 = vadd.f32 %v2145, %v2691
      %v2732 = vadd.f32 %v2148, %v2692
      %v2733 = vadd.f32 %v2210, %v2693
      %v2734 = vadd.f32 %v2213, %v2694
      %v2735 = vadd.f32 %v2218, %v2695
      %v2736 = vadd.f32 %v2221, %v2696
      %v2737 = vadd.f32 %v2226, %v2697
      %v2738 = vadd.f32 %v2229, %v2698
      %v2739 = vadd.f32 %v2234, %v2699
      %v2740 = vadd.f32 %v2237, %v2700
      %v2741 = vadd.f32 %v2299, %v2693
      %v2742 = vadd.f32 %v2302, %v2694
      %v2743 = vadd.f32 %v2307, %v2695
      %v2744 = vadd.f32 %v2310, %v2696
      %v2745 = vadd.f32 %v2315, %v2697
      %v2746 = vadd.f32 %v2318, %v2698
      %v2747 = vadd.f32 %v2323, %v2699
      %v2748 = vadd.f32 %v2326, %v2700
      %v2749 = vadd.f32 %v2388, %v2701
      %v2750 = vadd.f32 %v2391, %v2702
      %v2751 = vadd.f32 %v2396, %v2703
      %v2752 = vadd.f32 %v2399, %v2704
      %v2753 = vadd.f32 %v2404, %v2705
      %v2754 = vadd.f32 %v2407, %v2706
      %v2755 = vadd.f32 %v2412, %v2707
      %v2756 = vadd.f32 %v2415, %v2708
      %v2757 = vadd.f32 %v2477, %v2701
      %v2758 = vadd.f32 %v2480, %v2702
      %v2759 = vadd.f32 %v2485, %v2703
      %v2760 = vadd.f32 %v2488, %v2704
      %v2761 = vadd.f32 %v2493, %v2705
      %v2762 = vadd.f32 %v2496, %v2706
      %v2763 = vadd.f32 %v2501, %v2707
      %v2764 = vadd.f32 %v2504, %v2708
      %v2765 = vadd.f32 %v2566, %v2709
      %v2766 = vadd.f32 %v2569, %v2710
      %v2767 = vadd.f32 %v2574, %v2711
      %v2768 = vadd.f32 %v2577, %v2712
      %v2769 = vadd.f32 %v2582, %v2713
      %v2770 = vadd.f32 %v2585, %v2714
      %v2771 = vadd.f32 %v2590, %v2715
      %v2772 = vadd.f32 %v2593, %v2716
      %v2773 = vadd.f32 %v2655, %v2709
      %v2774 = vadd.f32 %v2658, %v2710
      %v2775 = vadd.f32 %v2663, %v2711
      %v2776 = vadd.f32 %v2666, %v2712
      %v2777 = vadd.f32 %v2671, %v2713
      %v2778 = vadd.f32 %v2674, %v2714
      %v2779 = vadd.f32 %v2679, %v2715
      %v2780 = vadd.f32 %v2682, %v2716
      %vm2781 = vcmask 523264
      %v2782 = vsel %vm2781, %v2717, -inf
      %2783 = vmax.xlane.f32.xlu0 %v2782
      %v2784 = vpop.xlane.xlu0 %2783
      %v2785 = vsel %vm2781, %v2718, -inf
      %2786 = vmax.xlane.f32.xlu0 %v2785
      %v2787 = vpop.xlane.xlu0 %2786
      %v2788 = vsel %vm2781, %v2719, -inf
      %2789 = vmax.xlane.f32.xlu0 %v2788
      %v2790 = vpop.xlane.xlu0 %2789
      %v2791 = vsel %vm2781, %v2720, -inf
      %2792 = vmax.xlane.f32.xlu0 %v2791
      %v2793 = vpop.xlane.xlu0 %2792
      %v2794 = vsel %vm2781, %v2721, -inf
      %2795 = vmax.xlane.f32.xlu0 %v2794
      %v2796 = vpop.xlane.xlu0 %2795
      %v2797 = vsel %vm2781, %v2722, -inf
      %2798 = vmax.xlane.f32.xlu0 %v2797
      %v2799 = vpop.xlane.xlu0 %2798
      %v2800 = vsel %vm2781, %v2723, -inf
      %2801 = vmax.xlane.f32.xlu0 %v2800
      %v2802 = vpop.xlane.xlu0 %2801
      %v2803 = vsel %vm2781, %v2724, -inf
      %2804 = vmax.xlane.f32.xlu0 %v2803
      %v2805 = vpop.xlane.xlu0 %2804
      %v2806 = vsel %vm2781, %v2725, -inf
      %2807 = vmax.xlane.f32.xlu0 %v2806
      %v2808 = vpop.xlane.xlu0 %2807
      %v2809 = vsel %vm2781, %v2726, -inf
      %2810 = vmax.xlane.f32.xlu0 %v2809
      %v2811 = vpop.xlane.xlu0 %2810
      %v2812 = vsel %vm2781, %v2727, -inf
      %2813 = vmax.xlane.f32.xlu0 %v2812
      %v2814 = vpop.xlane.xlu0 %2813
      %v2815 = vsel %vm2781, %v2728, -inf
      %2816 = vmax.xlane.f32.xlu0 %v2815
      %v2817 = vpop.xlane.xlu0 %2816
      %v2818 = vsel %vm2781, %v2729, -inf
      %2819 = vmax.xlane.f32.xlu0 %v2818
      %v2820 = vpop.xlane.xlu0 %2819
      %v2821 = vsel %vm2781, %v2730, -inf
      %2822 = vmax.xlane.f32.xlu0 %v2821
      %v2823 = vpop.xlane.xlu0 %2822
      %v2824 = vsel %vm2781, %v2731, -inf
      %2825 = vmax.xlane.f32.xlu0 %v2824
      %v2826 = vpop.xlane.xlu0 %2825
      %v2827 = vsel %vm2781, %v2732, -inf
      %2828 = vmax.xlane.f32.xlu0 %v2827
      %v2829 = vpop.xlane.xlu0 %2828
      %v2830 = vsel %vm2781, %v2733, -inf
      %2831 = vmax.xlane.f32.xlu0 %v2830
      %v2832 = vpop.xlane.xlu0 %2831
      %v2833 = vsel %vm2781, %v2734, -inf
      %2834 = vmax.xlane.f32.xlu0 %v2833
      %v2835 = vpop.xlane.xlu0 %2834
      %v2836 = vsel %vm2781, %v2735, -inf
      %2837 = vmax.xlane.f32.xlu0 %v2836
      %v2838 = vpop.xlane.xlu0 %2837
      %v2839 = vsel %vm2781, %v2736, -inf
      %2840 = vmax.xlane.f32.xlu0 %v2839
      %v2841 = vpop.xlane.xlu0 %2840
      %v2842 = vsel %vm2781, %v2737, -inf
      %2843 = vmax.xlane.f32.xlu0 %v2842
      %v2844 = vpop.xlane.xlu0 %2843
      %v2845 = vsel %vm2781, %v2738, -inf
      %2846 = vmax.xlane.f32.xlu0 %v2845
      %v2847 = vpop.xlane.xlu0 %2846
      %v2848 = vsel %vm2781, %v2739, -inf
      %2849 = vmax.xlane.f32.xlu0 %v2848
      %v2850 = vpop.xlane.xlu0 %2849
      %v2851 = vsel %vm2781, %v2740, -inf
      %2852 = vmax.xlane.f32.xlu0 %v2851
      %v2853 = vpop.xlane.xlu0 %2852
      %v2854 = vsel %vm2781, %v2741, -inf
      %2855 = vmax.xlane.f32.xlu0 %v2854
      %v2856 = vpop.xlane.xlu0 %2855
      %v2857 = vsel %vm2781, %v2742, -inf
      %2858 = vmax.xlane.f32.xlu0 %v2857
      %v2859 = vpop.xlane.xlu0 %2858
      %v2860 = vsel %vm2781, %v2743, -inf
      %2861 = vmax.xlane.f32.xlu0 %v2860
      %v2862 = vpop.xlane.xlu0 %2861
      %v2863 = vsel %vm2781, %v2744, -inf
      %2864 = vmax.xlane.f32.xlu0 %v2863
      %v2865 = vpop.xlane.xlu0 %2864
      %v2866 = vsel %vm2781, %v2745, -inf
      %2867 = vmax.xlane.f32.xlu0 %v2866
      %v2868 = vpop.xlane.xlu0 %2867
      %v2869 = vsel %vm2781, %v2746, -inf
      %2870 = vmax.xlane.f32.xlu0 %v2869
      %v2871 = vpop.xlane.xlu0 %2870
      %v2872 = vsel %vm2781, %v2747, -inf
      %2873 = vmax.xlane.f32.xlu0 %v2872
      %v2874 = vpop.xlane.xlu0 %2873
      %v2875 = vsel %vm2781, %v2748, -inf
      %2876 = vmax.xlane.f32.xlu0 %v2875
      %v2877 = vpop.xlane.xlu0 %2876
      %v2878 = vsel %vm2781, %v2749, -inf
      %2879 = vmax.xlane.f32.xlu0 %v2878
      %v2880 = vpop.xlane.xlu0 %2879
      %v2881 = vsel %vm2781, %v2750, -inf
      %2882 = vmax.xlane.f32.xlu0 %v2881
      %v2883 = vpop.xlane.xlu0 %2882
      %v2884 = vsel %vm2781, %v2751, -inf
      %2885 = vmax.xlane.f32.xlu0 %v2884
      %v2886 = vpop.xlane.xlu0 %2885
      %v2887 = vsel %vm2781, %v2752, -inf
      %2888 = vmax.xlane.f32.xlu0 %v2887
      %v2889 = vpop.xlane.xlu0 %2888
      %v2890 = vsel %vm2781, %v2753, -inf
      %2891 = vmax.xlane.f32.xlu0 %v2890
      %v2892 = vpop.xlane.xlu0 %2891
      %v2893 = vsel %vm2781, %v2754, -inf
      %2894 = vmax.xlane.f32.xlu0 %v2893
      %v2895 = vpop.xlane.xlu0 %2894
      %v2896 = vsel %vm2781, %v2755, -inf
      %2897 = vmax.xlane.f32.xlu0 %v2896
      %v2898 = vpop.xlane.xlu0 %2897
      %v2899 = vsel %vm2781, %v2756, -inf
      %2900 = vmax.xlane.f32.xlu0 %v2899
      %v2901 = vpop.xlane.xlu0 %2900
      %v2902 = vsel %vm2781, %v2757, -inf
      %2903 = vmax.xlane.f32.xlu0 %v2902
      %v2904 = vpop.xlane.xlu0 %2903
      %v2905 = vsel %vm2781, %v2758, -inf
      %2906 = vmax.xlane.f32.xlu0 %v2905
      %v2907 = vpop.xlane.xlu0 %2906
      %v2908 = vsel %vm2781, %v2759, -inf
      %2909 = vmax.xlane.f32.xlu0 %v2908
      %v2910 = vpop.xlane.xlu0 %2909
      %v2911 = vsel %vm2781, %v2760, -inf
      %2912 = vmax.xlane.f32.xlu0 %v2911
      %v2913 = vpop.xlane.xlu0 %2912
      %v2914 = vsel %vm2781, %v2761, -inf
      %2915 = vmax.xlane.f32.xlu0 %v2914
      %v2916 = vpop.xlane.xlu0 %2915
      %v2917 = vsel %vm2781, %v2762, -inf
      %2918 = vmax.xlane.f32.xlu0 %v2917
      %v2919 = vpop.xlane.xlu0 %2918
      %v2920 = vsel %vm2781, %v2763, -inf
      %2921 = vmax.xlane.f32.xlu0 %v2920
      %v2922 = vpop.xlane.xlu0 %2921
      %v2923 = vsel %vm2781, %v2764, -inf
      %2924 = vmax.xlane.f32.xlu0 %v2923
      %v2925 = vpop.xlane.xlu0 %2924
      %v2926 = vsel %vm2781, %v2765, -inf
      %2927 = vmax.xlane.f32.xlu0 %v2926
      %v2928 = vpop.xlane.xlu0 %2927
      %v2929 = vsel %vm2781, %v2766, -inf
      %2930 = vmax.xlane.f32.xlu0 %v2929
      %v2931 = vpop.xlane.xlu0 %2930
      %v2932 = vsel %vm2781, %v2767, -inf
      %2933 = vmax.xlane.f32.xlu0 %v2932
      %v2934 = vpop.xlane.xlu0 %2933
      %v2935 = vsel %vm2781, %v2768, -inf
      %2936 = vmax.xlane.f32.xlu0 %v2935
      %v2937 = vpop.xlane.xlu0 %2936
      %v2938 = vsel %vm2781, %v2769, -inf
      %2939 = vmax.xlane.f32.xlu0 %v2938
      %v2940 = vpop.xlane.xlu0 %2939
      %v2941 = vsel %vm2781, %v2770, -inf
      %2942 = vmax.xlane.f32.xlu0 %v2941
      %v2943 = vpop.xlane.xlu0 %2942
      %v2944 = vsel %vm2781, %v2771, -inf
      %2945 = vmax.xlane.f32.xlu0 %v2944
      %v2946 = vpop.xlane.xlu0 %2945
      %v2947 = vsel %vm2781, %v2772, -inf
      %2948 = vmax.xlane.f32.xlu0 %v2947
      %v2949 = vpop.xlane.xlu0 %2948
      %v2950 = vsel %vm2781, %v2773, -inf
      %2951 = vmax.xlane.f32.xlu0 %v2950
      %v2952 = vpop.xlane.xlu0 %2951
      %v2953 = vsel %vm2781, %v2774, -inf
      %2954 = vmax.xlane.f32.xlu0 %v2953
      %v2955 = vpop.xlane.xlu0 %2954
      %v2956 = vsel %vm2781, %v2775, -inf
      %2957 = vmax.xlane.f32.xlu0 %v2956
      %v2958 = vpop.xlane.xlu0 %2957
      %v2959 = vsel %vm2781, %v2776, -inf
      %2960 = vmax.xlane.f32.xlu0 %v2959
      %v2961 = vpop.xlane.xlu0 %2960
      %v2962 = vsel %vm2781, %v2777, -inf
      %2963 = vmax.xlane.f32.xlu0 %v2962
      %v2964 = vpop.xlane.xlu0 %2963
      %v2965 = vsel %vm2781, %v2778, -inf
      %2966 = vmax.xlane.f32.xlu0 %v2965
      %v2967 = vpop.xlane.xlu0 %2966
      %v2968 = vsel %vm2781, %v2779, -inf
      %2969 = vmax.xlane.f32.xlu0 %v2968
      %v2970 = vpop.xlane.xlu0 %2969
      %v2971 = vsel %vm2781, %v2780, -inf
      %2972 = vmax.xlane.f32.xlu0 %v2971
      %v2973 = vpop.xlane.xlu0 %2972
      %v2974 = vsub.f32 %v2717, %v2784
      %v2975 = vsub.f32 %v2718, %v2787
      %v2976 = vsub.f32 %v2719, %v2790
      %v2977 = vsub.f32 %v2720, %v2793
      %v2978 = vsub.f32 %v2721, %v2796
      %v2979 = vsub.f32 %v2722, %v2799
      %v2980 = vsub.f32 %v2723, %v2802
      %v2981 = vsub.f32 %v2724, %v2805
      %v2982 = vsub.f32 %v2725, %v2808
      %v2983 = vsub.f32 %v2726, %v2811
      %v2984 = vsub.f32 %v2727, %v2814
      %v2985 = vsub.f32 %v2728, %v2817
      %v2986 = vsub.f32 %v2729, %v2820
      %v2987 = vsub.f32 %v2730, %v2823
      %v2988 = vsub.f32 %v2731, %v2826
      %v2989 = vsub.f32 %v2732, %v2829
      %v2990 = vsub.f32 %v2733, %v2832
      %v2991 = vsub.f32 %v2734, %v2835
      %v2992 = vsub.f32 %v2735, %v2838
      %v2993 = vsub.f32 %v2736, %v2841
      %v2994 = vsub.f32 %v2737, %v2844
      %v2995 = vsub.f32 %v2738, %v2847
      %v2996 = vsub.f32 %v2739, %v2850
      %v2997 = vsub.f32 %v2740, %v2853
      %v2998 = vsub.f32 %v2741, %v2856
      %v2999 = vsub.f32 %v2742, %v2859
      %v3000 = vsub.f32 %v2743, %v2862
      %v3001 = vsub.f32 %v2744, %v2865
      %v3002 = vsub.f32 %v2745, %v2868
      %v3003 = vsub.f32 %v2746, %v2871
      %v3004 = vsub.f32 %v2747, %v2874
      %v3005 = vsub.f32 %v2748, %v2877
      %v3006 = vsub.f32 %v2749, %v2880
      %v3007 = vsub.f32 %v2750, %v2883
      %v3008 = vsub.f32 %v2751, %v2886
      %v3009 = vsub.f32 %v2752, %v2889
      %v3010 = vsub.f32 %v2753, %v2892
      %v3011 = vsub.f32 %v2754, %v2895
      %v3012 = vsub.f32 %v2755, %v2898
      %v3013 = vsub.f32 %v2756, %v2901
      %v3014 = vsub.f32 %v2757, %v2904
      %v3015 = vsub.f32 %v2758, %v2907
      %v3016 = vsub.f32 %v2759, %v2910
      %v3017 = vsub.f32 %v2760, %v2913
      %v3018 = vsub.f32 %v2761, %v2916
      %v3019 = vsub.f32 %v2762, %v2919
      %v3020 = vsub.f32 %v2763, %v2922
      %v3021 = vsub.f32 %v2764, %v2925
      %v3022 = vsub.f32 %v2765, %v2928
      %v3023 = vsub.f32 %v2766, %v2931
      %v3024 = vsub.f32 %v2767, %v2934
      %v3025 = vsub.f32 %v2768, %v2937
      %v3026 = vsub.f32 %v2769, %v2940
      %v3027 = vsub.f32 %v2770, %v2943
      %v3028 = vsub.f32 %v2771, %v2946
      %v3029 = vsub.f32 %v2772, %v2949
      %v3030 = vsub.f32 %v2773, %v2952
      %v3031 = vsub.f32 %v2774, %v2955
      %v3032 = vsub.f32 %v2775, %v2958
      %v3033 = vsub.f32 %v2776, %v2961
      %v3034 = vsub.f32 %v2777, %v2964
      %v3035 = vsub.f32 %v2778, %v2967
      %v3036 = vsub.f32 %v2779, %v2970
      %v3037 = vsub.f32 %v2780, %v2973
      %v3038 = vmul.f32 %v2974, 1.442695
      %v3039 = vpow.pop %v3038
      %v3040 = vmul.f32 %v2975, 1.442695
      %v3041 = vpow.pop %v3040
      %v3042 = vmul.f32 %v2976, 1.442695
      %v3043 = vpow.pop %v3042
      %v3044 = vmul.f32 %v2977, 1.442695
      %v3045 = vpow.pop %v3044
      %v3046 = vmul.f32 %v2978, 1.442695
      %v3047 = vpow.pop %v3046
      %v3048 = vmul.f32 %v2979, 1.442695
      %v3049 = vpow.pop %v3048
      %v3050 = vmul.f32 %v2980, 1.442695
      %v3051 = vpow.pop %v3050
      %v3052 = vmul.f32 %v2981, 1.442695
      %v3053 = vpow.pop %v3052
      %v3054 = vmul.f32 %v2982, 1.442695
      %v3055 = vpow.pop %v3054
      %v3056 = vmul.f32 %v2983, 1.442695
      %v3057 = vpow.pop %v3056
      %v3058 = vmul.f32 %v2984, 1.442695
      %v3059 = vpow.pop %v3058
      %v3060 = vmul.f32 %v2985, 1.442695
      %v3061 = vpow.pop %v3060
      %v3062 = vmul.f32 %v2986, 1.442695
      %v3063 = vpow.pop %v3062
      %v3064 = vmul.f32 %v2987, 1.442695
      %v3065 = vpow.pop %v3064
      %v3066 = vmul.f32 %v2988, 1.442695
      %v3067 = vpow.pop %v3066
      %v3068 = vmul.f32 %v2989, 1.442695
      %v3069 = vpow.pop %v3068
      %v3070 = vmul.f32 %v2990, 1.442695
      %v3071 = vpow.pop %v3070
      %v3072 = vmul.f32 %v2991, 1.442695
      %v3073 = vpow.pop %v3072
      %v3074 = vmul.f32 %v2992, 1.442695
      %v3075 = vpow.pop %v3074
      %v3076 = vmul.f32 %v2993, 1.442695
      %v3077 = vpow.pop %v3076
      %v3078 = vmul.f32 %v2994, 1.442695
      %v3079 = vpow.pop %v3078
      %v3080 = vmul.f32 %v2995, 1.442695
      %v3081 = vpow.pop %v3080
      %v3082 = vmul.f32 %v2996, 1.442695
      %v3083 = vpow.pop %v3082
      %v3084 = vmul.f32 %v2997, 1.442695
      %v3085 = vpow.pop %v3084
      %v3086 = vmul.f32 %v2998, 1.442695
      %v3087 = vpow.pop %v3086
      %v3088 = vmul.f32 %v2999, 1.442695
      %v3089 = vpow.pop %v3088
      %v3090 = vmul.f32 %v3000, 1.442695
      %v3091 = vpow.pop %v3090
      %v3092 = vmul.f32 %v3001, 1.442695
      %v3093 = vpow.pop %v3092
      %v3094 = vmul.f32 %v3002, 1.442695
      %v3095 = vpow.pop %v3094
      %v3096 = vmul.f32 %v3003, 1.442695
      %v3097 = vpow.pop %v3096
      %v3098 = vmul.f32 %v3004, 1.442695
      %v3099 = vpow.pop %v3098
      %v3100 = vmul.f32 %v3005, 1.442695
      %v3101 = vpow.pop %v3100
      %v3102 = vmul.f32 %v3006, 1.442695
      %v3103 = vpow.pop %v3102
      %v3104 = vmul.f32 %v3007, 1.442695
      %v3105 = vpow.pop %v3104
      %v3106 = vmul.f32 %v3008, 1.442695
      %v3107 = vpow.pop %v3106
      %v3108 = vmul.f32 %v3009, 1.442695
      %v3109 = vpow.pop %v3108
      %v3110 = vmul.f32 %v3010, 1.442695
      %v3111 = vpow.pop %v3110
      %v3112 = vmul.f32 %v3011, 1.442695
      %v3113 = vpow.pop %v3112
      %v3114 = vmul.f32 %v3012, 1.442695
      %v3115 = vpow.pop %v3114
      %v3116 = vmul.f32 %v3013, 1.442695
      %v3117 = vpow.pop %v3116
      %v3118 = vmul.f32 %v3014, 1.442695
      %v3119 = vpow.pop %v3118
      %v3120 = vmul.f32 %v3015, 1.442695
      %v3121 = vpow.pop %v3120
      %v3122 = vmul.f32 %v3016, 1.442695
      %v3123 = vpow.pop %v3122
      %v3124 = vmul.f32 %v3017, 1.442695
      %v3125 = vpow.pop %v3124
      %v3126 = vmul.f32 %v3018, 1.442695
      %v3127 = vpow.pop %v3126
      %v3128 = vmul.f32 %v3019, 1.442695
      %v3129 = vpow.pop %v3128
      %v3130 = vmul.f32 %v3020, 1.442695
      %v3131 = vpow.pop %v3130
      %v3132 = vmul.f32 %v3021, 1.442695
      %v3133 = vpow.pop %v3132
      %v3134 = vmul.f32 %v3022, 1.442695
      %v3135 = vpow.pop %v3134
      %v3136 = vmul.f32 %v3023, 1.442695
      %v3137 = vpow.pop %v3136
      %v3138 = vmul.f32 %v3024, 1.442695
      %v3139 = vpow.pop %v3138
      %v3140 = vmul.f32 %v3025, 1.442695
      %v3141 = vpow.pop %v3140
      %v3142 = vmul.f32 %v3026, 1.442695
      %v3143 = vpow.pop %v3142
      %v3144 = vmul.f32 %v3027, 1.442695
      %v3145 = vpow.pop %v3144
      %v3146 = vmul.f32 %v3028, 1.442695
      %v3147 = vpow.pop %v3146
      %v3148 = vmul.f32 %v3029, 1.442695
      %v3149 = vpow.pop %v3148
      %v3150 = vmul.f32 %v3030, 1.442695
      %v3151 = vpow.pop %v3150
      %v3152 = vmul.f32 %v3031, 1.442695
      %v3153 = vpow.pop %v3152
      %v3154 = vmul.f32 %v3032, 1.442695
      %v3155 = vpow.pop %v3154
      %v3156 = vmul.f32 %v3033, 1.442695
      %v3157 = vpow.pop %v3156
      %v3158 = vmul.f32 %v3034, 1.442695
      %v3159 = vpow.pop %v3158
      %v3160 = vmul.f32 %v3035, 1.442695
      %v3161 = vpow.pop %v3160
      %v3162 = vmul.f32 %v3036, 1.442695
      %v3163 = vpow.pop %v3162
      %v3164 = vmul.f32 %v3037, 1.442695
      %v3165 = vpow.pop %v3164
      %v3166 = vsel %vm2781, %v3039, 0.0
      %3167 = vadd.xlane.f32.xlu0 %v3166
      %v3168 = vpop.xlane.xlu0 %3167
      %v3169 = vsel %vm2781, %v3041, 0.0
      %3170 = vadd.xlane.f32.xlu0 %v3169
      %v3171 = vpop.xlane.xlu0 %3170
      %v3172 = vsel %vm2781, %v3043, 0.0
      %3173 = vadd.xlane.f32.xlu0 %v3172
      %v3174 = vpop.xlane.xlu0 %3173
      %v3175 = vsel %vm2781, %v3045, 0.0
      %3176 = vadd.xlane.f32.xlu0 %v3175
      %v3177 = vpop.xlane.xlu0 %3176
      %v3178 = vsel %vm2781, %v3047, 0.0
      %3179 = vadd.xlane.f32.xlu0 %v3178
      %v3180 = vpop.xlane.xlu0 %3179
      %v3181 = vsel %vm2781, %v3049, 0.0
      %3182 = vadd.xlane.f32.xlu0 %v3181
      %v3183 = vpop.xlane.xlu0 %3182
      %v3184 = vsel %vm2781, %v3051, 0.0
      %3185 = vadd.xlane.f32.xlu0 %v3184
      %v3186 = vpop.xlane.xlu0 %3185
      %v3187 = vsel %vm2781, %v3053, 0.0
      %3188 = vadd.xlane.f32.xlu0 %v3187
      %v3189 = vpop.xlane.xlu0 %3188
      %v3190 = vsel %vm2781, %v3055, 0.0
      %3191 = vadd.xlane.f32.xlu0 %v3190
      %v3192 = vpop.xlane.xlu0 %3191
      %v3193 = vsel %vm2781, %v3057, 0.0
      %3194 = vadd.xlane.f32.xlu0 %v3193
      %v3195 = vpop.xlane.xlu0 %3194
      %v3196 = vsel %vm2781, %v3059, 0.0
      %3197 = vadd.xlane.f32.xlu0 %v3196
      %v3198 = vpop.xlane.xlu0 %3197
      %v3199 = vsel %vm2781, %v3061, 0.0
      %3200 = vadd.xlane.f32.xlu0 %v3199
      %v3201 = vpop.xlane.xlu0 %3200
      %v3202 = vsel %vm2781, %v3063, 0.0
      %3203 = vadd.xlane.f32.xlu0 %v3202
      %v3204 = vpop.xlane.xlu0 %3203
      %v3205 = vsel %vm2781, %v3065, 0.0
      %3206 = vadd.xlane.f32.xlu0 %v3205
      %v3207 = vpop.xlane.xlu0 %3206
      %v3208 = vsel %vm2781, %v3067, 0.0
      %3209 = vadd.xlane.f32.xlu0 %v3208
      %v3210 = vpop.xlane.xlu0 %3209
      %v3211 = vsel %vm2781, %v3069, 0.0
      %3212 = vadd.xlane.f32.xlu0 %v3211
      %v3213 = vpop.xlane.xlu0 %3212
      %v3214 = vsel %vm2781, %v3071, 0.0
      %3215 = vadd.xlane.f32.xlu0 %v3214
      %v3216 = vpop.xlane.xlu0 %3215
      %v3217 = vsel %vm2781, %v3073, 0.0
      %3218 = vadd.xlane.f32.xlu0 %v3217
      %v3219 = vpop.xlane.xlu0 %3218
      %v3220 = vsel %vm2781, %v3075, 0.0
      %3221 = vadd.xlane.f32.xlu0 %v3220
      %v3222 = vpop.xlane.xlu0 %3221
      %v3223 = vsel %vm2781, %v3077, 0.0
      %3224 = vadd.xlane.f32.xlu0 %v3223
      %v3225 = vpop.xlane.xlu0 %3224
      %v3226 = vsel %vm2781, %v3079, 0.0
      %3227 = vadd.xlane.f32.xlu0 %v3226
      %v3228 = vpop.xlane.xlu0 %3227
      %v3229 = vsel %vm2781, %v3081, 0.0
      %3230 = vadd.xlane.f32.xlu0 %v3229
      %v3231 = vpop.xlane.xlu0 %3230
      %v3232 = vsel %vm2781, %v3083, 0.0
      %3233 = vadd.xlane.f32.xlu0 %v3232
      %v3234 = vpop.xlane.xlu0 %3233
      %v3235 = vsel %vm2781, %v3085, 0.0
      %3236 = vadd.xlane.f32.xlu0 %v3235
      %v3237 = vpop.xlane.xlu0 %3236
      %v3238 = vsel %vm2781, %v3087, 0.0
      %3239 = vadd.xlane.f32.xlu0 %v3238
      %v3240 = vpop.xlane.xlu0 %3239
      %v3241 = vsel %vm2781, %v3089, 0.0
      %3242 = vadd.xlane.f32.xlu0 %v3241
      %v3243 = vpop.xlane.xlu0 %3242
      %v3244 = vsel %vm2781, %v3091, 0.0
      %3245 = vadd.xlane.f32.xlu0 %v3244
      %v3246 = vpop.xlane.xlu0 %3245
      %v3247 = vsel %vm2781, %v3093, 0.0
      %3248 = vadd.xlane.f32.xlu0 %v3247
      %v3249 = vpop.xlane.xlu0 %3248
      %v3250 = vsel %vm2781, %v3095, 0.0
      %3251 = vadd.xlane.f32.xlu0 %v3250
      %v3252 = vpop.xlane.xlu0 %3251
      %v3253 = vsel %vm2781, %v3097, 0.0
      %3254 = vadd.xlane.f32.xlu0 %v3253
      %v3255 = vpop.xlane.xlu0 %3254
      %v3256 = vsel %vm2781, %v3099, 0.0
      %3257 = vadd.xlane.f32.xlu0 %v3256
      %v3258 = vpop.xlane.xlu0 %3257
      %v3259 = vsel %vm2781, %v3101, 0.0
      %3260 = vadd.xlane.f32.xlu0 %v3259
      %v3261 = vpop.xlane.xlu0 %3260
      %v3262 = vsel %vm2781, %v3103, 0.0
      %3263 = vadd.xlane.f32.xlu0 %v3262
      %v3264 = vpop.xlane.xlu0 %3263
      %v3265 = vsel %vm2781, %v3105, 0.0
      %3266 = vadd.xlane.f32.xlu0 %v3265
      %v3267 = vpop.xlane.xlu0 %3266
      %v3268 = vsel %vm2781, %v3107, 0.0
      %3269 = vadd.xlane.f32.xlu0 %v3268
      %v3270 = vpop.xlane.xlu0 %3269
      %v3271 = vsel %vm2781, %v3109, 0.0
      %3272 = vadd.xlane.f32.xlu0 %v3271
      %v3273 = vpop.xlane.xlu0 %3272
      %v3274 = vsel %vm2781, %v3111, 0.0
      %3275 = vadd.xlane.f32.xlu0 %v3274
      %v3276 = vpop.xlane.xlu0 %3275
      %v3277 = vsel %vm2781, %v3113, 0.0
      %3278 = vadd.xlane.f32.xlu0 %v3277
      %v3279 = vpop.xlane.xlu0 %3278
      %v3280 = vsel %vm2781, %v3115, 0.0
      %3281 = vadd.xlane.f32.xlu0 %v3280
      %v3282 = vpop.xlane.xlu0 %3281
      %v3283 = vsel %vm2781, %v3117, 0.0
      %3284 = vadd.xlane.f32.xlu0 %v3283
      %v3285 = vpop.xlane.xlu0 %3284
      %v3286 = vsel %vm2781, %v3119, 0.0
      %3287 = vadd.xlane.f32.xlu0 %v3286
      %v3288 = vpop.xlane.xlu0 %3287
      %v3289 = vsel %vm2781, %v3121, 0.0
      %3290 = vadd.xlane.f32.xlu0 %v3289
      %v3291 = vpop.xlane.xlu0 %3290
      %v3292 = vsel %vm2781, %v3123, 0.0
      %3293 = vadd.xlane.f32.xlu0 %v3292
      %v3294 = vpop.xlane.xlu0 %3293
      %v3295 = vsel %vm2781, %v3125, 0.0
      %3296 = vadd.xlane.f32.xlu0 %v3295
      %v3297 = vpop.xlane.xlu0 %3296
      %v3298 = vsel %vm2781, %v3127, 0.0
      %3299 = vadd.xlane.f32.xlu0 %v3298
      %v3300 = vpop.xlane.xlu0 %3299
      %v3301 = vsel %vm2781, %v3129, 0.0
      %3302 = vadd.xlane.f32.xlu0 %v3301
      %v3303 = vpop.xlane.xlu0 %3302
      %v3304 = vsel %vm2781, %v3131, 0.0
      %3305 = vadd.xlane.f32.xlu0 %v3304
      %v3306 = vpop.xlane.xlu0 %3305
      %v3307 = vsel %vm2781, %v3133, 0.0
      %3308 = vadd.xlane.f32.xlu0 %v3307
      %v3309 = vpop.xlane.xlu0 %3308
      %v3310 = vsel %vm2781, %v3135, 0.0
      %3311 = vadd.xlane.f32.xlu0 %v3310
      %v3312 = vpop.xlane.xlu0 %3311
      %v3313 = vsel %vm2781, %v3137, 0.0
      %3314 = vadd.xlane.f32.xlu0 %v3313
      %v3315 = vpop.xlane.xlu0 %3314
      %v3316 = vsel %vm2781, %v3139, 0.0
      %3317 = vadd.xlane.f32.xlu0 %v3316
      %v3318 = vpop.xlane.xlu0 %3317
      %v3319 = vsel %vm2781, %v3141, 0.0
      %3320 = vadd.xlane.f32.xlu0 %v3319
      %v3321 = vpop.xlane.xlu0 %3320
      %v3322 = vsel %vm2781, %v3143, 0.0
      %3323 = vadd.xlane.f32.xlu0 %v3322
      %v3324 = vpop.xlane.xlu0 %3323
      %v3325 = vsel %vm2781, %v3145, 0.0
      %3326 = vadd.xlane.f32.xlu0 %v3325
      %v3327 = vpop.xlane.xlu0 %3326
      %v3328 = vsel %vm2781, %v3147, 0.0
      %3329 = vadd.xlane.f32.xlu0 %v3328
      %v3330 = vpop.xlane.xlu0 %3329
      %v3331 = vsel %vm2781, %v3149, 0.0
      %3332 = vadd.xlane.f32.xlu0 %v3331
      %v3333 = vpop.xlane.xlu0 %3332
      %v3334 = vsel %vm2781, %v3151, 0.0
      %3335 = vadd.xlane.f32.xlu0 %v3334
      %v3336 = vpop.xlane.xlu0 %3335
      %v3337 = vsel %vm2781, %v3153, 0.0
      %3338 = vadd.xlane.f32.xlu0 %v3337
      %v3339 = vpop.xlane.xlu0 %3338
      %v3340 = vsel %vm2781, %v3155, 0.0
      %3341 = vadd.xlane.f32.xlu0 %v3340
      %v3342 = vpop.xlane.xlu0 %3341
      %v3343 = vsel %vm2781, %v3157, 0.0
      %3344 = vadd.xlane.f32.xlu0 %v3343
      %v3345 = vpop.xlane.xlu0 %3344
      %v3346 = vsel %vm2781, %v3159, 0.0
      %3347 = vadd.xlane.f32.xlu0 %v3346
      %v3348 = vpop.xlane.xlu0 %3347
      %v3349 = vsel %vm2781, %v3161, 0.0
      %3350 = vadd.xlane.f32.xlu0 %v3349
      %v3351 = vpop.xlane.xlu0 %3350
      %v3352 = vsel %vm2781, %v3163, 0.0
      %3353 = vadd.xlane.f32.xlu0 %v3352
      %v3354 = vpop.xlane.xlu0 %3353
      %v3355 = vsel %vm2781, %v3165, 0.0
      %3356 = vadd.xlane.f32.xlu0 %v3355
      %v3357 = vpop.xlane.xlu0 %3356
      %v3358 = vrcp.pop %v3168
      %v3359 = vrcp.pop %v3171
      %v3360 = vrcp.pop %v3174
      %v3361 = vrcp.pop %v3177
      %v3362 = vrcp.pop %v3180
      %v3363 = vrcp.pop %v3183
      %v3364 = vrcp.pop %v3186
      %v3365 = vrcp.pop %v3189
      %v3366 = vrcp.pop %v3192
      %v3367 = vrcp.pop %v3195
      %v3368 = vrcp.pop %v3198
      %v3369 = vrcp.pop %v3201
      %v3370 = vrcp.pop %v3204
      %v3371 = vrcp.pop %v3207
      %v3372 = vrcp.pop %v3210
      %v3373 = vrcp.pop %v3213
      %v3374 = vrcp.pop %v3216
      %v3375 = vrcp.pop %v3219
      %v3376 = vrcp.pop %v3222
      %v3377 = vrcp.pop %v3225
      %v3378 = vrcp.pop %v3228
      %v3379 = vrcp.pop %v3231
      %v3380 = vrcp.pop %v3234
      %v3381 = vrcp.pop %v3237
      %v3382 = vrcp.pop %v3240
      %v3383 = vrcp.pop %v3243
      %v3384 = vrcp.pop %v3246
      %v3385 = vrcp.pop %v3249
      %v3386 = vrcp.pop %v3252
      %v3387 = vrcp.pop %v3255
      %v3388 = vrcp.pop %v3258
      %v3389 = vrcp.pop %v3261
      %v3390 = vrcp.pop %v3264
      %v3391 = vrcp.pop %v3267
      %v3392 = vrcp.pop %v3270
      %v3393 = vrcp.pop %v3273
      %v3394 = vrcp.pop %v3276
      %v3395 = vrcp.pop %v3279
      %v3396 = vrcp.pop %v3282
      %v3397 = vrcp.pop %v3285
      %v3398 = vrcp.pop %v3288
      %v3399 = vrcp.pop %v3291
      %v3400 = vrcp.pop %v3294
      %v3401 = vrcp.pop %v3297
      %v3402 = vrcp.pop %v3300
      %v3403 = vrcp.pop %v3303
      %v3404 = vrcp.pop %v3306
      %v3405 = vrcp.pop %v3309
      %v3406 = vrcp.pop %v3312
      %v3407 = vrcp.pop %v3315
      %v3408 = vrcp.pop %v3318
      %v3409 = vrcp.pop %v3321
      %v3410 = vrcp.pop %v3324
      %v3411 = vrcp.pop %v3327
      %v3412 = vrcp.pop %v3330
      %v3413 = vrcp.pop %v3333
      %v3414 = vrcp.pop %v3336
      %v3415 = vrcp.pop %v3339
      %v3416 = vrcp.pop %v3342
      %v3417 = vrcp.pop %v3345
      %v3418 = vrcp.pop %v3348
      %v3419 = vrcp.pop %v3351
      %v3420 = vrcp.pop %v3354
      %v3421 = vrcp.pop %v3357
      %v3422 = vmul.f32 %v3039, %v3358
      %v3423 = vmul.f32 %v3041, %v3359
      %v3424 = vmul.f32 %v3043, %v3360
      %v3425 = vmul.f32 %v3045, %v3361
      %v3426 = vmul.f32 %v3047, %v3362
      %v3427 = vmul.f32 %v3049, %v3363
      %v3428 = vmul.f32 %v3051, %v3364
      %v3429 = vmul.f32 %v3053, %v3365
      %v3430 = vmul.f32 %v3055, %v3366
      %v3431 = vmul.f32 %v3057, %v3367
      %v3432 = vmul.f32 %v3059, %v3368
      %v3433 = vmul.f32 %v3061, %v3369
      %v3434 = vmul.f32 %v3063, %v3370
      %v3435 = vmul.f32 %v3065, %v3371
      %v3436 = vmul.f32 %v3067, %v3372
      %v3437 = vmul.f32 %v3069, %v3373
      %v3438 = vmul.f32 %v3071, %v3374
      %v3439 = vmul.f32 %v3073, %v3375
      %v3440 = vmul.f32 %v3075, %v3376
      %v3441 = vmul.f32 %v3077, %v3377
      %v3442 = vmul.f32 %v3079, %v3378
      %v3443 = vmul.f32 %v3081, %v3379
      %v3444 = vmul.f32 %v3083, %v3380
      %v3445 = vmul.f32 %v3085, %v3381
      %v3446 = vmul.f32 %v3087, %v3382
      %v3447 = vmul.f32 %v3089, %v3383
      %v3448 = vmul.f32 %v3091, %v3384
      %v3449 = vmul.f32 %v3093, %v3385
      %v3450 = vmul.f32 %v3095, %v3386
      %v3451 = vmul.f32 %v3097, %v3387
      %v3452 = vmul.f32 %v3099, %v3388
      %v3453 = vmul.f32 %v3101, %v3389
      %v3454 = vmul.f32 %v3103, %v3390
      %v3455 = vmul.f32 %v3105, %v3391
      %v3456 = vmul.f32 %v3107, %v3392
      %v3457 = vmul.f32 %v3109, %v3393
      %v3458 = vmul.f32 %v3111, %v3394
      %v3459 = vmul.f32 %v3113, %v3395
      %v3460 = vmul.f32 %v3115, %v3396
      %v3461 = vmul.f32 %v3117, %v3397
      %v3462 = vmul.f32 %v3119, %v3398
      %v3463 = vmul.f32 %v3121, %v3399
      %v3464 = vmul.f32 %v3123, %v3400
      %v3465 = vmul.f32 %v3125, %v3401
      %v3466 = vmul.f32 %v3127, %v3402
      %v3467 = vmul.f32 %v3129, %v3403
      %v3468 = vmul.f32 %v3131, %v3404
      %v3469 = vmul.f32 %v3133, %v3405
      %v3470 = vmul.f32 %v3135, %v3406
      %v3471 = vmul.f32 %v3137, %v3407
      %v3472 = vmul.f32 %v3139, %v3408
      %v3473 = vmul.f32 %v3141, %v3409
      %v3474 = vmul.f32 %v3143, %v3410
      %v3475 = vmul.f32 %v3145, %v3411
      %v3476 = vmul.f32 %v3147, %v3412
      %v3477 = vmul.f32 %v3149, %v3413
      %v3478 = vmul.f32 %v3151, %v3414
      %v3479 = vmul.f32 %v3153, %v3415
      %v3480 = vmul.f32 %v3155, %v3416
      %v3481 = vmul.f32 %v3157, %v3417
      %v3482 = vmul.f32 %v3159, %v3418
      %v3483 = vmul.f32 %v3161, %v3419
      %v3484 = vmul.f32 %v3163, %v3420
      %v3485 = vmul.f32 %v3165, %v3421
      %v3486 = vpack.c.bf16 %v3423, %v3422
      %v3487 = vpack.c.bf16 %v3425, %v3424
      %v3488 = vpack.c.bf16 %v3427, %v3426
      %v3489 = vpack.c.bf16 %v3429, %v3428
      %v3490 = vpack.c.bf16 %v3431, %v3430
      %v3491 = vpack.c.bf16 %v3433, %v3432
      %v3492 = vpack.c.bf16 %v3435, %v3434
      %v3493 = vpack.c.bf16 %v3437, %v3436
      %v3494 = vpack.c.bf16 %v3439, %v3438
      %v3495 = vpack.c.bf16 %v3441, %v3440
      %v3496 = vpack.c.bf16 %v3443, %v3442
      %v3497 = vpack.c.bf16 %v3445, %v3444
      %v3498 = vpack.c.bf16 %v3447, %v3446
      %v3499 = vpack.c.bf16 %v3449, %v3448
      %v3500 = vpack.c.bf16 %v3451, %v3450
      %v3501 = vpack.c.bf16 %v3453, %v3452
      %v3502 = vpack.c.bf16 %v3455, %v3454
      %v3503 = vpack.c.bf16 %v3457, %v3456
      %v3504 = vpack.c.bf16 %v3459, %v3458
      %v3505 = vpack.c.bf16 %v3461, %v3460
      %v3506 = vpack.c.bf16 %v3463, %v3462
      %v3507 = vpack.c.bf16 %v3465, %v3464
      %v3508 = vpack.c.bf16 %v3467, %v3466
      %v3509 = vpack.c.bf16 %v3469, %v3468
      %v3510 = vpack.c.bf16 %v3471, %v3470
      %v3511 = vpack.c.bf16 %v3473, %v3472
      %v3512 = vpack.c.bf16 %v3475, %v3474
      %v3513 = vpack.c.bf16 %v3477, %v3476
      %v3514 = vpack.c.bf16 %v3479, %v3478
      %v3515 = vpack.c.bf16 %v3481, %v3480
      %v3516 = vpack.c.bf16 %v3483, %v3482
      %v3517 = vpack.c.bf16 %v3485, %v3484
      %v3518 = vpack.c.bf16 %v1483, %v1480
      %v3519 = vpack.c.bf16 %v1491, %v1488
      %v3520 = vpack.c.bf16 %v1499, %v1496
      %v3521 = vpack.c.bf16 %v1507, %v1504
      %v3522 = vpack.c.bf16 %v1515, %v1512
      %v3523 = vpack.c.bf16 %v1523, %v1520
      %v3524 = vpack.c.bf16 %v1531, %v1528
      %v3525 = vpack.c.bf16 %v1539, %v1536
      %v3526 = vpack.c.bf16 %v1605, %v1602
      %v3527 = vpack.c.bf16 %v1613, %v1610
      %v3528 = vpack.c.bf16 %v1621, %v1618
      %v3529 = vpack.c.bf16 %v1629, %v1626
      %v3530 = vpack.c.bf16 %v1637, %v1634
      %v3531 = vpack.c.bf16 %v1645, %v1642
      %v3532 = vpack.c.bf16 %v1653, %v1650
      %v3533 = vpack.c.bf16 %v1661, %v1658
      %v3534 = vpack.c.bf16 %v1727, %v1724
      %v3535 = vpack.c.bf16 %v1735, %v1732
      %v3536 = vpack.c.bf16 %v1743, %v1740
      %v3537 = vpack.c.bf16 %v1751, %v1748
      %v3538 = vpack.c.bf16 %v1759, %v1756
      %v3539 = vpack.c.bf16 %v1767, %v1764
      %v3540 = vpack.c.bf16 %v1775, %v1772
      %v3541 = vpack.c.bf16 %v1783, %v1780
      %v3542 = vpack.c.bf16 %v1849, %v1846
      %v3543 = vpack.c.bf16 %v1857, %v1854
      %v3544 = vpack.c.bf16 %v1865, %v1862
      %v3545 = vpack.c.bf16 %v1873, %v1870
      %v3546 = vpack.c.bf16 %v1881, %v1878
      %v3547 = vpack.c.bf16 %v1889, %v1886
      %v3548 = vpack.c.bf16 %v1897, %v1894
      %v3549 = vpack.c.bf16 %v1905, %v1902
      %v3551 = vsel %vm2781, %v3486, 0
      %v3554 = vsel %vm2781, %v3487, 0
      %v3557 = vsel %vm2781, %v3488, 0
      %v3560 = vsel %vm2781, %v3489, 0
      %3562 = vmatprep.subr.bf16.mxu0 0
      %3563 = vmatpush1.bf16.msra.mxu0 %v3518
      %3564 = vmatprep.subr.bf16.mxu0 0
      %3565 = vmatpush1.bf16.msra.mxu0 %v3519
      %3566 = vmatprep.subr.bf16.mxu0 0
      %3567 = vmatpush1.bf16.msra.mxu0 %v3520
      %3568 = vmatprep.subr.bf16.mxu0 0
      %3569 = vmatpush1.bf16.msra.mxu0 %v3521
      %3570 = vmatprep.subr.bf16.mxu0 0
      %3571 = vmatpush1.bf16.msra.mxu0 0
      %3572 = vmatprep.subr.bf16.mxu0 0
      %3573 = vmatpush1.bf16.msra.mxu0 0
      %3574 = vmatprep.subr.bf16.mxu0 0
      %3575 = vmatpush1.bf16.msra.mxu0 0
      %3576 = vmatprep.subr.bf16.mxu0 0
      %3577 = vmatpush1.bf16.msra.mxu0 0
      %3578 = vmatprep.subr.bf16.mxu0 0
      %3579 = vmatpush1.bf16.msra.mxu0 0
      %3580 = vmatprep.subr.bf16.mxu0 0
      %3581 = vmatpush1.bf16.msra.mxu0 0
      %3582 = vmatprep.subr.bf16.mxu0 0
      %3583 = vmatpush1.bf16.msra.mxu0 0
      %3584 = vmatprep.subr.bf16.mxu0 0
      %3585 = vmatpush1.bf16.msra.mxu0 0
      %3586 = vmatprep.subr.bf16.mxu0 0
      %3587 = vmatpush1.bf16.msra.mxu0 0
      %3588 = vmatprep.subr.bf16.mxu0 0
      %3589 = vmatpush1.bf16.msra.mxu0 0
      %3590 = vmatprep.subr.bf16.mxu0 0
      %3591 = vmatpush1.bf16.msra.mxu0 0
      %3592 = vmatprep.subr.bf16.mxu0 0
      %3593 = vmatpush1.bf16.msra.mxu0 0
      %3594 = vmatprep.mubr.bf16.mxu0 0
      %3595 = vmatmul.mubr.bf16.gmra.mrb[0].mxu0 %v3551
      %v3596 = vpop.f32.mrb[0].mxu0
      %v3597 = vadd.f32 0.0, %v3596
      %v3598 = vpop.f32.mrb[0].mxu0
      %v3599 = vpop.f32.mrb[0].mxu0
      %v3600 = vadd.f32 0.0, %v3599
      %v3601 = vpop.f32.mrb[0].mxu0
      %3602 = vmatprep.mubr.bf16.mxu0 0
      %3603 = vmatmul.mubr.bf16.gmra.mrb[0].mxu0 %v3554
      %v3604 = vpop.f32.mrb[0].mxu0
      %v3605 = vadd.f32 0.0, %v3604
      %v3606 = vpop.f32.mrb[0].mxu0
      %v3607 = vpop.f32.mrb[0].mxu0
      %v3608 = vadd.f32 0.0, %v3607
      %v3609 = vpop.f32.mrb[0].mxu0
      %3610 = vmatprep.mubr.bf16.mxu0 0
      %3611 = vmatmul.mubr.bf16.gmra.mrb[0].mxu0 %v3557
      %v3612 = vpop.f32.mrb[0].mxu0
      %v3613 = vadd.f32 0.0, %v3612
      %v3614 = vpop.f32.mrb[0].mxu0
      %v3615 = vpop.f32.mrb[0].mxu0
      %v3616 = vadd.f32 0.0, %v3615
      %v3617 = vpop.f32.mrb[0].mxu0
      %3618 = vmatprep.mubr.bf16.mxu0 0
      %3619 = vmatmul.mubr.bf16.gmra.mrb[0].mxu0 %v3560
      %v3620 = vpop.f32.mrb[0].mxu0
      %v3621 = vadd.f32 0.0, %v3620
      %v3622 = vpop.f32.mrb[0].mxu0
      %v3623 = vpop.f32.mrb[0].mxu0
      %v3624 = vadd.f32 0.0, %v3623
      %v3625 = vpop.f32.mrb[0].mxu0
      %3626 = vdwg.mxu0
      %v3628 = vsel %vm2781, %v3490, 0
      %v3631 = vsel %vm2781, %v3491, 0
      %v3634 = vsel %vm2781, %v3492, 0
      %v3637 = vsel %vm2781, %v3493, 0
      %3639 = vmatprep.subr.bf16.mxu0 0
      %3640 = vmatpush1.bf16.msra.mxu0 %v3522
      %3641 = vmatprep.subr.bf16.mxu0 0
      %3642 = vmatpush1.bf16.msra.mxu0 %v3523
      %3643 = vmatprep.subr.bf16.mxu0 0
      %3644 = vmatpush1.bf16.msra.mxu0 %v3524
      %3645 = vmatprep.subr.bf16.mxu0 0
      %3646 = vmatpush1.bf16.msra.mxu0 %v3525
      %3647 = vmatprep.subr.bf16.mxu0 0
      %3648 = vmatpush1.bf16.msra.mxu0 0
      %3649 = vmatprep.subr.bf16.mxu0 0
      %3650 = vmatpush1.bf16.msra.mxu0 0
      %3651 = vmatprep.subr.bf16.mxu0 0
      %3652 = vmatpush1.bf16.msra.mxu0 0
      %3653 = vmatprep.subr.bf16.mxu0 0
      %3654 = vmatpush1.bf16.msra.mxu0 0
      %3655 = vmatprep.subr.bf16.mxu0 0
      %3656 = vmatpush1.bf16.msra.mxu0 0
      %3657 = vmatprep.subr.bf16.mxu0 0
      %3658 = vmatpush1.bf16.msra.mxu0 0
      %3659 = vmatprep.subr.bf16.mxu0 0
      %3660 = vmatpush1.bf16.msra.mxu0 0
      %3661 = vmatprep.subr.bf16.mxu0 0
      %3662 = vmatpush1.bf16.msra.mxu0 0
      %3663 = vmatprep.subr.bf16.mxu0 0
      %3664 = vmatpush1.bf16.msra.mxu0 0
      %3665 = vmatprep.subr.bf16.mxu0 0
      %3666 = vmatpush1.bf16.msra.mxu0 0
      %3667 = vmatprep.subr.bf16.mxu0 0
      %3668 = vmatpush1.bf16.msra.mxu0 0
      %3669 = vmatprep.subr.bf16.mxu0 0
      %3670 = vmatpush1.bf16.msra.mxu0 0
      %3671 = vmatprep.mubr.bf16.mxu0 0
      %3672 = vmatmul.mubr.bf16.gmra.mrb[0].mxu0 %v3628
      %v3673 = vpop.f32.mrb[0].mxu0
      %v3674 = vadd.f32 0.0, %v3673
      %v3675 = vpop.f32.mrb[0].mxu0
      %v3676 = vpop.f32.mrb[0].mxu0
      %v3677 = vadd.f32 0.0, %v3676
      %v3678 = vpop.f32.mrb[0].mxu0
      %3679 = vmatprep.mubr.bf16.mxu0 0
      %3680 = vmatmul.mubr.bf16.gmra.mrb[0].mxu0 %v3631
      %v3681 = vpop.f32.mrb[0].mxu0
      %v3682 = vadd.f32 0.0, %v3681
      %v3683 = vpop.f32.mrb[0].mxu0
      %v3684 = vpop.f32.mrb[0].mxu0
      %v3685 = vadd.f32 0.0, %v3684
      %v3686 = vpop.f32.mrb[0].mxu0
      %3687 = vmatprep.mubr.bf16.mxu0 0
      %3688 = vmatmul.mubr.bf16.gmra.mrb[0].mxu0 %v3634
      %v3689 = vpop.f32.mrb[0].mxu0
      %v3690 = vadd.f32 0.0, %v3689
      %v3691 = vpop.f32.mrb[0].mxu0
      %v3692 = vpop.f32.mrb[0].mxu0
      %v3693 = vadd.f32 0.0, %v3692
      %v3694 = vpop.f32.mrb[0].mxu0
      %3695 = vmatprep.mubr.bf16.mxu0 0
      %3696 = vmatmul.mubr.bf16.gmra.mrb[0].mxu0 %v3637
      %v3697 = vpop.f32.mrb[0].mxu0
      %v3698 = vadd.f32 0.0, %v3697
      %v3699 = vpop.f32.mrb[0].mxu0
      %v3700 = vpop.f32.mrb[0].mxu0
      %v3701 = vadd.f32 0.0, %v3700
      %v3702 = vpop.f32.mrb[0].mxu0
      %3703 = vdwg.mxu0
      %v3705 = vsel %vm2781, %v3494, 0
      %v3708 = vsel %vm2781, %v3495, 0
      %v3711 = vsel %vm2781, %v3496, 0
      %v3714 = vsel %vm2781, %v3497, 0
      %3716 = vmatprep.subr.bf16.mxu0 0
      %3717 = vmatpush1.bf16.msra.mxu0 %v3526
      %3718 = vmatprep.subr.bf16.mxu0 0
      %3719 = vmatpush1.bf16.msra.mxu0 %v3527
      %3720 = vmatprep.subr.bf16.mxu0 0
      %3721 = vmatpush1.bf16.msra.mxu0 %v3528
      %3722 = vmatprep.subr.bf16.mxu0 0
      %3723 = vmatpush1.bf16.msra.mxu0 %v3529
      %3724 = vmatprep.subr.bf16.mxu0 0
      %3725 = vmatpush1.bf16.msra.mxu0 0
      %3726 = vmatprep.subr.bf16.mxu0 0
      %3727 = vmatpush1.bf16.msra.mxu0 0
      %3728 = vmatprep.subr.bf16.mxu0 0
      %3729 = vmatpush1.bf16.msra.mxu0 0
      %3730 = vmatprep.subr.bf16.mxu0 0
      %3731 = vmatpush1.bf16.msra.mxu0 0
      %3732 = vmatprep.subr.bf16.mxu0 0
      %3733 = vmatpush1.bf16.msra.mxu0 0
      %3734 = vmatprep.subr.bf16.mxu0 0
      %3735 = vmatpush1.bf16.msra.mxu0 0
      %3736 = vmatprep.subr.bf16.mxu0 0
      %3737 = vmatpush1.bf16.msra.mxu0 0
      %3738 = vmatprep.subr.bf16.mxu0 0
      %3739 = vmatpush1.bf16.msra.mxu0 0
      %3740 = vmatprep.subr.bf16.mxu0 0
      %3741 = vmatpush1.bf16.msra.mxu0 0
      %3742 = vmatprep.subr.bf16.mxu0 0
      %3743 = vmatpush1.bf16.msra.mxu0 0
      %3744 = vmatprep.subr.bf16.mxu0 0
      %3745 = vmatpush1.bf16.msra.mxu0 0
      %3746 = vmatprep.subr.bf16.mxu0 0
      %3747 = vmatpush1.bf16.msra.mxu0 0
      %3748 = vmatprep.mubr.bf16.mxu0 0
      %3749 = vmatmul.mubr.bf16.gmra.mrb[0].mxu0 %v3705
      %v3750 = vpop.f32.mrb[0].mxu0
      %v3751 = vadd.f32 0.0, %v3750
      %v3752 = vpop.f32.mrb[0].mxu0
      %v3753 = vpop.f32.mrb[0].mxu0
      %v3754 = vadd.f32 0.0, %v3753
      %v3755 = vpop.f32.mrb[0].mxu0
      %3756 = vmatprep.mubr.bf16.mxu0 0
      %3757 = vmatmul.mubr.bf16.gmra.mrb[0].mxu0 %v3708
      %v3758 = vpop.f32.mrb[0].mxu0
      %v3759 = vadd.f32 0.0, %v3758
      %v3760 = vpop.f32.mrb[0].mxu0
      %v3761 = vpop.f32.mrb[0].mxu0
      %v3762 = vadd.f32 0.0, %v3761
      %v3763 = vpop.f32.mrb[0].mxu0
      %3764 = vmatprep.mubr.bf16.mxu0 0
      %3765 = vmatmul.mubr.bf16.gmra.mrb[0].mxu0 %v3711
      %v3766 = vpop.f32.mrb[0].mxu0
      %v3767 = vadd.f32 0.0, %v3766
      %v3768 = vpop.f32.mrb[0].mxu0
      %v3769 = vpop.f32.mrb[0].mxu0
      %v3770 = vadd.f32 0.0, %v3769
      %v3771 = vpop.f32.mrb[0].mxu0
      %3772 = vmatprep.mubr.bf16.mxu0 0
      %3773 = vmatmul.mubr.bf16.gmra.mrb[0].mxu0 %v3714
      %v3774 = vpop.f32.mrb[0].mxu0
      %v3775 = vadd.f32 0.0, %v3774
      %v3776 = vpop.f32.mrb[0].mxu0
      %v3777 = vpop.f32.mrb[0].mxu0
      %v3778 = vadd.f32 0.0, %v3777
      %v3779 = vpop.f32.mrb[0].mxu0
      %3780 = vdwg.mxu0
      %v3782 = vsel %vm2781, %v3498, 0
      %v3785 = vsel %vm2781, %v3499, 0
      %v3788 = vsel %vm2781, %v3500, 0
      %v3791 = vsel %vm2781, %v3501, 0
      %3793 = vmatprep.subr.bf16.mxu0 0
      %3794 = vmatpush1.bf16.msra.mxu0 %v3530
      %3795 = vmatprep.subr.bf16.mxu0 0
      %3796 = vmatpush1.bf16.msra.mxu0 %v3531
      %3797 = vmatprep.subr.bf16.mxu0 0
      %3798 = vmatpush1.bf16.msra.mxu0 %v3532
      %3799 = vmatprep.subr.bf16.mxu0 0
      %3800 = vmatpush1.bf16.msra.mxu0 %v3533
      %3801 = vmatprep.subr.bf16.mxu0 0
      %3802 = vmatpush1.bf16.msra.mxu0 0
      %3803 = vmatprep.subr.bf16.mxu0 0
      %3804 = vmatpush1.bf16.msra.mxu0 0
      %3805 = vmatprep.subr.bf16.mxu0 0
      %3806 = vmatpush1.bf16.msra.mxu0 0
      %3807 = vmatprep.subr.bf16.mxu0 0
      %3808 = vmatpush1.bf16.msra.mxu0 0
      %3809 = vmatprep.subr.bf16.mxu0 0
      %3810 = vmatpush1.bf16.msra.mxu0 0
      %3811 = vmatprep.subr.bf16.mxu0 0
      %3812 = vmatpush1.bf16.msra.mxu0 0
      %3813 = vmatprep.subr.bf16.mxu0 0
      %3814 = vmatpush1.bf16.msra.mxu0 0
      %3815 = vmatprep.subr.bf16.mxu0 0
      %3816 = vmatpush1.bf16.msra.mxu0 0
      %3817 = vmatprep.subr.bf16.mxu0 0
      %3818 = vmatpush1.bf16.msra.mxu0 0
      %3819 = vmatprep.subr.bf16.mxu0 0
      %3820 = vmatpush1.bf16.msra.mxu0 0
      %3821 = vmatprep.subr.bf16.mxu0 0
      %3822 = vmatpush1.bf16.msra.mxu0 0
      %3823 = vmatprep.subr.bf16.mxu0 0
      %3824 = vmatpush1.bf16.msra.mxu0 0
      %3825 = vmatprep.mubr.bf16.mxu0 0
      %3826 = vmatmul.mubr.bf16.gmra.mrb[0].mxu0 %v3782
      %v3827 = vpop.f32.mrb[0].mxu0
      %v3828 = vadd.f32 0.0, %v3827
      %v3829 = vpop.f32.mrb[0].mxu0
      %v3830 = vpop.f32.mrb[0].mxu0
      %v3831 = vadd.f32 0.0, %v3830
      %v3832 = vpop.f32.mrb[0].mxu0
      %3833 = vmatprep.mubr.bf16.mxu0 0
      %3834 = vmatmul.mubr.bf16.gmra.mrb[0].mxu0 %v3785
      %v3835 = vpop.f32.mrb[0].mxu0
      %v3836 = vadd.f32 0.0, %v3835
      %v3837 = vpop.f32.mrb[0].mxu0
      %v3838 = vpop.f32.mrb[0].mxu0
      %v3839 = vadd.f32 0.0, %v3838
      %v3840 = vpop.f32.mrb[0].mxu0
      %3841 = vmatprep.mubr.bf16.mxu0 0
      %3842 = vmatmul.mubr.bf16.gmra.mrb[0].mxu0 %v3788
      %v3843 = vpop.f32.mrb[0].mxu0
      %v3844 = vadd.f32 0.0, %v3843
      %v3845 = vpop.f32.mrb[0].mxu0
      %v3846 = vpop.f32.mrb[0].mxu0
      %v3847 = vadd.f32 0.0, %v3846
      %v3848 = vpop.f32.mrb[0].mxu0
      %3849 = vmatprep.mubr.bf16.mxu0 0
      %3850 = vmatmul.mubr.bf16.gmra.mrb[0].mxu0 %v3791
      %v3851 = vpop.f32.mrb[0].mxu0
      %v3852 = vadd.f32 0.0, %v3851
      %v3853 = vpop.f32.mrb[0].mxu0
      %v3854 = vpop.f32.mrb[0].mxu0
      %v3855 = vadd.f32 0.0, %v3854
      %v3856 = vpop.f32.mrb[0].mxu0
      %3857 = vdwg.mxu0
      %v3859 = vsel %vm2781, %v3502, 0
      %v3862 = vsel %vm2781, %v3503, 0
      %v3865 = vsel %vm2781, %v3504, 0
      %v3868 = vsel %vm2781, %v3505, 0
      %3870 = vmatprep.subr.bf16.mxu0 0
      %3871 = vmatpush1.bf16.msra.mxu0 %v3534
      %3872 = vmatprep.subr.bf16.mxu0 0
      %3873 = vmatpush1.bf16.msra.mxu0 %v3535
      %3874 = vmatprep.subr.bf16.mxu0 0
      %3875 = vmatpush1.bf16.msra.mxu0 %v3536
      %3876 = vmatprep.subr.bf16.mxu0 0
      %3877 = vmatpush1.bf16.msra.mxu0 %v3537
      %3878 = vmatprep.subr.bf16.mxu0 0
      %3879 = vmatpush1.bf16.msra.mxu0 0
      %3880 = vmatprep.subr.bf16.mxu0 0
      %3881 = vmatpush1.bf16.msra.mxu0 0
      %3882 = vmatprep.subr.bf16.mxu0 0
      %3883 = vmatpush1.bf16.msra.mxu0 0
      %3884 = vmatprep.subr.bf16.mxu0 0
      %3885 = vmatpush1.bf16.msra.mxu0 0
      %3886 = vmatprep.subr.bf16.mxu0 0
      %3887 = vmatpush1.bf16.msra.mxu0 0
      %3888 = vmatprep.subr.bf16.mxu0 0
      %3889 = vmatpush1.bf16.msra.mxu0 0
      %3890 = vmatprep.subr.bf16.mxu0 0
      %3891 = vmatpush1.bf16.msra.mxu0 0
      %3892 = vmatprep.subr.bf16.mxu0 0
      %3893 = vmatpush1.bf16.msra.mxu0 0
      %3894 = vmatprep.subr.bf16.mxu0 0
      %3895 = vmatpush1.bf16.msra.mxu0 0
      %3896 = vmatprep.subr.bf16.mxu0 0
      %3897 = vmatpush1.bf16.msra.mxu0 0
      %3898 = vmatprep.subr.bf16.mxu0 0
      %3899 = vmatpush1.bf16.msra.mxu0 0
      %3900 = vmatprep.subr.bf16.mxu0 0
      %3901 = vmatpush1.bf16.msra.mxu0 0
      %3902 = vmatprep.mubr.bf16.mxu0 0
      %3903 = vmatmul.mubr.bf16.gmra.mrb[0].mxu0 %v3859
      %v3904 = vpop.f32.mrb[0].mxu0
      %v3905 = vadd.f32 0.0, %v3904
      %v3906 = vpop.f32.mrb[0].mxu0
      %v3907 = vpop.f32.mrb[0].mxu0
      %v3908 = vadd.f32 0.0, %v3907
      %v3909 = vpop.f32.mrb[0].mxu0
      %3910 = vmatprep.mubr.bf16.mxu0 0
      %3911 = vmatmul.mubr.bf16.gmra.mrb[0].mxu0 %v3862
      %v3912 = vpop.f32.mrb[0].mxu0
      %v3913 = vadd.f32 0.0, %v3912
      %v3914 = vpop.f32.mrb[0].mxu0
      %v3915 = vpop.f32.mrb[0].mxu0
      %v3916 = vadd.f32 0.0, %v3915
      %v3917 = vpop.f32.mrb[0].mxu0
      %3918 = vmatprep.mubr.bf16.mxu0 0
      %3919 = vmatmul.mubr.bf16.gmra.mrb[0].mxu0 %v3865
      %v3920 = vpop.f32.mrb[0].mxu0
      %v3921 = vadd.f32 0.0, %v3920
      %v3922 = vpop.f32.mrb[0].mxu0
      %v3923 = vpop.f32.mrb[0].mxu0
      %v3924 = vadd.f32 0.0, %v3923
      %v3925 = vpop.f32.mrb[0].mxu0
      %3926 = vmatprep.mubr.bf16.mxu0 0
      %3927 = vmatmul.mubr.bf16.gmra.mrb[0].mxu0 %v3868
      %v3928 = vpop.f32.mrb[0].mxu0
      %v3929 = vadd.f32 0.0, %v3928
      %v3930 = vpop.f32.mrb[0].mxu0
      %v3931 = vpop.f32.mrb[0].mxu0
      %v3932 = vadd.f32 0.0, %v3931
      %v3933 = vpop.f32.mrb[0].mxu0
      %3934 = vdwg.mxu0
      %v3936 = vsel %vm2781, %v3506, 0
      %v3939 = vsel %vm2781, %v3507, 0
      %v3942 = vsel %vm2781, %v3508, 0
      %v3945 = vsel %vm2781, %v3509, 0
      %3947 = vmatprep.subr.bf16.mxu0 0
      %3948 = vmatpush1.bf16.msra.mxu0 %v3538
      %3949 = vmatprep.subr.bf16.mxu0 0
      %3950 = vmatpush1.bf16.msra.mxu0 %v3539
      %3951 = vmatprep.subr.bf16.mxu0 0
      %3952 = vmatpush1.bf16.msra.mxu0 %v3540
      %3953 = vmatprep.subr.bf16.mxu0 0
      %3954 = vmatpush1.bf16.msra.mxu0 %v3541
      %3955 = vmatprep.subr.bf16.mxu0 0
      %3956 = vmatpush1.bf16.msra.mxu0 0
      %3957 = vmatprep.subr.bf16.mxu0 0
      %3958 = vmatpush1.bf16.msra.mxu0 0
      %3959 = vmatprep.subr.bf16.mxu0 0
      %3960 = vmatpush1.bf16.msra.mxu0 0
      %3961 = vmatprep.subr.bf16.mxu0 0
      %3962 = vmatpush1.bf16.msra.mxu0 0
      %3963 = vmatprep.subr.bf16.mxu0 0
      %3964 = vmatpush1.bf16.msra.mxu0 0
      %3965 = vmatprep.subr.bf16.mxu0 0
      %3966 = vmatpush1.bf16.msra.mxu0 0
      %3967 = vmatprep.subr.bf16.mxu0 0
      %3968 = vmatpush1.bf16.msra.mxu0 0
      %3969 = vmatprep.subr.bf16.mxu0 0
      %3970 = vmatpush1.bf16.msra.mxu0 0
      %3971 = vmatprep.subr.bf16.mxu0 0
      %3972 = vmatpush1.bf16.msra.mxu0 0
      %3973 = vmatprep.subr.bf16.mxu0 0
      %3974 = vmatpush1.bf16.msra.mxu0 0
      %3975 = vmatprep.subr.bf16.mxu0 0
      %3976 = vmatpush1.bf16.msra.mxu0 0
      %3977 = vmatprep.subr.bf16.mxu0 0
      %3978 = vmatpush1.bf16.msra.mxu0 0
      %3979 = vmatprep.mubr.bf16.mxu0 0
      %3980 = vmatmul.mubr.bf16.gmra.mrb[0].mxu0 %v3936
      %v3981 = vpop.f32.mrb[0].mxu0
      %v3982 = vadd.f32 0.0, %v3981
      %v3983 = vpop.f32.mrb[0].mxu0
      %v3984 = vpop.f32.mrb[0].mxu0
      %v3985 = vadd.f32 0.0, %v3984
      %v3986 = vpop.f32.mrb[0].mxu0
      %3987 = vmatprep.mubr.bf16.mxu0 0
      %3988 = vmatmul.mubr.bf16.gmra.mrb[0].mxu0 %v3939
      %v3989 = vpop.f32.mrb[0].mxu0
      %v3990 = vadd.f32 0.0, %v3989
      %v3991 = vpop.f32.mrb[0].mxu0
      %v3992 = vpop.f32.mrb[0].mxu0
      %v3993 = vadd.f32 0.0, %v3992
      %v3994 = vpop.f32.mrb[0].mxu0
      %3995 = vmatprep.mubr.bf16.mxu0 0
      %3996 = vmatmul.mubr.bf16.gmra.mrb[0].mxu0 %v3942
      %v3997 = vpop.f32.mrb[0].mxu0
      %v3998 = vadd.f32 0.0, %v3997
      %v3999 = vpop.f32.mrb[0].mxu0
      %v4000 = vpop.f32.mrb[0].mxu0
      %v4001 = vadd.f32 0.0, %v4000
      %v4002 = vpop.f32.mrb[0].mxu0
      %4003 = vmatprep.mubr.bf16.mxu0 0
      %4004 = vmatmul.mubr.bf16.gmra.mrb[0].mxu0 %v3945
      %v4005 = vpop.f32.mrb[0].mxu0
      %v4006 = vadd.f32 0.0, %v4005
      %v4007 = vpop.f32.mrb[0].mxu0
      %v4008 = vpop.f32.mrb[0].mxu0
      %v4009 = vadd.f32 0.0, %v4008
      %v4010 = vpop.f32.mrb[0].mxu0
      %4011 = vdwg.mxu0
      %v4013 = vsel %vm2781, %v3510, 0
      %v4016 = vsel %vm2781, %v3511, 0
      %v4019 = vsel %vm2781, %v3512, 0
      %v4022 = vsel %vm2781, %v3513, 0
      %4024 = vmatprep.subr.bf16.mxu0 0
      %4025 = vmatpush1.bf16.msra.mxu0 %v3542
      %4026 = vmatprep.subr.bf16.mxu0 0
      %4027 = vmatpush1.bf16.msra.mxu0 %v3543
      %4028 = vmatprep.subr.bf16.mxu0 0
      %4029 = vmatpush1.bf16.msra.mxu0 %v3544
      %4030 = vmatprep.subr.bf16.mxu0 0
      %4031 = vmatpush1.bf16.msra.mxu0 %v3545
      %4032 = vmatprep.subr.bf16.mxu0 0
      %4033 = vmatpush1.bf16.msra.mxu0 0
      %4034 = vmatprep.subr.bf16.mxu0 0
      %4035 = vmatpush1.bf16.msra.mxu0 0
      %4036 = vmatprep.subr.bf16.mxu0 0
      %4037 = vmatpush1.bf16.msra.mxu0 0
      %4038 = vmatprep.subr.bf16.mxu0 0
      %4039 = vmatpush1.bf16.msra.mxu0 0
      %4040 = vmatprep.subr.bf16.mxu0 0
      %4041 = vmatpush1.bf16.msra.mxu0 0
      %4042 = vmatprep.subr.bf16.mxu0 0
      %4043 = vmatpush1.bf16.msra.mxu0 0
      %4044 = vmatprep.subr.bf16.mxu0 0
      %4045 = vmatpush1.bf16.msra.mxu0 0
      %4046 = vmatprep.subr.bf16.mxu0 0
      %4047 = vmatpush1.bf16.msra.mxu0 0
      %4048 = vmatprep.subr.bf16.mxu0 0
      %4049 = vmatpush1.bf16.msra.mxu0 0
      %4050 = vmatprep.subr.bf16.mxu0 0
      %4051 = vmatpush1.bf16.msra.mxu0 0
      %4052 = vmatprep.subr.bf16.mxu0 0
      %4053 = vmatpush1.bf16.msra.mxu0 0
      %4054 = vmatprep.subr.bf16.mxu0 0
      %4055 = vmatpush1.bf16.msra.mxu0 0
      %4056 = vmatprep.mubr.bf16.mxu0 0
      %4057 = vmatmul.mubr.bf16.gmra.mrb[0].mxu0 %v4013
      %v4058 = vpop.f32.mrb[0].mxu0
      %v4059 = vadd.f32 0.0, %v4058
      %v4060 = vpop.f32.mrb[0].mxu0
      %v4061 = vpop.f32.mrb[0].mxu0
      %v4062 = vadd.f32 0.0, %v4061
      %v4063 = vpop.f32.mrb[0].mxu0
      %4064 = vmatprep.mubr.bf16.mxu0 0
      %4065 = vmatmul.mubr.bf16.gmra.mrb[0].mxu0 %v4016
      %v4066 = vpop.f32.mrb[0].mxu0
      %v4067 = vadd.f32 0.0, %v4066
      %v4068 = vpop.f32.mrb[0].mxu0
      %v4069 = vpop.f32.mrb[0].mxu0
      %v4070 = vadd.f32 0.0, %v4069
      %v4071 = vpop.f32.mrb[0].mxu0
      %4072 = vmatprep.mubr.bf16.mxu0 0
      %4073 = vmatmul.mubr.bf16.gmra.mrb[0].mxu0 %v4019
      %v4074 = vpop.f32.mrb[0].mxu0
      %v4075 = vadd.f32 0.0, %v4074
      %v4076 = vpop.f32.mrb[0].mxu0
      %v4077 = vpop.f32.mrb[0].mxu0
      %v4078 = vadd.f32 0.0, %v4077
      %v4079 = vpop.f32.mrb[0].mxu0
      %4080 = vmatprep.mubr.bf16.mxu0 0
      %4081 = vmatmul.mubr.bf16.gmra.mrb[0].mxu0 %v4022
      %v4082 = vpop.f32.mrb[0].mxu0
      %v4083 = vadd.f32 0.0, %v4082
      %v4084 = vpop.f32.mrb[0].mxu0
      %v4085 = vpop.f32.mrb[0].mxu0
      %v4086 = vadd.f32 0.0, %v4085
      %v4087 = vpop.f32.mrb[0].mxu0
      %4088 = vdwg.mxu0
      %v4090 = vsel %vm2781, %v3514, 0
      %v4093 = vsel %vm2781, %v3515, 0
      %v4096 = vsel %vm2781, %v3516, 0
      %v4099 = vsel %vm2781, %v3517, 0
      %4101 = vmatprep.subr.bf16.mxu0 0
      %4102 = vmatpush1.bf16.msra.mxu0 %v3546
      %4103 = vmatprep.subr.bf16.mxu0 0
      %4104 = vmatpush1.bf16.msra.mxu0 %v3547
      %4105 = vmatprep.subr.bf16.mxu0 0
      %4106 = vmatpush1.bf16.msra.mxu0 %v3548
      %4107 = vmatprep.subr.bf16.mxu0 0
      %4108 = vmatpush1.bf16.msra.mxu0 %v3549
      %4109 = vmatprep.subr.bf16.mxu0 0
      %4110 = vmatpush1.bf16.msra.mxu0 0
      %4111 = vmatprep.subr.bf16.mxu0 0
      %4112 = vmatpush1.bf16.msra.mxu0 0
      %4113 = vmatprep.subr.bf16.mxu0 0
      %4114 = vmatpush1.bf16.msra.mxu0 0
      %4115 = vmatprep.subr.bf16.mxu0 0
      %4116 = vmatpush1.bf16.msra.mxu0 0
      %4117 = vmatprep.subr.bf16.mxu0 0
      %4118 = vmatpush1.bf16.msra.mxu0 0
      %4119 = vmatprep.subr.bf16.mxu0 0
      %4120 = vmatpush1.bf16.msra.mxu0 0
      %4121 = vmatprep.subr.bf16.mxu0 0
      %4122 = vmatpush1.bf16.msra.mxu0 0
      %4123 = vmatprep.subr.bf16.mxu0 0
      %4124 = vmatpush1.bf16.msra.mxu0 0
      %4125 = vmatprep.subr.bf16.mxu0 0
      %4126 = vmatpush1.bf16.msra.mxu0 0
      %4127 = vmatprep.subr.bf16.mxu0 0
      %4128 = vmatpush1.bf16.msra.mxu0 0
      %4129 = vmatprep.subr.bf16.mxu0 0
      %4130 = vmatpush1.bf16.msra.mxu0 0
      %4131 = vmatprep.subr.bf16.mxu0 0
      %4132 = vmatpush1.bf16.msra.mxu0 0
      %4133 = vmatprep.mubr.bf16.mxu0 0
      %4134 = vmatmul.mubr.bf16.gmra.mrb[0].mxu0 %v4090
      %v4135 = vpop.f32.mrb[0].mxu0
      %v4136 = vadd.f32 0.0, %v4135
      %v4137 = vpop.f32.mrb[0].mxu0
      %v4138 = vpop.f32.mrb[0].mxu0
      %v4139 = vadd.f32 0.0, %v4138
      %v4140 = vpop.f32.mrb[0].mxu0
      %4141 = vmatprep.mubr.bf16.mxu0 0
      %4142 = vmatmul.mubr.bf16.gmra.mrb[0].mxu0 %v4093
      %v4143 = vpop.f32.mrb[0].mxu0
      %v4144 = vadd.f32 0.0, %v4143
      %v4145 = vpop.f32.mrb[0].mxu0
      %v4146 = vpop.f32.mrb[0].mxu0
      %v4147 = vadd.f32 0.0, %v4146
      %v4148 = vpop.f32.mrb[0].mxu0
      %4149 = vmatprep.mubr.bf16.mxu0 0
      %4150 = vmatmul.mubr.bf16.gmra.mrb[0].mxu0 %v4096
      %v4151 = vpop.f32.mrb[0].mxu0
      %v4152 = vadd.f32 0.0, %v4151
      %v4153 = vpop.f32.mrb[0].mxu0
      %v4154 = vpop.f32.mrb[0].mxu0
      %v4155 = vadd.f32 0.0, %v4154
      %v4156 = vpop.f32.mrb[0].mxu0
      %4157 = vmatprep.mubr.bf16.mxu0 0
      %4158 = vmatmul.mubr.bf16.gmra.mrb[0].mxu0 %v4099
      %v4159 = vpop.f32.mrb[0].mxu0
      %v4160 = vadd.f32 0.0, %v4159
      %v4161 = vpop.f32.mrb[0].mxu0
      %v4162 = vpop.f32.mrb[0].mxu0
      %v4163 = vadd.f32 0.0, %v4162
      %v4164 = vpop.f32.mrb[0].mxu0
      %4165 = vdwg.mxu0
      %v4166 = vpack.c.bf16 %v3600, %v3597
      %v4167 = vpack.c.bf16 %v3608, %v3605
      %v4168 = vpack.c.bf16 %v3616, %v3613
      %v4169 = vpack.c.bf16 %v3624, %v3621
      %v4170 = vpack.c.bf16 %v3677, %v3674
      %v4171 = vpack.c.bf16 %v3685, %v3682
      %v4172 = vpack.c.bf16 %v3693, %v3690
      %v4173 = vpack.c.bf16 %v3701, %v3698
      %v4174 = vld [vmem:[%s8] sm:$0xf]
      %v4175 = vpack.c.bf16 %v3754, %v3751
      %v4176 = vpack.c.bf16 %v3762, %v3759
      %v4177 = vpack.c.bf16 %v3770, %v3767
      %v4178 = vpack.c.bf16 %v3778, %v3775
      %v4179 = vpack.c.bf16 %v3831, %v3828
      %v4180 = vpack.c.bf16 %v3839, %v3836
      %v4181 = vpack.c.bf16 %v3847, %v3844
      %v4182 = vpack.c.bf16 %v3855, %v3852
      %s4183 = scalar_lea.vmem %s8, 4
      %v4184 = vld [vmem:[%s4183] sm:$0xf]
      %v4186 = vsel %vm1972, %v4175, 0
      %v4189 = vsel %vm1972, %v4176, 0
      %v4192 = vsel %vm1972, %v4177, 0
      %v4195 = vsel %vm1972, %v4178, 0
      %v4198 = vsel %vm1972, %v4179, 0
      %v4201 = vsel %vm1972, %v4180, 0
      %v4204 = vsel %vm1972, %v4181, 0
      %v4207 = vsel %vm1972, %v4182, 0
      %vm4209 = vcmask 1043456
      %v4211 = vsel %vm4209, %v4184, 0
      %4213 = vmatprep.subr.bf16.mxu0 0
      %4214 = vmatpush1.bf16.msra.mxu0 %v4211
      %4215 = vmatprep.subr.bf16.mxu0 0
      %4216 = vmatpush1.bf16.msra.mxu0 0
      %4217 = vmatprep.subr.bf16.mxu0 0
      %4218 = vmatpush1.bf16.msra.mxu0 0
      %4219 = vmatprep.subr.bf16.mxu0 0
      %4220 = vmatpush1.bf16.msra.mxu0 0
      %4221 = vmatprep.subr.bf16.mxu0 0
      %4222 = vmatpush1.bf16.msra.mxu0 0
      %4223 = vmatprep.subr.bf16.mxu0 0
      %4224 = vmatpush1.bf16.msra.mxu0 0
      %4225 = vmatprep.subr.bf16.mxu0 0
      %4226 = vmatpush1.bf16.msra.mxu0 0
      %4227 = vmatprep.subr.bf16.mxu0 0
      %4228 = vmatpush1.bf16.msra.mxu0 0
      %4229 = vmatprep.subr.bf16.mxu0 0
      %4230 = vmatpush1.bf16.msra.mxu0 0
      %4231 = vmatprep.subr.bf16.mxu0 0
      %4232 = vmatpush1.bf16.msra.mxu0 0
      %4233 = vmatprep.subr.bf16.mxu0 0
      %4234 = vmatpush1.bf16.msra.mxu0 0
      %4235 = vmatprep.subr.bf16.mxu0 0
      %4236 = vmatpush1.bf16.msra.mxu0 0
      %4237 = vmatprep.subr.bf16.mxu0 0
      %4238 = vmatpush1.bf16.msra.mxu0 0
      %4239 = vmatprep.subr.bf16.mxu0 0
      %4240 = vmatpush1.bf16.msra.mxu0 0
      %4241 = vmatprep.subr.bf16.mxu0 0
      %4242 = vmatpush1.bf16.msra.mxu0 0
      %4243 = vmatprep.subr.bf16.mxu0 0
      %4244 = vmatpush1.bf16.msra.mxu0 0
      %4245 = vmatprep.mubr.bf16.mxu0 0
      %4246 = vmatmul.mubr.bf16.gmra.mrb[0].mxu0 %v4186
      %v4247 = vpop.f32.mrb[0].mxu0
      %v4248 = vadd.f32 0.0, %v4247
      %v4249 = vpop.f32.mrb[0].mxu0
      %v4250 = vpop.f32.mrb[0].mxu0
      %v4251 = vadd.f32 0.0, %v4250
      %v4252 = vpop.f32.mrb[0].mxu0
      %4253 = vmatprep.mubr.bf16.mxu0 0
      %4254 = vmatmul.mubr.bf16.gmra.mrb[0].mxu0 %v4189
      %v4255 = vpop.f32.mrb[0].mxu0
      %v4256 = vadd.f32 0.0, %v4255
      %v4257 = vpop.f32.mrb[0].mxu0
      %v4258 = vpop.f32.mrb[0].mxu0
      %v4259 = vadd.f32 0.0, %v4258
      %v4260 = vpop.f32.mrb[0].mxu0
      %4261 = vmatprep.mubr.bf16.mxu0 0
      %4262 = vmatmul.mubr.bf16.gmra.mrb[0].mxu0 %v4192
      %v4263 = vpop.f32.mrb[0].mxu0
      %v4264 = vadd.f32 0.0, %v4263
      %v4265 = vpop.f32.mrb[0].mxu0
      %v4266 = vpop.f32.mrb[0].mxu0
      %v4267 = vadd.f32 0.0, %v4266
      %v4268 = vpop.f32.mrb[0].mxu0
      %4269 = vmatprep.mubr.bf16.mxu0 0
      %4270 = vmatmul.mubr.bf16.gmra.mrb[0].mxu0 %v4195
      %v4271 = vpop.f32.mrb[0].mxu0
      %v4272 = vadd.f32 0.0, %v4271
      %v4273 = vpop.f32.mrb[0].mxu0
      %v4274 = vpop.f32.mrb[0].mxu0
      %v4275 = vadd.f32 0.0, %v4274
      %v4276 = vpop.f32.mrb[0].mxu0
      %4277 = vmatprep.mubr.bf16.mxu0 0
      %4278 = vmatmul.mubr.bf16.gmra.mrb[0].mxu0 %v4198
      %v4279 = vpop.f32.mrb[0].mxu0
      %v4280 = vadd.f32 0.0, %v4279
      %v4281 = vpop.f32.mrb[0].mxu0
      %v4282 = vpop.f32.mrb[0].mxu0
      %v4283 = vadd.f32 0.0, %v4282
      %v4284 = vpop.f32.mrb[0].mxu0
      %4285 = vmatprep.mubr.bf16.mxu0 0
      %4286 = vmatmul.mubr.bf16.gmra.mrb[0].mxu0 %v4201
      %v4287 = vpop.f32.mrb[0].mxu0
      %v4288 = vadd.f32 0.0, %v4287
      %v4289 = vpop.f32.mrb[0].mxu0
      %v4290 = vpop.f32.mrb[0].mxu0
      %v4291 = vadd.f32 0.0, %v4290
      %v4292 = vpop.f32.mrb[0].mxu0
      %4293 = vmatprep.mubr.bf16.mxu0 0
      %4294 = vmatmul.mubr.bf16.gmra.mrb[0].mxu0 %v4204
      %v4295 = vpop.f32.mrb[0].mxu0
      %v4296 = vadd.f32 0.0, %v4295
      %v4297 = vpop.f32.mrb[0].mxu0
      %v4298 = vpop.f32.mrb[0].mxu0
      %v4299 = vadd.f32 0.0, %v4298
      %v4300 = vpop.f32.mrb[0].mxu0
      %4301 = vmatprep.mubr.bf16.mxu0 0
      %4302 = vmatmul.mubr.bf16.gmra.mrb[0].mxu0 %v4207
      %v4303 = vpop.f32.mrb[0].mxu0
      %v4304 = vadd.f32 0.0, %v4303
      %v4305 = vpop.f32.mrb[0].mxu0
      %v4306 = vpop.f32.mrb[0].mxu0
      %v4307 = vadd.f32 0.0, %v4306
      %v4308 = vpop.f32.mrb[0].mxu0
      %4309 = vdwg.mxu0
      %v4311 = vsel %vm1972, %v4166, 0
      %v4314 = vsel %vm1972, %v4167, 0
      %v4317 = vsel %vm1972, %v4168, 0
      %v4320 = vsel %vm1972, %v4169, 0
      %v4323 = vsel %vm1972, %v4170, 0
      %v4326 = vsel %vm1972, %v4171, 0
      %v4329 = vsel %vm1972, %v4172, 0
      %v4332 = vsel %vm1972, %v4173, 0
      %v4335 = vsel %vm4209, %v4174, 0
      %4337 = vmatprep.subr.bf16.mxu0 0
      %4338 = vmatpush1.bf16.msra.mxu0 %v4335
      %4339 = vmatprep.subr.bf16.mxu0 0
      %4340 = vmatpush1.bf16.msra.mxu0 0
      %4341 = vmatprep.subr.bf16.mxu0 0
      %4342 = vmatpush1.bf16.msra.mxu0 0
      %4343 = vmatprep.subr.bf16.mxu0 0
      %4344 = vmatpush1.bf16.msra.mxu0 0
      %4345 = vmatprep.subr.bf16.mxu0 0
      %4346 = vmatpush1.bf16.msra.mxu0 0
      %4347 = vmatprep.subr.bf16.mxu0 0
      %4348 = vmatpush1.bf16.msra.mxu0 0
      %4349 = vmatprep.subr.bf16.mxu0 0
      %4350 = vmatpush1.bf16.msra.mxu0 0
      %4351 = vmatprep.subr.bf16.mxu0 0
      %4352 = vmatpush1.bf16.msra.mxu0 0
      %4353 = vmatprep.subr.bf16.mxu0 0
      %4354 = vmatpush1.bf16.msra.mxu0 0
      %4355 = vmatprep.subr.bf16.mxu0 0
      %4356 = vmatpush1.bf16.msra.mxu0 0
      %4357 = vmatprep.subr.bf16.mxu0 0
      %4358 = vmatpush1.bf16.msra.mxu0 0
      %4359 = vmatprep.subr.bf16.mxu0 0
      %4360 = vmatpush1.bf16.msra.mxu0 0
      %4361 = vmatprep.subr.bf16.mxu0 0
      %4362 = vmatpush1.bf16.msra.mxu0 0
      %4363 = vmatprep.subr.bf16.mxu0 0
      %4364 = vmatpush1.bf16.msra.mxu0 0
      %4365 = vmatprep.subr.bf16.mxu0 0
      %4366 = vmatpush1.bf16.msra.mxu0 0
      %4367 = vmatprep.subr.bf16.mxu0 0
      %4368 = vmatpush1.bf16.msra.mxu0 0
      %4369 = vmatprep.mubr.bf16.mxu0 0
      %4370 = vmatmul.mubr.bf16.gmra.mrb[0].mxu0 %v4311
      %v4371 = vpop.f32.mrb[0].mxu0
      %v4372 = vadd.f32 %v4248, %v4371
      %v4373 = vpop.f32.mrb[0].mxu0
      %v4374 = vpop.f32.mrb[0].mxu0
      %v4375 = vadd.f32 %v4251, %v4374
      %v4376 = vpop.f32.mrb[0].mxu0
      %4377 = vmatprep.mubr.bf16.mxu0 0
      %4378 = vmatmul.mubr.bf16.gmra.mrb[0].mxu0 %v4314
      %v4379 = vpop.f32.mrb[0].mxu0
      %v4380 = vadd.f32 %v4256, %v4379
      %v4381 = vpop.f32.mrb[0].mxu0
      %v4382 = vpop.f32.mrb[0].mxu0
      %v4383 = vadd.f32 %v4259, %v4382
      %v4384 = vpop.f32.mrb[0].mxu0
      %4385 = vmatprep.mubr.bf16.mxu0 0
      %4386 = vmatmul.mubr.bf16.gmra.mrb[0].mxu0 %v4317
      %v4387 = vpop.f32.mrb[0].mxu0
      %v4388 = vadd.f32 %v4264, %v4387
      %v4389 = vpop.f32.mrb[0].mxu0
      %v4390 = vpop.f32.mrb[0].mxu0
      %v4391 = vadd.f32 %v4267, %v4390
      %v4392 = vpop.f32.mrb[0].mxu0
      %4393 = vmatprep.mubr.bf16.mxu0 0
      %4394 = vmatmul.mubr.bf16.gmra.mrb[0].mxu0 %v4320
      %v4395 = vpop.f32.mrb[0].mxu0
      %v4396 = vadd.f32 %v4272, %v4395
      %v4397 = vpop.f32.mrb[0].mxu0
      %v4398 = vpop.f32.mrb[0].mxu0
      %v4399 = vadd.f32 %v4275, %v4398
      %v4400 = vpop.f32.mrb[0].mxu0
      %4401 = vmatprep.mubr.bf16.mxu0 0
      %4402 = vmatmul.mubr.bf16.gmra.mrb[0].mxu0 %v4323
      %v4403 = vpop.f32.mrb[0].mxu0
      %v4404 = vadd.f32 %v4280, %v4403
      %v4405 = vpop.f32.mrb[0].mxu0
      %v4406 = vpop.f32.mrb[0].mxu0
      %v4407 = vadd.f32 %v4283, %v4406
      %v4408 = vpop.f32.mrb[0].mxu0
      %4409 = vmatprep.mubr.bf16.mxu0 0
      %4410 = vmatmul.mubr.bf16.gmra.mrb[0].mxu0 %v4326
      %v4411 = vpop.f32.mrb[0].mxu0
      %v4412 = vadd.f32 %v4288, %v4411
      %v4413 = vpop.f32.mrb[0].mxu0
      %v4414 = vpop.f32.mrb[0].mxu0
      %v4415 = vadd.f32 %v4291, %v4414
      %v4416 = vpop.f32.mrb[0].mxu0
      %4417 = vmatprep.mubr.bf16.mxu0 0
      %4418 = vmatmul.mubr.bf16.gmra.mrb[0].mxu0 %v4329
      %v4419 = vpop.f32.mrb[0].mxu0
      %v4420 = vadd.f32 %v4296, %v4419
      %v4421 = vpop.f32.mrb[0].mxu0
      %v4422 = vpop.f32.mrb[0].mxu0
      %v4423 = vadd.f32 %v4299, %v4422
      %v4424 = vpop.f32.mrb[0].mxu0
      %4425 = vmatprep.mubr.bf16.mxu0 0
      %4426 = vmatmul.mubr.bf16.gmra.mrb[0].mxu0 %v4332
      %v4427 = vpop.f32.mrb[0].mxu0
      %v4428 = vadd.f32 %v4304, %v4427
      %v4429 = vpop.f32.mrb[0].mxu0
      %v4430 = vpop.f32.mrb[0].mxu0
      %v4431 = vadd.f32 %v4307, %v4430
      %v4432 = vpop.f32.mrb[0].mxu0
      %4433 = vdwg.mxu0
      %v4434 = vpack.c.bf16 %v3908, %v3905
      %v4435 = vpack.c.bf16 %v3916, %v3913
      %v4436 = vpack.c.bf16 %v3924, %v3921
      %v4437 = vpack.c.bf16 %v3932, %v3929
      %v4438 = vpack.c.bf16 %v3985, %v3982
      %v4439 = vpack.c.bf16 %v3993, %v3990
      %v4440 = vpack.c.bf16 %v4001, %v3998
      %v4441 = vpack.c.bf16 %v4009, %v4006
      %s4442 = scalar_lea.vmem %s8, 8
      %v4443 = vld [vmem:[%s4442] sm:$0xf]
      %v4445 = vsel %vm1972, %v4434, 0
      %v4448 = vsel %vm1972, %v4435, 0
      %v4451 = vsel %vm1972, %v4436, 0
      %v4454 = vsel %vm1972, %v4437, 0
      %v4457 = vsel %vm1972, %v4438, 0
      %v4460 = vsel %vm1972, %v4439, 0
      %v4463 = vsel %vm1972, %v4440, 0
      %v4466 = vsel %vm1972, %v4441, 0
      %v4469 = vsel %vm4209, %v4443, 0
      %4471 = vmatprep.subr.bf16.mxu0 0
      %4472 = vmatpush1.bf16.msra.mxu0 %v4469
      %4473 = vmatprep.subr.bf16.mxu0 0
      %4474 = vmatpush1.bf16.msra.mxu0 0
      %4475 = vmatprep.subr.bf16.mxu0 0
      %4476 = vmatpush1.bf16.msra.mxu0 0
      %4477 = vmatprep.subr.bf16.mxu0 0
      %4478 = vmatpush1.bf16.msra.mxu0 0
      %4479 = vmatprep.subr.bf16.mxu0 0
      %4480 = vmatpush1.bf16.msra.mxu0 0
      %4481 = vmatprep.subr.bf16.mxu0 0
      %4482 = vmatpush1.bf16.msra.mxu0 0
      %4483 = vmatprep.subr.bf16.mxu0 0
      %4484 = vmatpush1.bf16.msra.mxu0 0
      %4485 = vmatprep.subr.bf16.mxu0 0
      %4486 = vmatpush1.bf16.msra.mxu0 0
      %4487 = vmatprep.subr.bf16.mxu0 0
      %4488 = vmatpush1.bf16.msra.mxu0 0
      %4489 = vmatprep.subr.bf16.mxu0 0
      %4490 = vmatpush1.bf16.msra.mxu0 0
      %4491 = vmatprep.subr.bf16.mxu0 0
      %4492 = vmatpush1.bf16.msra.mxu0 0
      %4493 = vmatprep.subr.bf16.mxu0 0
      %4494 = vmatpush1.bf16.msra.mxu0 0
      %4495 = vmatprep.subr.bf16.mxu0 0
      %4496 = vmatpush1.bf16.msra.mxu0 0
      %4497 = vmatprep.subr.bf16.mxu0 0
      %4498 = vmatpush1.bf16.msra.mxu0 0
      %4499 = vmatprep.subr.bf16.mxu0 0
      %4500 = vmatpush1.bf16.msra.mxu0 0
      %4501 = vmatprep.subr.bf16.mxu0 0
      %4502 = vmatpush1.bf16.msra.mxu0 0
      %4503 = vmatprep.mubr.bf16.mxu0 0
      %4504 = vmatmul.mubr.bf16.gmra.mrb[0].mxu0 %v4445
      %v4505 = vpop.f32.mrb[0].mxu0
      %v4506 = vadd.f32 0.0, %v4505
      %v4507 = vpop.f32.mrb[0].mxu0
      %v4508 = vpop.f32.mrb[0].mxu0
      %v4509 = vadd.f32 0.0, %v4508
      %v4510 = vpop.f32.mrb[0].mxu0
      %4511 = vmatprep.mubr.bf16.mxu0 0
      %4512 = vmatmul.mubr.bf16.gmra.mrb[0].mxu0 %v4448
      %v4513 = vpop.f32.mrb[0].mxu0
      %v4514 = vadd.f32 0.0, %v4513
      %v4515 = vpop.f32.mrb[0].mxu0
      %v4516 = vpop.f32.mrb[0].mxu0
      %v4517 = vadd.f32 0.0, %v4516
      %v4518 = vpop.f32.mrb[0].mxu0
      %4519 = vmatprep.mubr.bf16.mxu0 0
      %4520 = vmatmul.mubr.bf16.gmra.mrb[0].mxu0 %v4451
      %v4521 = vpop.f32.mrb[0].mxu0
      %v4522 = vadd.f32 0.0, %v4521
      %v4523 = vpop.f32.mrb[0].mxu0
      %v4524 = vpop.f32.mrb[0].mxu0
      %v4525 = vadd.f32 0.0, %v4524
      %v4526 = vpop.f32.mrb[0].mxu0
      %4527 = vmatprep.mubr.bf16.mxu0 0
      %4528 = vmatmul.mubr.bf16.gmra.mrb[0].mxu0 %v4454
      %v4529 = vpop.f32.mrb[0].mxu0
      %v4530 = vadd.f32 0.0, %v4529
      %v4531 = vpop.f32.mrb[0].mxu0
      %v4532 = vpop.f32.mrb[0].mxu0
      %v4533 = vadd.f32 0.0, %v4532
      %v4534 = vpop.f32.mrb[0].mxu0
      %4535 = vmatprep.mubr.bf16.mxu0 0
      %4536 = vmatmul.mubr.bf16.gmra.mrb[0].mxu0 %v4457
      %v4537 = vpop.f32.mrb[0].mxu0
      %v4538 = vadd.f32 0.0, %v4537
      %v4539 = vpop.f32.mrb[0].mxu0
      %v4540 = vpop.f32.mrb[0].mxu0
      %v4541 = vadd.f32 0.0, %v4540
      %v4542 = vpop.f32.mrb[0].mxu0
      %4543 = vmatprep.mubr.bf16.mxu0 0
      %4544 = vmatmul.mubr.bf16.gmra.mrb[0].mxu0 %v4460
      %v4545 = vpop.f32.mrb[0].mxu0
      %v4546 = vadd.f32 0.0, %v4545
      %v4547 = vpop.f32.mrb[0].mxu0
      %v4548 = vpop.f32.mrb[0].mxu0
      %v4549 = vadd.f32 0.0, %v4548
      %v4550 = vpop.f32.mrb[0].mxu0
      %4551 = vmatprep.mubr.bf16.mxu0 0
      %4552 = vmatmul.mubr.bf16.gmra.mrb[0].mxu0 %v4463
      %v4553 = vpop.f32.mrb[0].mxu0
      %v4554 = vadd.f32 0.0, %v4553
      %v4555 = vpop.f32.mrb[0].mxu0
      %v4556 = vpop.f32.mrb[0].mxu0
      %v4557 = vadd.f32 0.0, %v4556
      %v4558 = vpop.f32.mrb[0].mxu0
      %4559 = vmatprep.mubr.bf16.mxu0 0
      %4560 = vmatmul.mubr.bf16.gmra.mrb[0].mxu0 %v4466
      %v4561 = vpop.f32.mrb[0].mxu0
      %v4562 = vadd.f32 0.0, %v4561
      %v4563 = vpop.f32.mrb[0].mxu0
      %v4564 = vpop.f32.mrb[0].mxu0
      %v4565 = vadd.f32 0.0, %v4564
      %v4566 = vpop.f32.mrb[0].mxu0
      %4567 = vdwg.mxu0
      %v4568 = vadd.f32 %v4372, %v4506
      %v4569 = vadd.f32 %v4375, %v4509
      %v4570 = vadd.f32 %v4380, %v4514
      %v4571 = vadd.f32 %v4383, %v4517
      %v4572 = vadd.f32 %v4388, %v4522
      %v4573 = vadd.f32 %v4391, %v4525
      %v4574 = vadd.f32 %v4396, %v4530
      %v4575 = vadd.f32 %v4399, %v4533
      %v4576 = vadd.f32 %v4404, %v4538
      %v4577 = vadd.f32 %v4407, %v4541
      %v4578 = vadd.f32 %v4412, %v4546
      %v4579 = vadd.f32 %v4415, %v4549
      %v4580 = vadd.f32 %v4420, %v4554
      %v4581 = vadd.f32 %v4423, %v4557
      %v4582 = vadd.f32 %v4428, %v4562
      %v4583 = vadd.f32 %v4431, %v4565
      %v4584 = vpack.c.bf16 %v4062, %v4059
      %v4585 = vpack.c.bf16 %v4070, %v4067
      %v4586 = vpack.c.bf16 %v4078, %v4075
      %v4587 = vpack.c.bf16 %v4086, %v4083
      %v4588 = vpack.c.bf16 %v4139, %v4136
      %v4589 = vpack.c.bf16 %v4147, %v4144
      %v4590 = vpack.c.bf16 %v4155, %v4152
      %v4591 = vpack.c.bf16 %v4163, %v4160
      %s4592 = scalar_lea.vmem %s8, 12
      %v4593 = vld [vmem:[%s4592] sm:$0xf]
      %v4595 = vsel %vm1972, %v4584, 0
      %v4598 = vsel %vm1972, %v4585, 0
      %v4601 = vsel %vm1972, %v4586, 0
      %v4604 = vsel %vm1972, %v4587, 0
      %v4607 = vsel %vm1972, %v4588, 0
      %v4610 = vsel %vm1972, %v4589, 0
      %v4613 = vsel %vm1972, %v4590, 0
      %v4616 = vsel %vm1972, %v4591, 0
      %v4619 = vsel %vm4209, %v4593, 0
      %4621 = vmatprep.subr.bf16.mxu0 0
      %4622 = vmatpush1.bf16.msra.mxu0 %v4619
      %4623 = vmatprep.subr.bf16.mxu0 0
      %4624 = vmatpush1.bf16.msra.mxu0 0
      %4625 = vmatprep.subr.bf16.mxu0 0
      %4626 = vmatpush1.bf16.msra.mxu0 0
      %4627 = vmatprep.subr.bf16.mxu0 0
      %4628 = vmatpush1.bf16.msra.mxu0 0
      %4629 = vmatprep.subr.bf16.mxu0 0
      %4630 = vmatpush1.bf16.msra.mxu0 0
      %4631 = vmatprep.subr.bf16.mxu0 0
      %4632 = vmatpush1.bf16.msra.mxu0 0
      %4633 = vmatprep.subr.bf16.mxu0 0
      %4634 = vmatpush1.bf16.msra.mxu0 0
      %4635 = vmatprep.subr.bf16.mxu0 0
      %4636 = vmatpush1.bf16.msra.mxu0 0
      %4637 = vmatprep.subr.bf16.mxu0 0
      %4638 = vmatpush1.bf16.msra.mxu0 0
      %4639 = vmatprep.subr.bf16.mxu0 0
      %4640 = vmatpush1.bf16.msra.mxu0 0
      %4641 = vmatprep.subr.bf16.mxu0 0
      %4642 = vmatpush1.bf16.msra.mxu0 0
      %4643 = vmatprep.subr.bf16.mxu0 0
      %4644 = vmatpush1.bf16.msra.mxu0 0
      %4645 = vmatprep.subr.bf16.mxu0 0
      %4646 = vmatpush1.bf16.msra.mxu0 0
      %4647 = vmatprep.subr.bf16.mxu0 0
      %4648 = vmatpush1.bf16.msra.mxu0 0
      %4649 = vmatprep.subr.bf16.mxu0 0
      %4650 = vmatpush1.bf16.msra.mxu0 0
      %4651 = vmatprep.subr.bf16.mxu0 0
      %4652 = vmatpush1.bf16.msra.mxu0 0
      %4653 = vmatprep.mubr.bf16.mxu0 0
      %4654 = vmatmul.mubr.bf16.gmra.mrb[0].mxu0 %v4595
      %v4655 = vpop.f32.mrb[0].mxu0
      %v4656 = vadd.f32 0.0, %v4655
      %v4657 = vpop.f32.mrb[0].mxu0
      %v4658 = vpop.f32.mrb[0].mxu0
      %v4659 = vadd.f32 0.0, %v4658
      %v4660 = vpop.f32.mrb[0].mxu0
      %4661 = vmatprep.mubr.bf16.mxu0 0
      %4662 = vmatmul.mubr.bf16.gmra.mrb[0].mxu0 %v4598
      %v4663 = vpop.f32.mrb[0].mxu0
      %v4664 = vadd.f32 0.0, %v4663
      %v4665 = vpop.f32.mrb[0].mxu0
      %v4666 = vpop.f32.mrb[0].mxu0
      %v4667 = vadd.f32 0.0, %v4666
      %v4668 = vpop.f32.mrb[0].mxu0
      %4669 = vmatprep.mubr.bf16.mxu0 0
      %4670 = vmatmul.mubr.bf16.gmra.mrb[0].mxu0 %v4601
      %v4671 = vpop.f32.mrb[0].mxu0
      %v4672 = vadd.f32 0.0, %v4671
      %v4673 = vpop.f32.mrb[0].mxu0
      %v4674 = vpop.f32.mrb[0].mxu0
      %v4675 = vadd.f32 0.0, %v4674
      %v4676 = vpop.f32.mrb[0].mxu0
      %4677 = vmatprep.mubr.bf16.mxu0 0
      %4678 = vmatmul.mubr.bf16.gmra.mrb[0].mxu0 %v4604
      %v4679 = vpop.f32.mrb[0].mxu0
      %v4680 = vadd.f32 0.0, %v4679
      %v4681 = vpop.f32.mrb[0].mxu0
      %v4682 = vpop.f32.mrb[0].mxu0
      %v4683 = vadd.f32 0.0, %v4682
      %v4684 = vpop.f32.mrb[0].mxu0
      %4685 = vmatprep.mubr.bf16.mxu0 0
      %4686 = vmatmul.mubr.bf16.gmra.mrb[0].mxu0 %v4607
      %v4687 = vpop.f32.mrb[0].mxu0
      %v4688 = vadd.f32 0.0, %v4687
      %v4689 = vpop.f32.mrb[0].mxu0
      %v4690 = vpop.f32.mrb[0].mxu0
      %v4691 = vadd.f32 0.0, %v4690
      %v4692 = vpop.f32.mrb[0].mxu0
      %4693 = vmatprep.mubr.bf16.mxu0 0
      %4694 = vmatmul.mubr.bf16.gmra.mrb[0].mxu0 %v4610
      %v4695 = vpop.f32.mrb[0].mxu0
      %v4696 = vadd.f32 0.0, %v4695
      %v4697 = vpop.f32.mrb[0].mxu0
      %v4698 = vpop.f32.mrb[0].mxu0
      %v4699 = vadd.f32 0.0, %v4698
      %v4700 = vpop.f32.mrb[0].mxu0
      %4701 = vmatprep.mubr.bf16.mxu0 0
      %4702 = vmatmul.mubr.bf16.gmra.mrb[0].mxu0 %v4613
      %v4703 = vpop.f32.mrb[0].mxu0
      %v4704 = vadd.f32 0.0, %v4703
      %v4705 = vpop.f32.mrb[0].mxu0
      %v4706 = vpop.f32.mrb[0].mxu0
      %v4707 = vadd.f32 0.0, %v4706
      %v4708 = vpop.f32.mrb[0].mxu0
      %4709 = vmatprep.mubr.bf16.mxu0 0
      %4710 = vmatmul.mubr.bf16.gmra.mrb[0].mxu0 %v4616
      %v4711 = vpop.f32.mrb[0].mxu0
      %v4712 = vadd.f32 0.0, %v4711
      %v4713 = vpop.f32.mrb[0].mxu0
      %v4714 = vpop.f32.mrb[0].mxu0
      %v4715 = vadd.f32 0.0, %v4714
      %v4716 = vpop.f32.mrb[0].mxu0
      %4717 = vdwg.mxu0
      %v4718 = vadd.f32 %v4568, %v4656
      %v4719 = vadd.f32 %v4569, %v4659
      %v4720 = vadd.f32 %v4570, %v4664
      %v4721 = vadd.f32 %v4571, %v4667
      %v4722 = vadd.f32 %v4572, %v4672
      %v4723 = vadd.f32 %v4573, %v4675
      %v4724 = vadd.f32 %v4574, %v4680
      %v4725 = vadd.f32 %v4575, %v4683
      %v4726 = vadd.f32 %v4576, %v4688
      %v4727 = vadd.f32 %v4577, %v4691
      %v4728 = vadd.f32 %v4578, %v4696
      %v4729 = vadd.f32 %v4579, %v4699
      %v4730 = vadd.f32 %v4580, %v4704
      %v4731 = vadd.f32 %v4581, %v4707
      %v4732 = vadd.f32 %v4582, %v4712
      %v4733 = vadd.f32 %v4583, %v4715
      %v4734 = vld [vmem:[%s9] sm:$0x1]
      %v4736 = vlaneseq
      %v4737 = vshrl.u32 %v4736, 7
      %v4738 = vsub.s32 0, %v4737
      %v4739 = vrot.slane %v4734, %v4738
      %v4741 = vadd.f32 %v4718, %v4739
      %v4742 = vadd.f32 %v4719, %v4739
      %v4743 = vadd.f32 %v4720, %v4739
      %v4744 = vadd.f32 %v4721, %v4739
      %v4745 = vadd.f32 %v4722, %v4739
      %v4746 = vadd.f32 %v4723, %v4739
      %v4747 = vadd.f32 %v4724, %v4739
      %v4748 = vadd.f32 %v4725, %v4739
      %v4749 = vadd.f32 %v4726, %v4739
      %v4750 = vadd.f32 %v4727, %v4739
      %v4751 = vadd.f32 %v4728, %v4739
      %v4752 = vadd.f32 %v4729, %v4739
      %v4753 = vadd.f32 %v4730, %v4739
      %v4754 = vadd.f32 %v4731, %v4739
      %v4755 = vadd.f32 %v4732, %v4739
      %v4756 = vadd.f32 %v4733, %v4739
      %4757 = vst.msk [vmem:[%s366] sm:$0xff] %vm448, %v4741
      %4758 = vst.msk [vmem:[%s366 + $0x8] sm:$0xff] %vm448, %v4742
      %4759 = vst.msk [vmem:[%s366 + $0x10] sm:$0xff] %vm448, %v4743
      %4760 = vst.msk [vmem:[%s366 + $0x18] sm:$0xff] %vm448, %v4744
      %4761 = vst.msk [vmem:[%s366 + $0x20] sm:$0xff] %vm448, %v4745
      %4762 = vst.msk [vmem:[%s366 + $0x28] sm:$0xff] %vm448, %v4746
      %4763 = vst.msk [vmem:[%s366 + $0x30] sm:$0xff] %vm448, %v4747
      %4764 = vst.msk [vmem:[%s366 + $0x38] sm:$0xff] %vm448, %v4748
      %4765 = vst.msk [vmem:[%s366 + $0x40] sm:$0xff] %vm448, %v4749
      %4766 = vst.msk [vmem:[%s366 + $0x48] sm:$0xff] %vm448, %v4750
      %4767 = vst.msk [vmem:[%s366 + $0x50] sm:$0xff] %vm448, %v4751
      %4768 = vst.msk [vmem:[%s366 + $0x58] sm:$0xff] %vm448, %v4752
      %4769 = vst.msk [vmem:[%s366 + $0x60] sm:$0xff] %vm448, %v4753
      %4770 = vst.msk [vmem:[%s366 + $0x68] sm:$0xff] %vm448, %v4754
      %4771 = vst.msk [vmem:[%s366 + $0x70] sm:$0xff] %vm448, %v4755
      %4772 = vst.msk [vmem:[%s366 + $0x78] sm:$0xff] %vm448, %v4756
      %s4773 = smul.u32 2, %s21
      %p4774 = scmp.lt.s32.totalorder %s4773, 7
      %s4775 = scalar_select %p4774, %s4773, 7
      %s4776 = smul.addr %s4775, 8
      %s4777 = smul.addr %s4776, 8
      %s4778 = scalar_lea.vmem %s10, %s4777
      // Predicated region
      $region61: #{tpu_custom_call.1} parent=59 // pred_check
        %p4779 = pneg %p254
      $region62: #{tpu_custom_call.1} parent=59 // pred_check_branch
        %4781 = sbr.rel (%p4779) target = $region64
      $region63: #{tpu_custom_call.1} parent=59 // pred_region
        %s4782 = smul.u32 2, %s21
      $region64: #{tpu_custom_call.1} parent=59 // pred_fallthru
        _
    $region60: #{tpu_custom_call.1} parent=5 // pred_fallthru
      _
    %p4783 = scmp.le.s32.totalorder 2, %s16
    // Predicated region
    $region65: #{tpu_custom_call.1} parent=5 // pred_check
      %p4784 = pneg %p4783
    $region66: #{tpu_custom_call.1} parent=5 // pred_check_branch
      %4786 = sbr.rel (%p4784) target = $region68
    $region67: #{tpu_custom_call.1} parent=5 // pred_region
      %s4787 = ssub.s32 %s16, 2
      // Predicated region
      $region69: #{tpu_custom_call.1} parent=67 // pred_check
        %p4788 = pneg %p260
      $region70: #{tpu_custom_call.1} parent=67 // pred_check_branch
        %4790 = sbr.rel (%p4788) target = $region72
      $region71: #{tpu_custom_call.1} parent=67 // pred_region
        %s4791 = smul.u32 2, %s22
        %p4792 = scmp.lt.s32.totalorder %s4791, 7
        %s4793 = scalar_select %p4792, %s4791, 7
        %s4794 = smul.addr %s4793, 8
        %s4795 = smul.addr %s4794, 8
        %s4796 = scalar_lea.vmem %s10, %s4795
      $region72: #{tpu_custom_call.1} parent=67 // pred_fallthru
        _
    $region68: #{tpu_custom_call.1} parent=5 // pred_fallthru
      _
  $region6: #{tpu_custom_call.1} parent=0 // loop_footer
    %s20 = sadd.s32 1, %s16
  $region7: #{tpu_custom_call.1} parent=0 // loop_footer_branch
    %15 = sbr.rel target = $region3
  $region8: #{tpu_custom_call.1} parent=0 // loop_exit
    _

</llo_original>
